<compile_context>
chip_gen: v7x
topology: tpu7x:2x2x1
jax: 0.10.0
libtpu: 0.0.40
codegen_flags: <defaults>
</compile_context>

<pallas_src>
import numpy as np
import jax
import jax.numpy as jnp
from jax.experimental import pallas as pl
from jax.experimental.pallas import tpu as pltpu

# ---------------- problem constants (consistent with the module) ------------------
WINDOW_SIZE = 8          # pose_client.ONLINE_WINDOW_SIZE
NUM_TRAJ_PARAM = 5       # pose_client.NUMBER_OF_TRAJ_PARAM
NUM_JOINTS = 16          # pose_client.NUM_OF_JOINTS
SMOOTHNESS_MODE = "velocity"
FUTURE_PROJ = False
ENERGY_WEIGHTS = {"proj": 0.5, "smooth": 0.3, "bone": 0.2}

W = WINDOW_SIZE
P = NUM_TRAJ_PARAM
J = NUM_JOINTS

# ---------------- lane-dense packing geometry --------------------------------------
LANES = 128                      # vreg lane width
B_LANE = LANES // J              # 8 independent problems per 128-lane group
K_HALF = 16                      # 3*P = 15 trajectory rows padded to 16
K2 = 2 * K_HALF                  # [traj params | bone-diff traj params] = 32
R_PROJ = 2 * 8                   # 16 rows: camera-folded u|v, frames 1..W-1 (+pad)
R_ACC = 3 * 8                    # 24 rows: acceleration planes per coord (+pad)
R_BONE = 3 * 8                   # 24 rows: per-frame bone-diff planes per coord
R2 = R_PROJ + R_ACC + R_BONE     # 64 rows of the fused basis


# ---------------- glue: trajectory cosine basis (exactly as the PyTorch code) ------
def make_traj_basis(window_size, num_traj_param):
    pm1 = num_traj_param - 1
    phase = (np.arange(pm1) % 2).astype(np.float32)
    freq = (np.arange(pm1) // 2 + 1).astype(np.float32)
    cos_term = np.zeros((window_size, pm1), dtype=np.float32)
    for t in range(window_size):
        cos_term[t, :] = np.cos(
            freq * 2.0 * np.pi * t / (window_size - 1) + phase * np.pi / 2.0
        )
    for param in range(pm1):
        if param == 0:
            u_t = cos_term[:, param].copy()
        else:
            v_t = cos_term[:, param].copy()
            u_t = v_t - np.dot(v_t, u_t) / np.dot(u_t, u_t) * u_t
        cos_term[:, param] = u_t / np.linalg.norm(u_t)
    # column 0 multiplies traj[0] (constant term), columns 1: are the cos basis
    return np.concatenate([np.ones((window_size, 1), np.float32), cos_term], axis=1)


# ---------------- host-precomputed fused basis (shared across the whole grid) ------
def build_fused_basis(basis, cam):
    """Fused (R2, K2) LHS.

    K columns  0..14 : trajectory params, layout c*P + p
    K columns 16..30 : bone-difference trajectory params, same layout
    Rows  0..15 : camera-folded projection of frames 1..W-1 (u rows | v rows)
    Rows 16..39 : second-difference (acceleration) basis per coord
    Rows 40..63 : pose basis applied to the bone-diff params -> per-frame bone diffs
    """
    M = np.zeros((R2, K2), np.float32)
    # section A: camera-folded projection, row = uv*8 + t (frame t+1)
    for uv in range(2):
        for c in range(3):
            M[uv * 8: uv * 8 + (W - 1), c * P:(c + 1) * P] = cam[uv, c] * basis[1:, :]
    # section B: acceleration (second differences), row = R_PROJ + c*8 + t
    accel = basis[2:, :] - 2.0 * basis[1:-1, :] + basis[:-2, :]          # (W-2, P)
    for c in range(3):
        M[R_PROJ + c * 8: R_PROJ + c * 8 + (W - 2), c * P:(c + 1) * P] = accel
    # section C: bone diffs, row = R_PROJ + R_ACC + c*8 + t, acting on diff columns
    for c in range(3):
        M[R_PROJ + R_ACC + c * 8: R_PROJ + R_ACC + c * 8 + W,
          K_HALF + c * P: K_HALF + (c + 1) * P] = basis
    return M


# ---------------- host/jit-side packing into lane-concatenated slabs ---------------
def pack_trajectory_with_bone_diffs(traj, bones_a, bones_b, nb_outer, nb_tile):
    """traj (B,P,3,J) -> (nb_outer, K2, nb_tile*128); rows = [traj | bone-diff traj]."""
    diff = traj[:, :, :, bones_a] - traj[:, :, :, bones_b]               # (B,P,3,J-1)
    diff = jnp.pad(diff, ((0, 0), (0, 0), (0, 0), (0, J - (J - 1))))     # pad bone lane

    def lane_pack(x):                                                    # (B,P,3,J)
        x = x.reshape(nb_outer, nb_tile, B_LANE, P, 3, J)
        x = jnp.transpose(x, (0, 4, 3, 1, 2, 5))       # (outer, 3, P, tile, b, J)
        x = x.reshape(nb_outer, 3 * P, nb_tile * B_LANE * J)
        return jnp.pad(x, ((0, 0), (0, K_HALF - 3 * P), (0, 0)))

    return jnp.concatenate([lane_pack(traj), lane_pack(diff)], axis=1)   # (outer,32,L)


def pack_pose2d(pose_2d, nb_outer, nb_tile):
    """pose_2d (B, W-1, 2, J) -> (nb_outer, 16, L); row = uv*8 + frame_offset."""
    p = pose_2d.reshape(nb_outer, nb_tile, B_LANE, W - 1, 2, J)
    p = jnp.transpose(p, (0, 4, 3, 1, 2, 5))            # (outer, 2, W-1, tile, b, J)
    p = jnp.pad(p, ((0, 0), (0, 0), (0, 8 - (W - 1)), (0, 0), (0, 0), (0, 0)))
    return p.reshape(nb_outer, R_PROJ, nb_tile * B_LANE * J)


def pack_bone_lengths(bone_lengths, nb_outer, nb_tile):
    """bone_lengths (B, W, J-1) -> (nb_outer, 8, L); row = frame, lane = b*J + bone."""
    b = jnp.pad(bone_lengths, ((0, 0), (0, 0), (0, J - (J - 1))))
    b = b.reshape(nb_outer, nb_tile, B_LANE, W, J)
    b = jnp.transpose(b, (0, 3, 1, 2, 4))               # (outer, W, tile, b, J)
    return b.reshape(nb_outer, W, nb_tile * B_LANE * J)


# ---------------- the Pallas kernel: whole forward pass ----------------------------
def make_pose3d_loss_kernel(c_proj, c_smooth, c_bone):
    """c_* = energy_weight / normalizer, folded to compile-time scalars."""

    def kernel(m_ref, t_ref, p2d_ref, blen_ref, out_ref):
        # ONE fused matmul produces projected-2D planes, acceleration planes and
        # per-frame bone-difference planes for all NB_TILE*8 problems at once.
        y = jnp.dot(m_ref[...], t_ref[...],
                    preferred_element_type=jnp.float32)              # (64, L)
        proj = y[0:R_PROJ, :]                                        # (16, L)
        acc = y[R_PROJ:R_PROJ + R_ACC, :]                            # (24, L)
        dbn = y[R_PROJ + R_ACC:, :]                                  # (24, L)

        # 'proj': squared 2D reprojection error (pad rows are zero on both sides)
        d = proj - p2d_ref[...]
        row_proj = jnp.sum(d * d, axis=0, keepdims=True)             # (1, L)

        # 'smooth': squared acceleration (2nd differences folded into the basis)
        row_smooth = jnp.sum(acc * acc, axis=0, keepdims=True)       # (1, L)

        # 'bone': squared-bone-length error (bone diffs folded into the basis)
        dx = dbn[0:W, :]
        dy = dbn[W:2 * W, :]
        dz = dbn[2 * W:3 * W, :]
        length_of_bone = dx * dx + dy * dy + dz * dz                 # (W, L)
        berr = length_of_bone - blen_ref[...]
        row_bone = jnp.sum(berr * berr, axis=0, keepdims=True)       # (1, L)

        # weighted combination -> one lane-dense row; per-problem 16-lane sum is
        # done in the wrapper (cheaper than a 1-row MXU matmul).
        out_ref[...] = c_proj * row_proj + c_smooth * row_smooth + c_bone * row_bone

    return kernel


def build_pallas_call(nb_outer, nb_tile, c_proj, c_smooth, c_bone):
    lanes_total = nb_tile * LANES
    kernel = make_pose3d_loss_kernel(c_proj, c_smooth, c_bone)

    flops_per_step = 2 * R2 * K2 * lanes_total + 180 * lanes_total
    # per-step streamed bytes: trajectory+diff (K2 rows) + observed 2D + bone
    # lengths + 1 output row; the shared fused basis is DMA'd once (constant map).
    bytes_per_step = 4 * lanes_total * (K2 + R_PROJ + W + 1)
    shared_bytes = 4 * R2 * K2

    return pl.pallas_call(
        kernel,
        out_shape=jax.ShapeDtypeStruct((nb_outer, 1, lanes_total), jnp.float32),
        grid=(nb_outer,),
        in_specs=[
            pl.BlockSpec((R2, K2), lambda i: (0, 0)),                   # fused basis (shared)
            pl.BlockSpec((None, K2, lanes_total), lambda i: (i, 0, 0)),     # traj | diff
            pl.BlockSpec((None, R_PROJ, lanes_total), lambda i: (i, 0, 0)),  # observed 2D
            pl.BlockSpec((None, W, lanes_total), lambda i: (i, 0, 0)),       # bone lengths
        ],
        out_specs=pl.BlockSpec((None, 1, lanes_total), lambda i: (i, 0, 0)),
        compiler_params=pltpu.CompilerParams(
            dimension_semantics=("parallel",)),
        cost_estimate=pl.CostEstimate(
            flops=int(nb_outer * flops_per_step),
            transcendentals=0,
            bytes_accessed=int(nb_outer * bytes_per_step + shared_bytes)),
    )


def build_forward_fn(bone_connections, energy_weights, nb_outer, nb_tile):
    c_proj = float(energy_weights["proj"]) / (2.0 * J)
    c_smooth = float(energy_weights["smooth"]) / (3.0 * J)
    c_bone = float(energy_weights["bone"]) / (J - 1.0)
    call = build_pallas_call(nb_outer, nb_tile, c_proj, c_smooth, c_bone)
    bones_a = jnp.asarray(bone_connections[:, 0])
    bones_b = jnp.asarray(bone_connections[:, 1])

    @jax.jit
    def forward(fused_basis, traj, p2d_packed, blen_packed):
        # only the trajectory (learnable parameter) changes per optimizer step;
        # its packing is jit-fused with the pallas_call.
        t_packed = pack_trajectory_with_bone_diffs(
            traj, bones_a, bones_b, nb_outer, nb_tile)
        row = call(fused_basis, t_packed, p2d_packed, blen_packed)   # (outer, 1, L)
        # per-problem overall loss = sum over that problem's 16 joint lanes
        return row.reshape(-1, J).sum(axis=-1)

    return forward


# ---------------- pure-JAX reference (for correctness check) -----------------------
def reference_forward_single(basis, traj_b, pose2d_b, cam, bones_a, bones_b,
                             blen_b, weights):
    proj3d = jnp.einsum("wp,pcj->wcj", basis, traj_b, precision="highest")   # (W,3,J)
    projected2d = jnp.einsum("uc,wcj->wuj", cam, proj3d[1:], precision="highest")
    proj = jnp.sum((projected2d - pose2d_b) ** 2) / (2.0 * J)
    vel = proj3d[1:] - proj3d[:-1]
    smooth = jnp.sum((vel[1:] - vel[:-1]) ** 2) / (3.0 * J)
    diff = proj3d[:, :, bones_a] - proj3d[:, :, bones_b]
    lob = jnp.sum(diff ** 2, axis=1)                                         # (W, J-1)
    bone = jnp.sum((lob - blen_b) ** 2) / (J - 1.0)
    return weights[0] * proj + weights[1] * smooth + weights[2] * bone


if __name__ == "__main__":
    NB_TILE = 32                       # lane-blocks per grid step (coarsened grid)
    NB_OUTER = 2                       # keep >= 2 grid steps (dual TC on v7x)
    B_TOTAL = NB_OUTER * NB_TILE * B_LANE          # 512 independent problems

    key = jax.random.PRNGKey(0)
    k_traj, k_p2d, k_blen = jax.random.split(key, 3)

    # learnable trajectory parameters (module inits to zeros; use init_pose3d-style data)
    traj = jax.random.normal(k_traj, (B_TOTAL, P, 3, J), dtype=jnp.float32) * 0.5
    # observed 2D keypoints for frames 1..W-1 (future_proj = False)
    pose_2d = jax.random.normal(k_p2d, (B_TOTAL, W - 1, 2, J), dtype=jnp.float32)
    # target (squared) bone lengths, repeated over the window (boneLengths.repeat(W,1))
    bone_row = jax.random.uniform(k_blen, (B_TOTAL, J - 1), dtype=jnp.float32,
                                  minval=0.1, maxval=1.0)
    bone_lengths = jnp.tile(bone_row[:, None, :], (1, W, 1))        # (B, W, J-1)

    # kinematic-tree bone connections (J-1 bones, arbitrary pairs supported)
    bone_connections = np.array(
        [(0, 1), (1, 2), (2, 3), (0, 4), (4, 5), (5, 6), (0, 7), (7, 8),
         (8, 9), (9, 10), (8, 11), (11, 12), (12, 13), (8, 14), (14, 15)],
        dtype=np.int32)
    # fixed linear camera (stand-in for projection_client.take_projection)
    cam = np.asarray([[1.0, 0.0, 0.3], [0.0, 1.0, -0.2]], dtype=np.float32)
    basis = make_traj_basis(W, P)
    fused_basis = jnp.asarray(build_fused_basis(basis, cam))        # (64, 32), shared

    # constant-across-steps packings (hoisted out of the per-step path)
    p2d_packed = pack_pose2d(pose_2d, NB_OUTER, NB_TILE)            # (2, 16, 4096)
    blen_packed = pack_bone_lengths(bone_lengths, NB_OUTER, NB_TILE)  # (2, 8, 4096)

    forward = build_forward_fn(bone_connections, ENERGY_WEIGHTS, NB_OUTER, NB_TILE)
    losses = forward(fused_basis, traj, p2d_packed, blen_packed)
    losses = jax.block_until_ready(losses)

    # reference: vmap the single-problem forward over all problems
    weights = jnp.asarray(
        [ENERGY_WEIGHTS["proj"], ENERGY_WEIGHTS["smooth"], ENERGY_WEIGHTS["bone"]],
        dtype=jnp.float32)
    ref = jax.vmap(
        reference_forward_single,
        in_axes=(None, 0, 0, None, None, None, 0, None),
    )(jnp.asarray(basis), traj, pose_2d, jnp.asarray(cam),
      jnp.asarray(bone_connections[:, 0]), jnp.asarray(bone_connections[:, 1]),
      bone_lengths, weights)
    ref = jax.block_until_ready(ref)

    np.testing.assert_allclose(np.asarray(losses), np.asarray(ref),
                               rtol=5e-4, atol=5e-4)
    print("KERNEL_OK")
</pallas_src>

<mosaic_0001>
module attributes {stable_mosaic.version = 11 : i64} {
  func.func @kernel(%arg0: i32, %arg1: memref<64x32xf32, #tpu.memory_space<vmem>>, %arg2: memref<1x32x4096xf32, #tpu.memory_space<vmem>>, %arg3: memref<1x16x4096xf32, #tpu.memory_space<vmem>>, %arg4: memref<1x8x4096xf32, #tpu.memory_space<vmem>>, %arg5: memref<1x1x4096xf32, #tpu.memory_space<vmem>>) attributes {dimension_semantics = [#tpu.dimension_semantics<parallel>], iteration_bounds = array<i64: 2>, scalar_prefetch = 0 : i64, scratch_operands = 0 : i64, tpu.core_type = #tpu.core_type<tc>, window_params = [{pipeline_mode = #tpu.pipeline_mode<synchronous>, transform_indices = @transform_0, window_bounds = array<i64: 64, 32>}, {transform_indices = @transform_1, window_bounds = array<i64: 1, 32, 4096>}, {transform_indices = @transform_2, window_bounds = array<i64: 1, 16, 4096>}, {transform_indices = @transform_3, window_bounds = array<i64: 1, 8, 4096>}, {transform_indices = @transform_4, window_bounds = array<i64: 1, 1, 4096>}]} {
    %c0 = arith.constant 0 : index
    %c0_0 = arith.constant 0 : index
    %0 = vector.load %arg1[%c0, %c0_0] : memref<64x32xf32, #tpu.memory_space<vmem>>, vector<64x32xf32>
    %c0_1 = arith.constant 0 : index
    %c0_2 = arith.constant 0 : index
    %c0_3 = arith.constant 0 : index
    %1 = vector.load %arg2[%c0_1, %c0_2, %c0_3] : memref<1x32x4096xf32, #tpu.memory_space<vmem>>, vector<1x32x4096xf32>
    %2 = vector.shape_cast %1 : vector<1x32x4096xf32> to vector<32x4096xf32>
    %cst = arith.constant dense<0.000000e+00> : vector<64x4096xf32>
    %3 = tpu.matmul %0, %2, %cst {dimension_numbers = #tpu.dot_dimension_numbers<[1], [0], [0], [1], [0, 0, 1, 1], [], []>} : vector<64x32xf32>, vector<32x4096xf32>, vector<64x4096xf32> -> vector<64x4096xf32>
    %4 = vector.extract_strided_slice %3 {offsets = [0, 0], sizes = [16, 4096], strides = [1, 1]} : vector<64x4096xf32> to vector<16x4096xf32>
    %5 = vector.extract_strided_slice %3 {offsets = [16, 0], sizes = [24, 4096], strides = [1, 1]} : vector<64x4096xf32> to vector<24x4096xf32>
    %6 = vector.extract_strided_slice %3 {offsets = [40, 0], sizes = [24, 4096], strides = [1, 1]} : vector<64x4096xf32> to vector<24x4096xf32>
    %c0_4 = arith.constant 0 : index
    %c0_5 = arith.constant 0 : index
    %c0_6 = arith.constant 0 : index
    %7 = vector.load %arg3[%c0_4, %c0_5, %c0_6] : memref<1x16x4096xf32, #tpu.memory_space<vmem>>, vector<1x16x4096xf32>
    %8 = vector.shape_cast %7 : vector<1x16x4096xf32> to vector<16x4096xf32>
    %9 = arith.subf %4, %8 : vector<16x4096xf32>
    %10 = arith.mulf %9, %9 : vector<16x4096xf32>
    %cst_7 = arith.constant dense<0.000000e+00> : vector<4096xf32>
    %11 = vector.multi_reduction <add>, %10, %cst_7 [0] : vector<16x4096xf32> to vector<4096xf32>
    %12 = vector.shape_cast %11 : vector<4096xf32> to vector<1x4096xf32>
    %13 = arith.mulf %5, %5 : vector<24x4096xf32>
    %cst_8 = arith.constant dense<0.000000e+00> : vector<4096xf32>
    %14 = vector.multi_reduction <add>, %13, %cst_8 [0] : vector<24x4096xf32> to vector<4096xf32>
    %15 = vector.shape_cast %14 : vector<4096xf32> to vector<1x4096xf32>
    %16 = vector.extract_strided_slice %6 {offsets = [0, 0], sizes = [8, 4096], strides = [1, 1]} : vector<24x4096xf32> to vector<8x4096xf32>
    %17 = vector.extract_strided_slice %6 {offsets = [8, 0], sizes = [8, 4096], strides = [1, 1]} : vector<24x4096xf32> to vector<8x4096xf32>
    %18 = vector.extract_strided_slice %6 {offsets = [16, 0], sizes = [8, 4096], strides = [1, 1]} : vector<24x4096xf32> to vector<8x4096xf32>
    %19 = arith.mulf %16, %16 : vector<8x4096xf32>
    %20 = arith.mulf %17, %17 : vector<8x4096xf32>
    %21 = arith.addf %19, %20 : vector<8x4096xf32>
    %22 = arith.mulf %18, %18 : vector<8x4096xf32>
    %23 = arith.addf %21, %22 : vector<8x4096xf32>
    %c0_9 = arith.constant 0 : index
    %c0_10 = arith.constant 0 : index
    %c0_11 = arith.constant 0 : index
    %24 = vector.load %arg4[%c0_9, %c0_10, %c0_11] : memref<1x8x4096xf32, #tpu.memory_space<vmem>>, vector<1x8x4096xf32>
    %25 = vector.shape_cast %24 : vector<1x8x4096xf32> to vector<8x4096xf32>
    %26 = arith.subf %23, %25 : vector<8x4096xf32>
    %27 = arith.mulf %26, %26 : vector<8x4096xf32>
    %cst_12 = arith.constant dense<0.000000e+00> : vector<4096xf32>
    %28 = vector.multi_reduction <add>, %27, %cst_12 [0] : vector<8x4096xf32> to vector<4096xf32>
    %29 = vector.shape_cast %28 : vector<4096xf32> to vector<1x4096xf32>
    %cst_13 = arith.constant 1.562500e-02 : f32
    %30 = vector.broadcast %cst_13 : f32 to vector<1x4096xf32>
    %31 = arith.mulf %30, %12 : vector<1x4096xf32>
    %cst_14 = arith.constant 6.250000e-03 : f32
    %32 = vector.broadcast %cst_14 : f32 to vector<1x4096xf32>
    %33 = arith.mulf %32, %15 : vector<1x4096xf32>
    %34 = arith.addf %31, %33 : vector<1x4096xf32>
    %cst_15 = arith.constant 0.0133333337 : f32
    %35 = vector.broadcast %cst_15 : f32 to vector<1x4096xf32>
    %36 = arith.mulf %35, %29 : vector<1x4096xf32>
    %37 = arith.addf %34, %36 : vector<1x4096xf32>
    %c0_16 = arith.constant 0 : index
    %c0_17 = arith.constant 0 : index
    %c0_18 = arith.constant 0 : index
    %38 = vector.load %arg5[%c0_16, %c0_17, %c0_18] : memref<1x1x4096xf32, #tpu.memory_space<vmem>>, vector<1x1x4096xf32>
    %39 = vector.shape_cast %38 : vector<1x1x4096xf32> to vector<1x4096xf32>
    %40 = vector.shape_cast %37 : vector<1x4096xf32> to vector<1x1x4096xf32>
    tpu.vector_store %arg5[%c0_16, %c0_17, %c0_18], %40 {strides = array<i32>} : memref<1x1x4096xf32, #tpu.memory_space<vmem>>, vector<1x1x4096xf32>,
    return
  }
  func.func @transform_0(%arg0: i32) -> (i32, i32) {
    %c0_i32 = arith.constant 0 : i32
    %c0_i32_0 = arith.constant 0 : i32
    %c0_i32_1 = arith.constant 0 : i32
    return %c0_i32, %c0_i32_0 : i32, i32
  }
  func.func @transform_1(%arg0: i32) -> (i32, i32, i32) {
    %c0_i32 = arith.constant 0 : i32
    %c0_i32_0 = arith.constant 0 : i32
    %c0_i32_1 = arith.constant 0 : i32
    return %arg0, %c0_i32, %c0_i32_0 : i32, i32, i32
  }
  func.func @transform_2(%arg0: i32) -> (i32, i32, i32) {
    %c0_i32 = arith.constant 0 : i32
    %c0_i32_0 = arith.constant 0 : i32
    %c0_i32_1 = arith.constant 0 : i32
    return %arg0, %c0_i32, %c0_i32_0 : i32, i32, i32
  }
  func.func @transform_3(%arg0: i32) -> (i32, i32, i32) {
    %c0_i32 = arith.constant 0 : i32
    %c0_i32_0 = arith.constant 0 : i32
    %c0_i32_1 = arith.constant 0 : i32
    return %arg0, %c0_i32, %c0_i32_0 : i32, i32, i32
  }
  func.func @transform_4(%arg0: i32) -> (i32, i32, i32) {
    %c0_i32 = arith.constant 0 : i32
    %c0_i32_0 = arith.constant 0 : i32
    %c0_i32_1 = arith.constant 0 : i32
    return %arg0, %c0_i32, %c0_i32_0 : i32, i32, i32
  }
}

</mosaic_0001>

<llo_original>
// kernel: forward.1
$region0: #{forward.1}
  #allocation0 [shape = 'u32[]', space=smem, size = 0x4, offset = 0x4, fixed_abs, tag = 'smem constant byte address 0x4 - core index']
  #allocation1 [shape = 'u32[144,128]{1,0:T(1,128)}', space=vmem, size = 0x12000, scoped, tag = 'internal scratch']
  %s0 = inlined_call_operand.vmem [shape: f32[64,32], index: 0, kind: input, shape index: {}]
  %s1 = inlined_call_operand.vmem [shape: f32[2,32,4096], index: 1, kind: input, shape index: {}]
  %s2 = inlined_call_operand.vmem [shape: f32[2,16,4096], index: 2, kind: input, shape index: {}]
  %s3 = inlined_call_operand.vmem [shape: f32[2,8,4096], index: 3, kind: input, shape index: {}]
  %s4 = inlined_call_operand.vmem [shape: f32[2,1,4096], index: 4, kind: output, shape index: {}]
  %s5 = sld [smem:[#allocation0]]
  $region49: #{forward.1} parent=0
    _
  %s7 = ssub.s32 1, %s5
  %s8 = scalar_select 0, %s7, %s5
  loop: start=0, step=1, limit=4
  $region2: #{forward.1} parent=0 // loop_pre_header
    _
  $region3: #{forward.1} parent=0 // loop_header
    %s10 = sphi 0, %s14
    %p11 = scmp.ge.s32.totalorder %s10, 4
    %s18 = sphi 0, %s18
    %s20 = sphi 0, %s18
    %s21 = sphi 0, %s20
    %s35 = sphi 0, %s21
    %s41 = sphi 0, %s43
    %s44 = sphi 0, %s41
    %s45 = sphi 0, %s44
    %s61 = sphi 0, %s45
    %s67 = sphi 0, %s69
    %s70 = sphi 0, %s67
    %s71 = sphi 0, %s70
    %s87 = sphi 0, %s71
    %s93 = sphi 0, %s95
    %s96 = sphi 0, %s93
    %s97 = sphi 0, %s96
    %s113 = sphi 0, %s97
    %s119 = sphi 0, %s121
    %s122 = sphi 0, %s119
    %s123 = sphi 0, %s122
    %s139 = sphi 0, %s123
  $region4: #{forward.1} parent=0 // loop_header_branch
    %13 = sbr.rel (%p11) target = $region8
  $region5: #{forward.1} parent=0 // loop_body
    %s15 = ssub.s32 %s10, 1
    %s16 = ssub.s32 %s10, 2
    %s17 = sadd.s32 %s10, 1
    %s19 = sadd.s32 %s18, 1
    %p22 = scmp.eq.s32.totalorder %s10, 1
    %p23 = scmp.ne.s32.totalorder %s18, %s20
    %p24 = scmp.eq.s32.totalorder %s10, 0
    %p25 = por %p23, %p24
    %p26 = scmp.ne.s32.totalorder %s18, %s20
    %p27 = scmp.eq.s32.totalorder %s15, 1
    %p28 = por %p26, %p27
    %p29 = scmp.ne.s32.totalorder %s20, %s21
    %p30 = scmp.eq.s32.totalorder %s15, 0
    %p31 = por %p29, %p30
    %p32 = scmp.ne.s32.totalorder %s20, %s21
    %p33 = scmp.eq.s32.totalorder %s16, 1
    %p34 = por %p32, %p33
    %p36 = scmp.ne.s32.totalorder %s21, %s35
    %p37 = scmp.eq.s32.totalorder %s16, 0
    %p38 = por %p36, %p37
    %s39 = ssub.s32 %s10, %s17
    %p40 = scmp.eq.s32.totalorder %s39, 0
    %s42 = sadd.s32 %s41, 1
    %s43 = scalar_select %p40, %s41, %s42
    %p46 = pneg %p40
    %p47 = scmp.eq.s32.totalorder %s10, 1
    %p48 = por %p46, %p47
    %p49 = scmp.ne.s32.totalorder %s41, %s44
    %p50 = scmp.eq.s32.totalorder %s10, 0
    %p51 = por %p49, %p50
    %p52 = scmp.ne.s32.totalorder %s41, %s44
    %p53 = scmp.eq.s32.totalorder %s15, 1
    %p54 = por %p52, %p53
    %p55 = scmp.ne.s32.totalorder %s44, %s45
    %p56 = scmp.eq.s32.totalorder %s15, 0
    %p57 = por %p55, %p56
    %p58 = scmp.ne.s32.totalorder %s44, %s45
    %p59 = scmp.eq.s32.totalorder %s16, 1
    %p60 = por %p58, %p59
    %p62 = scmp.ne.s32.totalorder %s45, %s61
    %p63 = scmp.eq.s32.totalorder %s16, 0
    %p64 = por %p62, %p63
    %s65 = ssub.s32 %s10, %s17
    %p66 = scmp.eq.s32.totalorder %s65, 0
    %s68 = sadd.s32 %s67, 1
    %s69 = scalar_select %p66, %s67, %s68
    %p72 = pneg %p66
    %p73 = scmp.eq.s32.totalorder %s10, 1
    %p74 = por %p72, %p73
    %p75 = scmp.ne.s32.totalorder %s67, %s70
    %p76 = scmp.eq.s32.totalorder %s10, 0
    %p77 = por %p75, %p76
    %p78 = scmp.ne.s32.totalorder %s67, %s70
    %p79 = scmp.eq.s32.totalorder %s15, 1
    %p80 = por %p78, %p79
    %p81 = scmp.ne.s32.totalorder %s70, %s71
    %p82 = scmp.eq.s32.totalorder %s15, 0
    %p83 = por %p81, %p82
    %p84 = scmp.ne.s32.totalorder %s70, %s71
    %p85 = scmp.eq.s32.totalorder %s16, 1
    %p86 = por %p84, %p85
    %p88 = scmp.ne.s32.totalorder %s71, %s87
    %p89 = scmp.eq.s32.totalorder %s16, 0
    %p90 = por %p88, %p89
    %s91 = ssub.s32 %s10, %s17
    %p92 = scmp.eq.s32.totalorder %s91, 0
    %s94 = sadd.s32 %s93, 1
    %s95 = scalar_select %p92, %s93, %s94
    %p98 = pneg %p92
    %p99 = scmp.eq.s32.totalorder %s10, 1
    %p100 = por %p98, %p99
    %p101 = scmp.ne.s32.totalorder %s93, %s96
    %p102 = scmp.eq.s32.totalorder %s10, 0
    %p103 = por %p101, %p102
    %p104 = scmp.ne.s32.totalorder %s93, %s96
    %p105 = scmp.eq.s32.totalorder %s15, 1
    %p106 = por %p104, %p105
    %p107 = scmp.ne.s32.totalorder %s96, %s97
    %p108 = scmp.eq.s32.totalorder %s15, 0
    %p109 = por %p107, %p108
    %p110 = scmp.ne.s32.totalorder %s96, %s97
    %p111 = scmp.eq.s32.totalorder %s16, 1
    %p112 = por %p110, %p111
    %p114 = scmp.ne.s32.totalorder %s97, %s113
    %p115 = scmp.eq.s32.totalorder %s16, 0
    %p116 = por %p114, %p115
    %s117 = ssub.s32 %s10, %s17
    %p118 = scmp.eq.s32.totalorder %s117, 0
    %s120 = sadd.s32 %s119, 1
    %s121 = scalar_select %p118, %s119, %s120
    %p124 = pneg %p118
    %p125 = scmp.eq.s32.totalorder %s10, 1
    %p126 = por %p124, %p125
    %p127 = scmp.ne.s32.totalorder %s119, %s122
    %p128 = scmp.eq.s32.totalorder %s10, 0
    %p129 = por %p127, %p128
    %p130 = scmp.ne.s32.totalorder %s119, %s122
    %p131 = scmp.eq.s32.totalorder %s15, 1
    %p132 = por %p130, %p131
    %p133 = scmp.ne.s32.totalorder %s122, %s123
    %p134 = scmp.eq.s32.totalorder %s15, 0
    %p135 = por %p133, %p134
    %p136 = scmp.ne.s32.totalorder %s122, %s123
    %p137 = scmp.eq.s32.totalorder %s16, 1
    %p138 = por %p136, %p137
    %p140 = scmp.ne.s32.totalorder %s123, %s139
    %p141 = scmp.eq.s32.totalorder %s16, 0
    %p142 = por %p140, %p141
    %p143 = scmp.le.s32.totalorder 1, %s10
    %p144 = scmp.lt.s32.totalorder %s10, 3
    %p145 = pnand %p143, %p144
    %p146 = pneg %p145
    // Predicated region
    $region9: #{forward.1} parent=5 // pred_check
      _
    $region10: #{forward.1} parent=5 // pred_check_branch
      %148 = sbr.rel (%p145) target = $region12
    $region11: #{forward.1} parent=5 // pred_region
      %s149 = ssub.s32 %s10, 1
      // Predicated region
      $region13: #{forward.1} parent=11 // pred_check
        %p150 = pneg %p31
      $region14: #{forward.1} parent=11 // pred_check_branch
        %152 = sbr.rel (%p150) target = $region16
      $region15: #{forward.1} parent=11 // pred_region
        _
      $region16: #{forward.1} parent=11 // pred_fallthru
        _
    $region12: #{forward.1} parent=5 // pred_fallthru
      _
    %p153 = scmp.lt.s32.totalorder %s10, 2
    // Predicated region
    $region17: #{forward.1} parent=5 // pred_check
      %p154 = pneg %p153
    $region18: #{forward.1} parent=5 // pred_check_branch
      %156 = sbr.rel (%p154) target = $region20
    $region19: #{forward.1} parent=5 // pred_region
      // Predicated region
      $region21: #{forward.1} parent=19 // pred_check
        %p157 = pneg %p51
      $region22: #{forward.1} parent=19 // pred_check_branch
        %159 = sbr.rel (%p157) target = $region24
      $region23: #{forward.1} parent=19 // pred_region
        %p160 = scmp.lt.s32.totalorder %s10, 1
        %s161 = scalar_select %p160, %s10, 1
        %s162 = smul.addr %s161, 128
        %s163 = smul.addr %s162, 8
        %s164 = scalar_lea.vmem %s1, %s163
      $region24: #{forward.1} parent=19 // pred_fallthru
        _
      // Predicated region
      $region25: #{forward.1} parent=19 // pred_check
        %p165 = pneg %p77
      $region26: #{forward.1} parent=19 // pred_check_branch
        %167 = sbr.rel (%p165) target = $region28
      $region27: #{forward.1} parent=19 // pred_region
        %p168 = scmp.lt.s32.totalorder %s10, 1
        %s169 = scalar_select %p168, %s10, 1
        %s170 = smul.addr %s169, 64
        %s171 = smul.addr %s170, 8
        %s172 = scalar_lea.vmem %s2, %s171
      $region28: #{forward.1} parent=19 // pred_fallthru
        _
      // Predicated region
      $region29: #{forward.1} parent=19 // pred_check
        %p173 = pneg %p103
      $region30: #{forward.1} parent=19 // pred_check_branch
        %175 = sbr.rel (%p173) target = $region32
      $region31: #{forward.1} parent=19 // pred_region
        %p176 = scmp.lt.s32.totalorder %s10, 1
        %s177 = scalar_select %p176, %s10, 1
        %s178 = smul.addr %s177, 32
        %s179 = smul.addr %s178, 8
        %s180 = scalar_lea.vmem %s3, %s179
      $region32: #{forward.1} parent=19 // pred_fallthru
        _
    $region20: #{forward.1} parent=5 // pred_fallthru
      _
    %p181 = scmp.le.s32.totalorder 1, %s10
    %p182 = scmp.lt.s32.totalorder %s10, 3
    %p183 = pnand %p181, %p182
    %p184 = pneg %p183
    // Predicated region
    $region33: #{forward.1} parent=5 // pred_check
      _
    $region34: #{forward.1} parent=5 // pred_check_branch
      %186 = sbr.rel (%p183) target = $region36
    $region35: #{forward.1} parent=5 // pred_region
      %s187 = ssub.s32 %s10, 1
      %p188 = pneg %p31
      %p189 = pneg %p28
      %p190 = scmp.lt.s32.totalorder %s15, 1
      %s191 = scalar_select %p190, %s15, 1
      %s192 = smul.addr %s191, 128
      %s193 = smul.addr %s192, 8
      %s194 = scalar_lea.vmem %s1, %s193
      %p195 = pneg %p57
      %p196 = pneg %p54
      %p197 = scmp.lt.s32.totalorder %s15, 1
      %s198 = scalar_select %p197, %s15, 1
      %s199 = smul.addr %s198, 64
      %s200 = smul.addr %s199, 8
      %s201 = scalar_lea.vmem %s2, %s200
      %p202 = pneg %p83
      %p203 = pneg %p80
      %p204 = scmp.lt.s32.totalorder %s15, 1
      %s205 = scalar_select %p204, %s15, 1
      %s206 = smul.addr %s205, 32
      %s207 = smul.addr %s206, 8
      %s208 = scalar_lea.vmem %s3, %s207
      %p209 = pneg %p109
      %p210 = pneg %p106
      %p211 = pneg %p135
      %p212 = pneg %p132
      %p213 = scmp.lt.s32.totalorder %s15, 1
      %s214 = scalar_select %p213, %s15, 1
      %s215 = smul.addr %s214, 32
      %s216 = scalar_lea.vmem %s4, %s215
      %p217 = scmp.lt.s32.totalorder %s15, 1
      %s218 = scalar_select %p217, %s15, 1
      %s219 = smul.addr %s218, 128
      %s220 = smul.addr %s219, 8
      %s221 = scalar_lea.vmem %s1, %s220
      %p222 = scmp.lt.s32.totalorder %s15, 1
      %s223 = scalar_select %p222, %s15, 1
      %s224 = smul.addr %s223, 64
      %s225 = smul.addr %s224, 8
      %s226 = scalar_lea.vmem %s2, %s225
      %p227 = scmp.lt.s32.totalorder %s15, 1
      %s228 = scalar_select %p227, %s15, 1
      %s229 = smul.addr %s228, 32
      %s230 = smul.addr %s229, 8
      %s231 = scalar_lea.vmem %s3, %s230
      %p232 = scmp.lt.s32.totalorder %s15, 1
      %s233 = scalar_select %p232, %s15, 1
      %s234 = smul.addr %s233, 32
      %s235 = scalar_lea.vmem %s4, %s234
      %v236 = vld [vmem:[%s0] sm:$0xff]
      %v237 = vld [vmem:[%s0 + $0x8] sm:$0xff]
      %v238 = vld [vmem:[%s0 + $0x10] sm:$0xff]
      %v239 = vld [vmem:[%s0 + $0x18] sm:$0xff]
      %v240 = vld [vmem:[%s0 + $0x20] sm:$0xff]
      %v241 = vld [vmem:[%s0 + $0x28] sm:$0xff]
      %v242 = vld [vmem:[%s0 + $0x30] sm:$0xff]
      %v243 = vld [vmem:[%s0 + $0x38] sm:$0xff]
      %v244 = vld [vmem:[%s221] sm:$0xff]
      %v245 = vld [vmem:[%s221 + $0x8] sm:$0xff]
      %v246 = vld [vmem:[%s221 + $0x10] sm:$0xff]
      %v247 = vld [vmem:[%s221 + $0x18] sm:$0xff]
      %v248 = vld [vmem:[%s221 + $0x20] sm:$0xff]
      %v249 = vld [vmem:[%s221 + $0x28] sm:$0xff]
      %v250 = vld [vmem:[%s221 + $0x30] sm:$0xff]
      %v251 = vld [vmem:[%s221 + $0x38] sm:$0xff]
      %v252 = vld [vmem:[%s221 + $0x40] sm:$0xff]
      %v253 = vld [vmem:[%s221 + $0x48] sm:$0xff]
      %v254 = vld [vmem:[%s221 + $0x50] sm:$0xff]
      %v255 = vld [vmem:[%s221 + $0x58] sm:$0xff]
      %v256 = vld [vmem:[%s221 + $0x60] sm:$0xff]
      %v257 = vld [vmem:[%s221 + $0x68] sm:$0xff]
      %v258 = vld [vmem:[%s221 + $0x70] sm:$0xff]
      %v259 = vld [vmem:[%s221 + $0x78] sm:$0xff]
      %v260 = vld [vmem:[%s221 + $0x80] sm:$0xff]
      %v261 = vld [vmem:[%s221 + $0x88] sm:$0xff]
      %v262 = vld [vmem:[%s221 + $0x90] sm:$0xff]
      %v263 = vld [vmem:[%s221 + $0x98] sm:$0xff]
      %v264 = vld [vmem:[%s221 + $0xa0] sm:$0xff]
      %v265 = vld [vmem:[%s221 + $0xa8] sm:$0xff]
      %v266 = vld [vmem:[%s221 + $0xb0] sm:$0xff]
      %v267 = vld [vmem:[%s221 + $0xb8] sm:$0xff]
      %v268 = vld [vmem:[%s221 + $0xc0] sm:$0xff]
      %v269 = vld [vmem:[%s221 + $0xc8] sm:$0xff]
      %v270 = vld [vmem:[%s221 + $0xd0] sm:$0xff]
      %v271 = vld [vmem:[%s221 + $0xd8] sm:$0xff]
      %v272 = vld [vmem:[%s221 + $0xe0] sm:$0xff]
      %v273 = vld [vmem:[%s221 + $0xe8] sm:$0xff]
      %v274 = vld [vmem:[%s221 + $0xf0] sm:$0xff]
      %v275 = vld [vmem:[%s221 + $0xf8] sm:$0xff]
      %v276 = vld [vmem:[%s221 + $0x100] sm:$0xff]
      %v277 = vld [vmem:[%s221 + $0x108] sm:$0xff]
      %v278 = vld [vmem:[%s221 + $0x110] sm:$0xff]
      %v279 = vld [vmem:[%s221 + $0x118] sm:$0xff]
      %v280 = vld [vmem:[%s221 + $0x120] sm:$0xff]
      %v281 = vld [vmem:[%s221 + $0x128] sm:$0xff]
      %v282 = vld [vmem:[%s221 + $0x130] sm:$0xff]
      %v283 = vld [vmem:[%s221 + $0x138] sm:$0xff]
      %v284 = vld [vmem:[%s221 + $0x140] sm:$0xff]
      %v285 = vld [vmem:[%s221 + $0x148] sm:$0xff]
      %v286 = vld [vmem:[%s221 + $0x150] sm:$0xff]
      %v287 = vld [vmem:[%s221 + $0x158] sm:$0xff]
      %v288 = vld [vmem:[%s221 + $0x160] sm:$0xff]
      %v289 = vld [vmem:[%s221 + $0x168] sm:$0xff]
      %v290 = vld [vmem:[%s221 + $0x170] sm:$0xff]
      %v291 = vld [vmem:[%s221 + $0x178] sm:$0xff]
      %v292 = vld [vmem:[%s221 + $0x180] sm:$0xff]
      %v293 = vld [vmem:[%s221 + $0x188] sm:$0xff]
      %v294 = vld [vmem:[%s221 + $0x190] sm:$0xff]
      %v295 = vld [vmem:[%s221 + $0x198] sm:$0xff]
      %v296 = vld [vmem:[%s221 + $0x1a0] sm:$0xff]
      %v297 = vld [vmem:[%s221 + $0x1a8] sm:$0xff]
      %v298 = vld [vmem:[%s221 + $0x1b0] sm:$0xff]
      %v299 = vld [vmem:[%s221 + $0x1b8] sm:$0xff]
      %v300 = vld [vmem:[%s221 + $0x1c0] sm:$0xff]
      %v301 = vld [vmem:[%s221 + $0x1c8] sm:$0xff]
      %v302 = vld [vmem:[%s221 + $0x1d0] sm:$0xff]
      %v303 = vld [vmem:[%s221 + $0x1d8] sm:$0xff]
      %v304 = vld [vmem:[%s221 + $0x1e0] sm:$0xff]
      %v305 = vld [vmem:[%s221 + $0x1e8] sm:$0xff]
      %v306 = vld [vmem:[%s221 + $0x1f0] sm:$0xff]
      %v307 = vld [vmem:[%s221 + $0x1f8] sm:$0xff]
      %v308 = vld [vmem:[%s221 + $0x200] sm:$0xff]
      %v309 = vld [vmem:[%s221 + $0x208] sm:$0xff]
      %v310 = vld [vmem:[%s221 + $0x210] sm:$0xff]
      %v311 = vld [vmem:[%s221 + $0x218] sm:$0xff]
      %v312 = vld [vmem:[%s221 + $0x220] sm:$0xff]
      %v313 = vld [vmem:[%s221 + $0x228] sm:$0xff]
      %v314 = vld [vmem:[%s221 + $0x230] sm:$0xff]
      %v315 = vld [vmem:[%s221 + $0x238] sm:$0xff]
      %v316 = vld [vmem:[%s221 + $0x240] sm:$0xff]
      %v317 = vld [vmem:[%s221 + $0x248] sm:$0xff]
      %v318 = vld [vmem:[%s221 + $0x250] sm:$0xff]
      %v319 = vld [vmem:[%s221 + $0x258] sm:$0xff]
      %v320 = vld [vmem:[%s221 + $0x260] sm:$0xff]
      %v321 = vld [vmem:[%s221 + $0x268] sm:$0xff]
      %v322 = vld [vmem:[%s221 + $0x270] sm:$0xff]
      %v323 = vld [vmem:[%s221 + $0x278] sm:$0xff]
      %v324 = vld [vmem:[%s221 + $0x280] sm:$0xff]
      %v325 = vld [vmem:[%s221 + $0x288] sm:$0xff]
      %v326 = vld [vmem:[%s221 + $0x290] sm:$0xff]
      %v327 = vld [vmem:[%s221 + $0x298] sm:$0xff]
      %v328 = vld [vmem:[%s221 + $0x2a0] sm:$0xff]
      %v329 = vld [vmem:[%s221 + $0x2a8] sm:$0xff]
      %v330 = vld [vmem:[%s221 + $0x2b0] sm:$0xff]
      %v331 = vld [vmem:[%s221 + $0x2b8] sm:$0xff]
      %v332 = vld [vmem:[%s221 + $0x2c0] sm:$0xff]
      %v333 = vld [vmem:[%s221 + $0x2c8] sm:$0xff]
      %v334 = vld [vmem:[%s221 + $0x2d0] sm:$0xff]
      %v335 = vld [vmem:[%s221 + $0x2d8] sm:$0xff]
      %v336 = vld [vmem:[%s221 + $0x2e0] sm:$0xff]
      %v337 = vld [vmem:[%s221 + $0x2e8] sm:$0xff]
      %v338 = vld [vmem:[%s221 + $0x2f0] sm:$0xff]
      %v339 = vld [vmem:[%s221 + $0x2f8] sm:$0xff]
      %v340 = vld [vmem:[%s221 + $0x300] sm:$0xff]
      %v341 = vld [vmem:[%s221 + $0x308] sm:$0xff]
      %v342 = vld [vmem:[%s221 + $0x310] sm:$0xff]
      %v343 = vld [vmem:[%s221 + $0x318] sm:$0xff]
      %v344 = vld [vmem:[%s221 + $0x320] sm:$0xff]
      %v345 = vld [vmem:[%s221 + $0x328] sm:$0xff]
      %v346 = vld [vmem:[%s221 + $0x330] sm:$0xff]
      %v347 = vld [vmem:[%s221 + $0x338] sm:$0xff]
      %v348 = vld [vmem:[%s221 + $0x340] sm:$0xff]
      %v349 = vld [vmem:[%s221 + $0x348] sm:$0xff]
      %v350 = vld [vmem:[%s221 + $0x350] sm:$0xff]
      %v351 = vld [vmem:[%s221 + $0x358] sm:$0xff]
      %v352 = vld [vmem:[%s221 + $0x360] sm:$0xff]
      %v353 = vld [vmem:[%s221 + $0x368] sm:$0xff]
      %v354 = vld [vmem:[%s221 + $0x370] sm:$0xff]
      %v355 = vld [vmem:[%s221 + $0x378] sm:$0xff]
      %v356 = vld [vmem:[%s221 + $0x380] sm:$0xff]
      %v357 = vld [vmem:[%s221 + $0x388] sm:$0xff]
      %v358 = vld [vmem:[%s221 + $0x390] sm:$0xff]
      %v359 = vld [vmem:[%s221 + $0x398] sm:$0xff]
      %v360 = vld [vmem:[%s221 + $0x3a0] sm:$0xff]
      %v361 = vld [vmem:[%s221 + $0x3a8] sm:$0xff]
      %v362 = vld [vmem:[%s221 + $0x3b0] sm:$0xff]
      %v363 = vld [vmem:[%s221 + $0x3b8] sm:$0xff]
      %v364 = vld [vmem:[%s221 + $0x3c0] sm:$0xff]
      %v365 = vld [vmem:[%s221 + $0x3c8] sm:$0xff]
      %v366 = vld [vmem:[%s221 + $0x3d0] sm:$0xff]
      %v367 = vld [vmem:[%s221 + $0x3d8] sm:$0xff]
      %v368 = vld [vmem:[%s221 + $0x3e0] sm:$0xff]
      %v369 = vld [vmem:[%s221 + $0x3e8] sm:$0xff]
      %v370 = vld [vmem:[%s221 + $0x3f0] sm:$0xff]
      %v371 = vld [vmem:[%s221 + $0x3f8] sm:$0xff]
      %vm372 = vcmask 261120
      %v374 = vsel %vm372, %v236, 0
      %v377 = vsel %vm372, %v237, 0
      %v380 = vsel %vm372, %v238, 0
      %v383 = vsel %vm372, %v239, 0
      %v386 = vsel %vm372, %v240, 0
      %v389 = vsel %vm372, %v241, 0
      %v392 = vsel %vm372, %v242, 0
      %v395 = vsel %vm372, %v243, 0
      %397 = vmatprep.subr.mxu0 %v245
      %398 = vmatpush1.msra.mxu0 %v244
      %399 = vmatprep.subr.mxu0 %v277
      %400 = vmatpush1.msra.mxu0 %v276
      %401 = vmatprep.subr.mxu0 %v309
      %402 = vmatpush1.msra.mxu0 %v308
      %403 = vmatprep.subr.mxu0 %v341
      %404 = vmatpush1.msra.mxu0 %v340
      %405 = vmatprep.subr.mxu0 0.0
      %406 = vmatpush1.msra.mxu0 0.0
      %407 = vmatprep.subr.mxu0 0.0
      %408 = vmatpush1.msra.mxu0 0.0
      %409 = vmatprep.subr.mxu0 0.0
      %410 = vmatpush1.msra.mxu0 0.0
      %411 = vmatprep.subr.mxu0 0.0
      %412 = vmatpush1.msra.mxu0 0.0
      %413 = vmatprep.subr.mxu0 0.0
      %414 = vmatpush1.msra.mxu0 0.0
      %415 = vmatprep.subr.mxu0 0.0
      %416 = vmatpush1.msra.mxu0 0.0
      %417 = vmatprep.subr.mxu0 0.0
      %418 = vmatpush1.msra.mxu0 0.0
      %419 = vmatprep.subr.mxu0 0.0
      %420 = vmatpush1.msra.mxu0 0.0
      %421 = vmatprep.subr.mxu0 0.0
      %422 = vmatpush1.msra.mxu0 0.0
      %423 = vmatprep.subr.mxu0 0.0
      %424 = vmatpush1.msra.mxu0 0.0
      %425 = vmatprep.subr.mxu0 0.0
      %426 = vmatpush1.msra.mxu0 0.0
      %427 = vmatprep.subr.mxu0 0.0
      %428 = vmatpush1.msra.mxu0 0.0
      %429 = vmatprep.subr.mxu0 0.0
      %430 = vmatpush1.msra.mxu0 0.0
      %431 = vmatprep.subr.mxu0 0.0
      %432 = vmatpush1.msra.mxu0 0.0
      %433 = vmatprep.subr.mxu0 0.0
      %434 = vmatpush1.msra.mxu0 0.0
      %435 = vmatprep.subr.mxu0 0.0
      %436 = vmatpush1.msra.mxu0 0.0
      %437 = vmatprep.subr.mxu0 0.0
      %438 = vmatpush1.msra.mxu0 0.0
      %439 = vmatprep.subr.mxu0 0.0
      %440 = vmatpush1.msra.mxu0 0.0
      %441 = vmatprep.subr.mxu0 0.0
      %442 = vmatpush1.msra.mxu0 0.0
      %443 = vmatprep.subr.mxu0 0.0
      %444 = vmatpush1.msra.mxu0 0.0
      %445 = vmatprep.subr.mxu0 0.0
      %446 = vmatpush1.msra.mxu0 0.0
      %447 = vmatprep.subr.mxu0 0.0
      %448 = vmatpush1.msra.mxu0 0.0
      %449 = vmatprep.subr.mxu0 0.0
      %450 = vmatpush1.msra.mxu0 0.0
      %451 = vmatprep.subr.mxu0 0.0
      %452 = vmatpush1.msra.mxu0 0.0
      %453 = vmatprep.subr.mxu0 0.0
      %454 = vmatpush1.msra.mxu0 0.0
      %455 = vmatprep.subr.mxu0 0.0
      %456 = vmatpush1.msra.mxu0 0.0
      %457 = vmatprep.subr.mxu0 0.0
      %458 = vmatpush1.msra.mxu0 0.0
      %459 = vmatprep.subr.mxu0 0.0
      %460 = vmatpush1.msra.mxu0 0.0
      %461 = vmatprep.mubr.f32.mxu0 0.0
      %462 = vmatmul.mubr.f32.gmra.mrb[0].mxu0 %v374
      %v463 = vpop.f32.mrb[0].mxu0
      %v464 = vadd.f32 0.0, %v463
      %v465 = vpop.f32.mrb[0].mxu0
      %v466 = vadd.f32 0.0, %v465
      %467 = vmatprep.mubr.f32.mxu0 0.0
      %468 = vmatmul.mubr.f32.gmra.mrb[0].mxu0 %v377
      %v469 = vpop.f32.mrb[0].mxu0
      %v470 = vadd.f32 0.0, %v469
      %v471 = vpop.f32.mrb[0].mxu0
      %v472 = vadd.f32 0.0, %v471
      %473 = vmatprep.mubr.f32.mxu0 0.0
      %474 = vmatmul.mubr.f32.gmra.mrb[0].mxu0 %v380
      %v475 = vpop.f32.mrb[0].mxu0
      %v476 = vadd.f32 0.0, %v475
      %v477 = vpop.f32.mrb[0].mxu0
      %v478 = vadd.f32 0.0, %v477
      %479 = vmatprep.mubr.f32.mxu0 0.0
      %480 = vmatmul.mubr.f32.gmra.mrb[0].mxu0 %v383
      %v481 = vpop.f32.mrb[0].mxu0
      %v482 = vadd.f32 0.0, %v481
      %v483 = vpop.f32.mrb[0].mxu0
      %v484 = vadd.f32 0.0, %v483
      %485 = vmatprep.mubr.f32.mxu0 0.0
      %486 = vmatmul.mubr.f32.gmra.mrb[0].mxu0 %v386
      %v487 = vpop.f32.mrb[0].mxu0
      %v488 = vadd.f32 0.0, %v487
      %v489 = vpop.f32.mrb[0].mxu0
      %v490 = vadd.f32 0.0, %v489
      %491 = vmatprep.mubr.f32.mxu0 0.0
      %492 = vmatmul.mubr.f32.gmra.mrb[0].mxu0 %v389
      %v493 = vpop.f32.mrb[0].mxu0
      %v494 = vadd.f32 0.0, %v493
      %v495 = vpop.f32.mrb[0].mxu0
      %v496 = vadd.f32 0.0, %v495
      %497 = vmatprep.mubr.f32.mxu0 0.0
      %498 = vmatmul.mubr.f32.gmra.mrb[0].mxu0 %v392
      %v499 = vpop.f32.mrb[0].mxu0
      %v500 = vadd.f32 0.0, %v499
      %v501 = vpop.f32.mrb[0].mxu0
      %v502 = vadd.f32 0.0, %v501
      %503 = vmatprep.mubr.f32.mxu0 0.0
      %504 = vmatmul.mubr.f32.gmra.mrb[0].mxu0 %v395
      %v505 = vpop.f32.mrb[0].mxu0
      %v506 = vadd.f32 0.0, %v505
      %v507 = vpop.f32.mrb[0].mxu0
      %v508 = vadd.f32 0.0, %v507
      %509 = vdwg.mxu0
      %510 = vmatprep.subr.mxu0 %v247
      %511 = vmatpush1.msra.mxu0 %v246
      %512 = vmatprep.subr.mxu0 %v279
      %513 = vmatpush1.msra.mxu0 %v278
      %514 = vmatprep.subr.mxu0 %v311
      %515 = vmatpush1.msra.mxu0 %v310
      %516 = vmatprep.subr.mxu0 %v343
      %517 = vmatpush1.msra.mxu0 %v342
      %518 = vmatprep.subr.mxu0 0.0
      %519 = vmatpush1.msra.mxu0 0.0
      %520 = vmatprep.subr.mxu0 0.0
      %521 = vmatpush1.msra.mxu0 0.0
      %522 = vmatprep.subr.mxu0 0.0
      %523 = vmatpush1.msra.mxu0 0.0
      %524 = vmatprep.subr.mxu0 0.0
      %525 = vmatpush1.msra.mxu0 0.0
      %526 = vmatprep.subr.mxu0 0.0
      %527 = vmatpush1.msra.mxu0 0.0
      %528 = vmatprep.subr.mxu0 0.0
      %529 = vmatpush1.msra.mxu0 0.0
      %530 = vmatprep.subr.mxu0 0.0
      %531 = vmatpush1.msra.mxu0 0.0
      %532 = vmatprep.subr.mxu0 0.0
      %533 = vmatpush1.msra.mxu0 0.0
      %534 = vmatprep.subr.mxu0 0.0
      %535 = vmatpush1.msra.mxu0 0.0
      %536 = vmatprep.subr.mxu0 0.0
      %537 = vmatpush1.msra.mxu0 0.0
      %538 = vmatprep.subr.mxu0 0.0
      %539 = vmatpush1.msra.mxu0 0.0
      %540 = vmatprep.subr.mxu0 0.0
      %541 = vmatpush1.msra.mxu0 0.0
      %542 = vmatprep.subr.mxu0 0.0
      %543 = vmatpush1.msra.mxu0 0.0
      %544 = vmatprep.subr.mxu0 0.0
      %545 = vmatpush1.msra.mxu0 0.0
      %546 = vmatprep.subr.mxu0 0.0
      %547 = vmatpush1.msra.mxu0 0.0
      %548 = vmatprep.subr.mxu0 0.0
      %549 = vmatpush1.msra.mxu0 0.0
      %550 = vmatprep.subr.mxu0 0.0
      %551 = vmatpush1.msra.mxu0 0.0
      %552 = vmatprep.subr.mxu0 0.0
      %553 = vmatpush1.msra.mxu0 0.0
      %554 = vmatprep.subr.mxu0 0.0
      %555 = vmatpush1.msra.mxu0 0.0
      %556 = vmatprep.subr.mxu0 0.0
      %557 = vmatpush1.msra.mxu0 0.0
      %558 = vmatprep.subr.mxu0 0.0
      %559 = vmatpush1.msra.mxu0 0.0
      %560 = vmatprep.subr.mxu0 0.0
      %561 = vmatpush1.msra.mxu0 0.0
      %562 = vmatprep.subr.mxu0 0.0
      %563 = vmatpush1.msra.mxu0 0.0
      %564 = vmatprep.subr.mxu0 0.0
      %565 = vmatpush1.msra.mxu0 0.0
      %566 = vmatprep.subr.mxu0 0.0
      %567 = vmatpush1.msra.mxu0 0.0
      %568 = vmatprep.subr.mxu0 0.0
      %569 = vmatpush1.msra.mxu0 0.0
      %570 = vmatprep.subr.mxu0 0.0
      %571 = vmatpush1.msra.mxu0 0.0
      %572 = vmatprep.subr.mxu0 0.0
      %573 = vmatpush1.msra.mxu0 0.0
      %574 = vmatprep.mubr.f32.mxu0 0.0
      %575 = vmatmul.mubr.f32.gmra.mrb[0].mxu0 %v374
      %v576 = vpop.f32.mrb[0].mxu0
      %v577 = vadd.f32 0.0, %v576
      %v578 = vpop.f32.mrb[0].mxu0
      %v579 = vadd.f32 0.0, %v578
      %580 = vmatprep.mubr.f32.mxu0 0.0
      %581 = vmatmul.mubr.f32.gmra.mrb[0].mxu0 %v377
      %v582 = vpop.f32.mrb[0].mxu0
      %v583 = vadd.f32 0.0, %v582
      %v584 = vpop.f32.mrb[0].mxu0
      %v585 = vadd.f32 0.0, %v584
      %586 = vmatprep.mubr.f32.mxu0 0.0
      %587 = vmatmul.mubr.f32.gmra.mrb[0].mxu0 %v380
      %v588 = vpop.f32.mrb[0].mxu0
      %v589 = vadd.f32 0.0, %v588
      %v590 = vpop.f32.mrb[0].mxu0
      %v591 = vadd.f32 0.0, %v590
      %592 = vmatprep.mubr.f32.mxu0 0.0
      %593 = vmatmul.mubr.f32.gmra.mrb[0].mxu0 %v383
      %v594 = vpop.f32.mrb[0].mxu0
      %v595 = vadd.f32 0.0, %v594
      %v596 = vpop.f32.mrb[0].mxu0
      %v597 = vadd.f32 0.0, %v596
      %598 = vmatprep.mubr.f32.mxu0 0.0
      %599 = vmatmul.mubr.f32.gmra.mrb[0].mxu0 %v386
      %v600 = vpop.f32.mrb[0].mxu0
      %v601 = vadd.f32 0.0, %v600
      %v602 = vpop.f32.mrb[0].mxu0
      %v603 = vadd.f32 0.0, %v602
      %604 = vmatprep.mubr.f32.mxu0 0.0
      %605 = vmatmul.mubr.f32.gmra.mrb[0].mxu0 %v389
      %v606 = vpop.f32.mrb[0].mxu0
      %v607 = vadd.f32 0.0, %v606
      %v608 = vpop.f32.mrb[0].mxu0
      %v609 = vadd.f32 0.0, %v608
      %610 = vmatprep.mubr.f32.mxu0 0.0
      %611 = vmatmul.mubr.f32.gmra.mrb[0].mxu0 %v392
      %v612 = vpop.f32.mrb[0].mxu0
      %v613 = vadd.f32 0.0, %v612
      %v614 = vpop.f32.mrb[0].mxu0
      %v615 = vadd.f32 0.0, %v614
      %616 = vmatprep.mubr.f32.mxu0 0.0
      %617 = vmatmul.mubr.f32.gmra.mrb[0].mxu0 %v395
      %v618 = vpop.f32.mrb[0].mxu0
      %v619 = vadd.f32 0.0, %v618
      %v620 = vpop.f32.mrb[0].mxu0
      %v621 = vadd.f32 0.0, %v620
      %622 = vdwg.mxu0
      %623 = vmatprep.subr.mxu0 %v249
      %624 = vmatpush1.msra.mxu0 %v248
      %625 = vmatprep.subr.mxu0 %v281
      %626 = vmatpush1.msra.mxu0 %v280
      %627 = vmatprep.subr.mxu0 %v313
      %628 = vmatpush1.msra.mxu0 %v312
      %629 = vmatprep.subr.mxu0 %v345
      %630 = vmatpush1.msra.mxu0 %v344
      %631 = vmatprep.subr.mxu0 0.0
      %632 = vmatpush1.msra.mxu0 0.0
      %633 = vmatprep.subr.mxu0 0.0
      %634 = vmatpush1.msra.mxu0 0.0
      %635 = vmatprep.subr.mxu0 0.0
      %636 = vmatpush1.msra.mxu0 0.0
      %637 = vmatprep.subr.mxu0 0.0
      %638 = vmatpush1.msra.mxu0 0.0
      %639 = vmatprep.subr.mxu0 0.0
      %640 = vmatpush1.msra.mxu0 0.0
      %641 = vmatprep.subr.mxu0 0.0
      %642 = vmatpush1.msra.mxu0 0.0
      %643 = vmatprep.subr.mxu0 0.0
      %644 = vmatpush1.msra.mxu0 0.0
      %645 = vmatprep.subr.mxu0 0.0
      %646 = vmatpush1.msra.mxu0 0.0
      %647 = vmatprep.subr.mxu0 0.0
      %648 = vmatpush1.msra.mxu0 0.0
      %649 = vmatprep.subr.mxu0 0.0
      %650 = vmatpush1.msra.mxu0 0.0
      %651 = vmatprep.subr.mxu0 0.0
      %652 = vmatpush1.msra.mxu0 0.0
      %653 = vmatprep.subr.mxu0 0.0
      %654 = vmatpush1.msra.mxu0 0.0
      %655 = vmatprep.subr.mxu0 0.0
      %656 = vmatpush1.msra.mxu0 0.0
      %657 = vmatprep.subr.mxu0 0.0
      %658 = vmatpush1.msra.mxu0 0.0
      %659 = vmatprep.subr.mxu0 0.0
      %660 = vmatpush1.msra.mxu0 0.0
      %661 = vmatprep.subr.mxu0 0.0
      %662 = vmatpush1.msra.mxu0 0.0
      %663 = vmatprep.subr.mxu0 0.0
      %664 = vmatpush1.msra.mxu0 0.0
      %665 = vmatprep.subr.mxu0 0.0
      %666 = vmatpush1.msra.mxu0 0.0
      %667 = vmatprep.subr.mxu0 0.0
      %668 = vmatpush1.msra.mxu0 0.0
      %669 = vmatprep.subr.mxu0 0.0
      %670 = vmatpush1.msra.mxu0 0.0
      %671 = vmatprep.subr.mxu0 0.0
      %672 = vmatpush1.msra.mxu0 0.0
      %673 = vmatprep.subr.mxu0 0.0
      %674 = vmatpush1.msra.mxu0 0.0
      %675 = vmatprep.subr.mxu0 0.0
      %676 = vmatpush1.msra.mxu0 0.0
      %677 = vmatprep.subr.mxu0 0.0
      %678 = vmatpush1.msra.mxu0 0.0
      %679 = vmatprep.subr.mxu0 0.0
      %680 = vmatpush1.msra.mxu0 0.0
      %681 = vmatprep.subr.mxu0 0.0
      %682 = vmatpush1.msra.mxu0 0.0
      %683 = vmatprep.subr.mxu0 0.0
      %684 = vmatpush1.msra.mxu0 0.0
      %685 = vmatprep.subr.mxu0 0.0
      %686 = vmatpush1.msra.mxu0 0.0
      %687 = vmatprep.mubr.f32.mxu0 0.0
      %688 = vmatmul.mubr.f32.gmra.mrb[0].mxu0 %v374
      %v689 = vpop.f32.mrb[0].mxu0
      %v690 = vadd.f32 0.0, %v689
      %v691 = vpop.f32.mrb[0].mxu0
      %v692 = vadd.f32 0.0, %v691
      %693 = vmatprep.mubr.f32.mxu0 0.0
      %694 = vmatmul.mubr.f32.gmra.mrb[0].mxu0 %v377
      %v695 = vpop.f32.mrb[0].mxu0
      %v696 = vadd.f32 0.0, %v695
      %v697 = vpop.f32.mrb[0].mxu0
      %v698 = vadd.f32 0.0, %v697
      %699 = vmatprep.mubr.f32.mxu0 0.0
      %700 = vmatmul.mubr.f32.gmra.mrb[0].mxu0 %v380
      %v701 = vpop.f32.mrb[0].mxu0
      %v702 = vadd.f32 0.0, %v701
      %v703 = vpop.f32.mrb[0].mxu0
      %v704 = vadd.f32 0.0, %v703
      %705 = vmatprep.mubr.f32.mxu0 0.0
      %706 = vmatmul.mubr.f32.gmra.mrb[0].mxu0 %v383
      %v707 = vpop.f32.mrb[0].mxu0
      %v708 = vadd.f32 0.0, %v707
      %v709 = vpop.f32.mrb[0].mxu0
      %v710 = vadd.f32 0.0, %v709
      %711 = vmatprep.mubr.f32.mxu0 0.0
      %712 = vmatmul.mubr.f32.gmra.mrb[0].mxu0 %v386
      %v713 = vpop.f32.mrb[0].mxu0
      %v714 = vadd.f32 0.0, %v713
      %v715 = vpop.f32.mrb[0].mxu0
      %v716 = vadd.f32 0.0, %v715
      %717 = vmatprep.mubr.f32.mxu0 0.0
      %718 = vmatmul.mubr.f32.gmra.mrb[0].mxu0 %v389
      %v719 = vpop.f32.mrb[0].mxu0
      %v720 = vadd.f32 0.0, %v719
      %v721 = vpop.f32.mrb[0].mxu0
      %v722 = vadd.f32 0.0, %v721
      %723 = vmatprep.mubr.f32.mxu0 0.0
      %724 = vmatmul.mubr.f32.gmra.mrb[0].mxu0 %v392
      %v725 = vpop.f32.mrb[0].mxu0
      %v726 = vadd.f32 0.0, %v725
      %v727 = vpop.f32.mrb[0].mxu0
      %v728 = vadd.f32 0.0, %v727
      %729 = vmatprep.mubr.f32.mxu0 0.0
      %730 = vmatmul.mubr.f32.gmra.mrb[0].mxu0 %v395
      %v731 = vpop.f32.mrb[0].mxu0
      %v732 = vadd.f32 0.0, %v731
      %v733 = vpop.f32.mrb[0].mxu0
      %v734 = vadd.f32 0.0, %v733
      %735 = vdwg.mxu0
      %736 = vmatprep.subr.mxu0 %v251
      %737 = vmatpush1.msra.mxu0 %v250
      %738 = vmatprep.subr.mxu0 %v283
      %739 = vmatpush1.msra.mxu0 %v282
      %740 = vmatprep.subr.mxu0 %v315
      %741 = vmatpush1.msra.mxu0 %v314
      %742 = vmatprep.subr.mxu0 %v347
      %743 = vmatpush1.msra.mxu0 %v346
      %744 = vmatprep.subr.mxu0 0.0
      %745 = vmatpush1.msra.mxu0 0.0
      %746 = vmatprep.subr.mxu0 0.0
      %747 = vmatpush1.msra.mxu0 0.0
      %748 = vmatprep.subr.mxu0 0.0
      %749 = vmatpush1.msra.mxu0 0.0
      %750 = vmatprep.subr.mxu0 0.0
      %751 = vmatpush1.msra.mxu0 0.0
      %752 = vmatprep.subr.mxu0 0.0
      %753 = vmatpush1.msra.mxu0 0.0
      %754 = vmatprep.subr.mxu0 0.0
      %755 = vmatpush1.msra.mxu0 0.0
      %756 = vmatprep.subr.mxu0 0.0
      %757 = vmatpush1.msra.mxu0 0.0
      %758 = vmatprep.subr.mxu0 0.0
      %759 = vmatpush1.msra.mxu0 0.0
      %760 = vmatprep.subr.mxu0 0.0
      %761 = vmatpush1.msra.mxu0 0.0
      %762 = vmatprep.subr.mxu0 0.0
      %763 = vmatpush1.msra.mxu0 0.0
      %764 = vmatprep.subr.mxu0 0.0
      %765 = vmatpush1.msra.mxu0 0.0
      %766 = vmatprep.subr.mxu0 0.0
      %767 = vmatpush1.msra.mxu0 0.0
      %768 = vmatprep.subr.mxu0 0.0
      %769 = vmatpush1.msra.mxu0 0.0
      %770 = vmatprep.subr.mxu0 0.0
      %771 = vmatpush1.msra.mxu0 0.0
      %772 = vmatprep.subr.mxu0 0.0
      %773 = vmatpush1.msra.mxu0 0.0
      %774 = vmatprep.subr.mxu0 0.0
      %775 = vmatpush1.msra.mxu0 0.0
      %776 = vmatprep.subr.mxu0 0.0
      %777 = vmatpush1.msra.mxu0 0.0
      %778 = vmatprep.subr.mxu0 0.0
      %779 = vmatpush1.msra.mxu0 0.0
      %780 = vmatprep.subr.mxu0 0.0
      %781 = vmatpush1.msra.mxu0 0.0
      %782 = vmatprep.subr.mxu0 0.0
      %783 = vmatpush1.msra.mxu0 0.0
      %784 = vmatprep.subr.mxu0 0.0
      %785 = vmatpush1.msra.mxu0 0.0
      %786 = vmatprep.subr.mxu0 0.0
      %787 = vmatpush1.msra.mxu0 0.0
      %788 = vmatprep.subr.mxu0 0.0
      %789 = vmatpush1.msra.mxu0 0.0
      %790 = vmatprep.subr.mxu0 0.0
      %791 = vmatpush1.msra.mxu0 0.0
      %792 = vmatprep.subr.mxu0 0.0
      %793 = vmatpush1.msra.mxu0 0.0
      %794 = vmatprep.subr.mxu0 0.0
      %795 = vmatpush1.msra.mxu0 0.0
      %796 = vmatprep.subr.mxu0 0.0
      %797 = vmatpush1.msra.mxu0 0.0
      %798 = vmatprep.subr.mxu0 0.0
      %799 = vmatpush1.msra.mxu0 0.0
      %800 = vmatprep.mubr.f32.mxu0 0.0
      %801 = vmatmul.mubr.f32.gmra.mrb[0].mxu0 %v374
      %v802 = vpop.f32.mrb[0].mxu0
      %v803 = vadd.f32 0.0, %v802
      %v804 = vpop.f32.mrb[0].mxu0
      %v805 = vadd.f32 0.0, %v804
      %806 = vmatprep.mubr.f32.mxu0 0.0
      %807 = vmatmul.mubr.f32.gmra.mrb[0].mxu0 %v377
      %v808 = vpop.f32.mrb[0].mxu0
      %v809 = vadd.f32 0.0, %v808
      %v810 = vpop.f32.mrb[0].mxu0
      %v811 = vadd.f32 0.0, %v810
      %812 = vmatprep.mubr.f32.mxu0 0.0
      %813 = vmatmul.mubr.f32.gmra.mrb[0].mxu0 %v380
      %v814 = vpop.f32.mrb[0].mxu0
      %v815 = vadd.f32 0.0, %v814
      %v816 = vpop.f32.mrb[0].mxu0
      %v817 = vadd.f32 0.0, %v816
      %818 = vmatprep.mubr.f32.mxu0 0.0
      %819 = vmatmul.mubr.f32.gmra.mrb[0].mxu0 %v383
      %v820 = vpop.f32.mrb[0].mxu0
      %v821 = vadd.f32 0.0, %v820
      %v822 = vpop.f32.mrb[0].mxu0
      %v823 = vadd.f32 0.0, %v822
      %824 = vmatprep.mubr.f32.mxu0 0.0
      %825 = vmatmul.mubr.f32.gmra.mrb[0].mxu0 %v386
      %v826 = vpop.f32.mrb[0].mxu0
      %v827 = vadd.f32 0.0, %v826
      %v828 = vpop.f32.mrb[0].mxu0
      %v829 = vadd.f32 0.0, %v828
      %830 = vmatprep.mubr.f32.mxu0 0.0
      %831 = vmatmul.mubr.f32.gmra.mrb[0].mxu0 %v389
      %v832 = vpop.f32.mrb[0].mxu0
      %v833 = vadd.f32 0.0, %v832
      %v834 = vpop.f32.mrb[0].mxu0
      %v835 = vadd.f32 0.0, %v834
      %836 = vmatprep.mubr.f32.mxu0 0.0
      %837 = vmatmul.mubr.f32.gmra.mrb[0].mxu0 %v392
      %v838 = vpop.f32.mrb[0].mxu0
      %v839 = vadd.f32 0.0, %v838
      %v840 = vpop.f32.mrb[0].mxu0
      %v841 = vadd.f32 0.0, %v840
      %842 = vmatprep.mubr.f32.mxu0 0.0
      %843 = vmatmul.mubr.f32.gmra.mrb[0].mxu0 %v395
      %v844 = vpop.f32.mrb[0].mxu0
      %v845 = vadd.f32 0.0, %v844
      %v846 = vpop.f32.mrb[0].mxu0
      %v847 = vadd.f32 0.0, %v846
      %848 = vdwg.mxu0
      %849 = vmatprep.subr.mxu0 %v253
      %850 = vmatpush1.msra.mxu0 %v252
      %851 = vmatprep.subr.mxu0 %v285
      %852 = vmatpush1.msra.mxu0 %v284
      %853 = vmatprep.subr.mxu0 %v317
      %854 = vmatpush1.msra.mxu0 %v316
      %855 = vmatprep.subr.mxu0 %v349
      %856 = vmatpush1.msra.mxu0 %v348
      %857 = vmatprep.subr.mxu0 0.0
      %858 = vmatpush1.msra.mxu0 0.0
      %859 = vmatprep.subr.mxu0 0.0
      %860 = vmatpush1.msra.mxu0 0.0
      %861 = vmatprep.subr.mxu0 0.0
      %862 = vmatpush1.msra.mxu0 0.0
      %863 = vmatprep.subr.mxu0 0.0
      %864 = vmatpush1.msra.mxu0 0.0
      %865 = vmatprep.subr.mxu0 0.0
      %866 = vmatpush1.msra.mxu0 0.0
      %867 = vmatprep.subr.mxu0 0.0
      %868 = vmatpush1.msra.mxu0 0.0
      %869 = vmatprep.subr.mxu0 0.0
      %870 = vmatpush1.msra.mxu0 0.0
      %871 = vmatprep.subr.mxu0 0.0
      %872 = vmatpush1.msra.mxu0 0.0
      %873 = vmatprep.subr.mxu0 0.0
      %874 = vmatpush1.msra.mxu0 0.0
      %875 = vmatprep.subr.mxu0 0.0
      %876 = vmatpush1.msra.mxu0 0.0
      %877 = vmatprep.subr.mxu0 0.0
      %878 = vmatpush1.msra.mxu0 0.0
      %879 = vmatprep.subr.mxu0 0.0
      %880 = vmatpush1.msra.mxu0 0.0
      %881 = vmatprep.subr.mxu0 0.0
      %882 = vmatpush1.msra.mxu0 0.0
      %883 = vmatprep.subr.mxu0 0.0
      %884 = vmatpush1.msra.mxu0 0.0
      %885 = vmatprep.subr.mxu0 0.0
      %886 = vmatpush1.msra.mxu0 0.0
      %887 = vmatprep.subr.mxu0 0.0
      %888 = vmatpush1.msra.mxu0 0.0
      %889 = vmatprep.subr.mxu0 0.0
      %890 = vmatpush1.msra.mxu0 0.0
      %891 = vmatprep.subr.mxu0 0.0
      %892 = vmatpush1.msra.mxu0 0.0
      %893 = vmatprep.subr.mxu0 0.0
      %894 = vmatpush1.msra.mxu0 0.0
      %895 = vmatprep.subr.mxu0 0.0
      %896 = vmatpush1.msra.mxu0 0.0
      %897 = vmatprep.subr.mxu0 0.0
      %898 = vmatpush1.msra.mxu0 0.0
      %899 = vmatprep.subr.mxu0 0.0
      %900 = vmatpush1.msra.mxu0 0.0
      %901 = vmatprep.subr.mxu0 0.0
      %902 = vmatpush1.msra.mxu0 0.0
      %903 = vmatprep.subr.mxu0 0.0
      %904 = vmatpush1.msra.mxu0 0.0
      %905 = vmatprep.subr.mxu0 0.0
      %906 = vmatpush1.msra.mxu0 0.0
      %907 = vmatprep.subr.mxu0 0.0
      %908 = vmatpush1.msra.mxu0 0.0
      %909 = vmatprep.subr.mxu0 0.0
      %910 = vmatpush1.msra.mxu0 0.0
      %911 = vmatprep.subr.mxu0 0.0
      %912 = vmatpush1.msra.mxu0 0.0
      %913 = vmatprep.mubr.f32.mxu0 0.0
      %914 = vmatmul.mubr.f32.gmra.mrb[0].mxu0 %v374
      %v915 = vpop.f32.mrb[0].mxu0
      %v916 = vadd.f32 0.0, %v915
      %v917 = vpop.f32.mrb[0].mxu0
      %v918 = vadd.f32 0.0, %v917
      %919 = vmatprep.mubr.f32.mxu0 0.0
      %920 = vmatmul.mubr.f32.gmra.mrb[0].mxu0 %v377
      %v921 = vpop.f32.mrb[0].mxu0
      %v922 = vadd.f32 0.0, %v921
      %v923 = vpop.f32.mrb[0].mxu0
      %v924 = vadd.f32 0.0, %v923
      %925 = vmatprep.mubr.f32.mxu0 0.0
      %926 = vmatmul.mubr.f32.gmra.mrb[0].mxu0 %v380
      %v927 = vpop.f32.mrb[0].mxu0
      %v928 = vadd.f32 0.0, %v927
      %v929 = vpop.f32.mrb[0].mxu0
      %v930 = vadd.f32 0.0, %v929
      %931 = vmatprep.mubr.f32.mxu0 0.0
      %932 = vmatmul.mubr.f32.gmra.mrb[0].mxu0 %v383
      %v933 = vpop.f32.mrb[0].mxu0
      %v934 = vadd.f32 0.0, %v933
      %v935 = vpop.f32.mrb[0].mxu0
      %v936 = vadd.f32 0.0, %v935
      %937 = vmatprep.mubr.f32.mxu0 0.0
      %938 = vmatmul.mubr.f32.gmra.mrb[0].mxu0 %v386
      %v939 = vpop.f32.mrb[0].mxu0
      %v940 = vadd.f32 0.0, %v939
      %v941 = vpop.f32.mrb[0].mxu0
      %v942 = vadd.f32 0.0, %v941
      %943 = vmatprep.mubr.f32.mxu0 0.0
      %944 = vmatmul.mubr.f32.gmra.mrb[0].mxu0 %v389
      %v945 = vpop.f32.mrb[0].mxu0
      %v946 = vadd.f32 0.0, %v945
      %v947 = vpop.f32.mrb[0].mxu0
      %v948 = vadd.f32 0.0, %v947
      %949 = vmatprep.mubr.f32.mxu0 0.0
      %950 = vmatmul.mubr.f32.gmra.mrb[0].mxu0 %v392
      %v951 = vpop.f32.mrb[0].mxu0
      %v952 = vadd.f32 0.0, %v951
      %v953 = vpop.f32.mrb[0].mxu0
      %v954 = vadd.f32 0.0, %v953
      %955 = vmatprep.mubr.f32.mxu0 0.0
      %956 = vmatmul.mubr.f32.gmra.mrb[0].mxu0 %v395
      %v957 = vpop.f32.mrb[0].mxu0
      %v958 = vadd.f32 0.0, %v957
      %v959 = vpop.f32.mrb[0].mxu0
      %v960 = vadd.f32 0.0, %v959
      %961 = vdwg.mxu0
      %962 = vmatprep.subr.mxu0 %v255
      %963 = vmatpush1.msra.mxu0 %v254
      %964 = vmatprep.subr.mxu0 %v287
      %965 = vmatpush1.msra.mxu0 %v286
      %966 = vmatprep.subr.mxu0 %v319
      %967 = vmatpush1.msra.mxu0 %v318
      %968 = vmatprep.subr.mxu0 %v351
      %969 = vmatpush1.msra.mxu0 %v350
      %970 = vmatprep.subr.mxu0 0.0
      %971 = vmatpush1.msra.mxu0 0.0
      %972 = vmatprep.subr.mxu0 0.0
      %973 = vmatpush1.msra.mxu0 0.0
      %974 = vmatprep.subr.mxu0 0.0
      %975 = vmatpush1.msra.mxu0 0.0
      %976 = vmatprep.subr.mxu0 0.0
      %977 = vmatpush1.msra.mxu0 0.0
      %978 = vmatprep.subr.mxu0 0.0
      %979 = vmatpush1.msra.mxu0 0.0
      %980 = vmatprep.subr.mxu0 0.0
      %981 = vmatpush1.msra.mxu0 0.0
      %982 = vmatprep.subr.mxu0 0.0
      %983 = vmatpush1.msra.mxu0 0.0
      %984 = vmatprep.subr.mxu0 0.0
      %985 = vmatpush1.msra.mxu0 0.0
      %986 = vmatprep.subr.mxu0 0.0
      %987 = vmatpush1.msra.mxu0 0.0
      %988 = vmatprep.subr.mxu0 0.0
      %989 = vmatpush1.msra.mxu0 0.0
      %990 = vmatprep.subr.mxu0 0.0
      %991 = vmatpush1.msra.mxu0 0.0
      %992 = vmatprep.subr.mxu0 0.0
      %993 = vmatpush1.msra.mxu0 0.0
      %994 = vmatprep.subr.mxu0 0.0
      %995 = vmatpush1.msra.mxu0 0.0
      %996 = vmatprep.subr.mxu0 0.0
      %997 = vmatpush1.msra.mxu0 0.0
      %998 = vmatprep.subr.mxu0 0.0
      %999 = vmatpush1.msra.mxu0 0.0
      %1000 = vmatprep.subr.mxu0 0.0
      %1001 = vmatpush1.msra.mxu0 0.0
      %1002 = vmatprep.subr.mxu0 0.0
      %1003 = vmatpush1.msra.mxu0 0.0
      %1004 = vmatprep.subr.mxu0 0.0
      %1005 = vmatpush1.msra.mxu0 0.0
      %1006 = vmatprep.subr.mxu0 0.0
      %1007 = vmatpush1.msra.mxu0 0.0
      %1008 = vmatprep.subr.mxu0 0.0
      %1009 = vmatpush1.msra.mxu0 0.0
      %1010 = vmatprep.subr.mxu0 0.0
      %1011 = vmatpush1.msra.mxu0 0.0
      %1012 = vmatprep.subr.mxu0 0.0
      %1013 = vmatpush1.msra.mxu0 0.0
      %1014 = vmatprep.subr.mxu0 0.0
      %1015 = vmatpush1.msra.mxu0 0.0
      %1016 = vmatprep.subr.mxu0 0.0
      %1017 = vmatpush1.msra.mxu0 0.0
      %1018 = vmatprep.subr.mxu0 0.0
      %1019 = vmatpush1.msra.mxu0 0.0
      %1020 = vmatprep.subr.mxu0 0.0
      %1021 = vmatpush1.msra.mxu0 0.0
      %1022 = vmatprep.subr.mxu0 0.0
      %1023 = vmatpush1.msra.mxu0 0.0
      %1024 = vmatprep.subr.mxu0 0.0
      %1025 = vmatpush1.msra.mxu0 0.0
      %1026 = vmatprep.mubr.f32.mxu0 0.0
      %1027 = vmatmul.mubr.f32.gmra.mrb[0].mxu0 %v374
      %v1028 = vpop.f32.mrb[0].mxu0
      %v1029 = vadd.f32 0.0, %v1028
      %v1030 = vpop.f32.mrb[0].mxu0
      %v1031 = vadd.f32 0.0, %v1030
      %1032 = vmatprep.mubr.f32.mxu0 0.0
      %1033 = vmatmul.mubr.f32.gmra.mrb[0].mxu0 %v377
      %v1034 = vpop.f32.mrb[0].mxu0
      %v1035 = vadd.f32 0.0, %v1034
      %v1036 = vpop.f32.mrb[0].mxu0
      %v1037 = vadd.f32 0.0, %v1036
      %1038 = vmatprep.mubr.f32.mxu0 0.0
      %1039 = vmatmul.mubr.f32.gmra.mrb[0].mxu0 %v380
      %v1040 = vpop.f32.mrb[0].mxu0
      %v1041 = vadd.f32 0.0, %v1040
      %v1042 = vpop.f32.mrb[0].mxu0
      %v1043 = vadd.f32 0.0, %v1042
      %1044 = vmatprep.mubr.f32.mxu0 0.0
      %1045 = vmatmul.mubr.f32.gmra.mrb[0].mxu0 %v383
      %v1046 = vpop.f32.mrb[0].mxu0
      %v1047 = vadd.f32 0.0, %v1046
      %v1048 = vpop.f32.mrb[0].mxu0
      %v1049 = vadd.f32 0.0, %v1048
      %1050 = vmatprep.mubr.f32.mxu0 0.0
      %1051 = vmatmul.mubr.f32.gmra.mrb[0].mxu0 %v386
      %v1052 = vpop.f32.mrb[0].mxu0
      %v1053 = vadd.f32 0.0, %v1052
      %v1054 = vpop.f32.mrb[0].mxu0
      %v1055 = vadd.f32 0.0, %v1054
      %1056 = vmatprep.mubr.f32.mxu0 0.0
      %1057 = vmatmul.mubr.f32.gmra.mrb[0].mxu0 %v389
      %v1058 = vpop.f32.mrb[0].mxu0
      %v1059 = vadd.f32 0.0, %v1058
      %v1060 = vpop.f32.mrb[0].mxu0
      %v1061 = vadd.f32 0.0, %v1060
      %1062 = vmatprep.mubr.f32.mxu0 0.0
      %1063 = vmatmul.mubr.f32.gmra.mrb[0].mxu0 %v392
      %v1064 = vpop.f32.mrb[0].mxu0
      %v1065 = vadd.f32 0.0, %v1064
      %v1066 = vpop.f32.mrb[0].mxu0
      %v1067 = vadd.f32 0.0, %v1066
      %1068 = vmatprep.mubr.f32.mxu0 0.0
      %1069 = vmatmul.mubr.f32.gmra.mrb[0].mxu0 %v395
      %v1070 = vpop.f32.mrb[0].mxu0
      %v1071 = vadd.f32 0.0, %v1070
      %v1072 = vpop.f32.mrb[0].mxu0
      %v1073 = vadd.f32 0.0, %v1072
      %1074 = vdwg.mxu0
      %1075 = vmatprep.subr.mxu0 %v257
      %1076 = vmatpush1.msra.mxu0 %v256
      %1077 = vmatprep.subr.mxu0 %v289
      %1078 = vmatpush1.msra.mxu0 %v288
      %1079 = vmatprep.subr.mxu0 %v321
      %1080 = vmatpush1.msra.mxu0 %v320
      %1081 = vmatprep.subr.mxu0 %v353
      %1082 = vmatpush1.msra.mxu0 %v352
      %1083 = vmatprep.subr.mxu0 0.0
      %1084 = vmatpush1.msra.mxu0 0.0
      %1085 = vmatprep.subr.mxu0 0.0
      %1086 = vmatpush1.msra.mxu0 0.0
      %1087 = vmatprep.subr.mxu0 0.0
      %1088 = vmatpush1.msra.mxu0 0.0
      %1089 = vmatprep.subr.mxu0 0.0
      %1090 = vmatpush1.msra.mxu0 0.0
      %1091 = vmatprep.subr.mxu0 0.0
      %1092 = vmatpush1.msra.mxu0 0.0
      %1093 = vmatprep.subr.mxu0 0.0
      %1094 = vmatpush1.msra.mxu0 0.0
      %1095 = vmatprep.subr.mxu0 0.0
      %1096 = vmatpush1.msra.mxu0 0.0
      %1097 = vmatprep.subr.mxu0 0.0
      %1098 = vmatpush1.msra.mxu0 0.0
      %1099 = vmatprep.subr.mxu0 0.0
      %1100 = vmatpush1.msra.mxu0 0.0
      %1101 = vmatprep.subr.mxu0 0.0
      %1102 = vmatpush1.msra.mxu0 0.0
      %1103 = vmatprep.subr.mxu0 0.0
      %1104 = vmatpush1.msra.mxu0 0.0
      %1105 = vmatprep.subr.mxu0 0.0
      %1106 = vmatpush1.msra.mxu0 0.0
      %1107 = vmatprep.subr.mxu0 0.0
      %1108 = vmatpush1.msra.mxu0 0.0
      %1109 = vmatprep.subr.mxu0 0.0
      %1110 = vmatpush1.msra.mxu0 0.0
      %1111 = vmatprep.subr.mxu0 0.0
      %1112 = vmatpush1.msra.mxu0 0.0
      %1113 = vmatprep.subr.mxu0 0.0
      %1114 = vmatpush1.msra.mxu0 0.0
      %1115 = vmatprep.subr.mxu0 0.0
      %1116 = vmatpush1.msra.mxu0 0.0
      %1117 = vmatprep.subr.mxu0 0.0
      %1118 = vmatpush1.msra.mxu0 0.0
      %1119 = vmatprep.subr.mxu0 0.0
      %1120 = vmatpush1.msra.mxu0 0.0
      %1121 = vmatprep.subr.mxu0 0.0
      %1122 = vmatpush1.msra.mxu0 0.0
      %1123 = vmatprep.subr.mxu0 0.0
      %1124 = vmatpush1.msra.mxu0 0.0
      %1125 = vmatprep.subr.mxu0 0.0
      %1126 = vmatpush1.msra.mxu0 0.0
      %1127 = vmatprep.subr.mxu0 0.0
      %1128 = vmatpush1.msra.mxu0 0.0
      %1129 = vmatprep.subr.mxu0 0.0
      %1130 = vmatpush1.msra.mxu0 0.0
      %1131 = vmatprep.subr.mxu0 0.0
      %1132 = vmatpush1.msra.mxu0 0.0
      %1133 = vmatprep.subr.mxu0 0.0
      %1134 = vmatpush1.msra.mxu0 0.0
      %1135 = vmatprep.subr.mxu0 0.0
      %1136 = vmatpush1.msra.mxu0 0.0
      %1137 = vmatprep.subr.mxu0 0.0
      %1138 = vmatpush1.msra.mxu0 0.0
      %1139 = vmatprep.mubr.f32.mxu0 0.0
      %1140 = vmatmul.mubr.f32.gmra.mrb[0].mxu0 %v374
      %v1141 = vpop.f32.mrb[0].mxu0
      %v1142 = vadd.f32 0.0, %v1141
      %v1143 = vpop.f32.mrb[0].mxu0
      %v1144 = vadd.f32 0.0, %v1143
      %1145 = vmatprep.mubr.f32.mxu0 0.0
      %1146 = vmatmul.mubr.f32.gmra.mrb[0].mxu0 %v377
      %v1147 = vpop.f32.mrb[0].mxu0
      %v1148 = vadd.f32 0.0, %v1147
      %v1149 = vpop.f32.mrb[0].mxu0
      %v1150 = vadd.f32 0.0, %v1149
      %1151 = vmatprep.mubr.f32.mxu0 0.0
      %1152 = vmatmul.mubr.f32.gmra.mrb[0].mxu0 %v380
      %v1153 = vpop.f32.mrb[0].mxu0
      %v1154 = vadd.f32 0.0, %v1153
      %v1155 = vpop.f32.mrb[0].mxu0
      %v1156 = vadd.f32 0.0, %v1155
      %1157 = vmatprep.mubr.f32.mxu0 0.0
      %1158 = vmatmul.mubr.f32.gmra.mrb[0].mxu0 %v383
      %v1159 = vpop.f32.mrb[0].mxu0
      %v1160 = vadd.f32 0.0, %v1159
      %v1161 = vpop.f32.mrb[0].mxu0
      %v1162 = vadd.f32 0.0, %v1161
      %1163 = vmatprep.mubr.f32.mxu0 0.0
      %1164 = vmatmul.mubr.f32.gmra.mrb[0].mxu0 %v386
      %v1165 = vpop.f32.mrb[0].mxu0
      %v1166 = vadd.f32 0.0, %v1165
      %v1167 = vpop.f32.mrb[0].mxu0
      %v1168 = vadd.f32 0.0, %v1167
      %1169 = vmatprep.mubr.f32.mxu0 0.0
      %1170 = vmatmul.mubr.f32.gmra.mrb[0].mxu0 %v389
      %v1171 = vpop.f32.mrb[0].mxu0
      %v1172 = vadd.f32 0.0, %v1171
      %v1173 = vpop.f32.mrb[0].mxu0
      %v1174 = vadd.f32 0.0, %v1173
      %1175 = vmatprep.mubr.f32.mxu0 0.0
      %1176 = vmatmul.mubr.f32.gmra.mrb[0].mxu0 %v392
      %v1177 = vpop.f32.mrb[0].mxu0
      %v1178 = vadd.f32 0.0, %v1177
      %v1179 = vpop.f32.mrb[0].mxu0
      %v1180 = vadd.f32 0.0, %v1179
      %1181 = vmatprep.mubr.f32.mxu0 0.0
      %1182 = vmatmul.mubr.f32.gmra.mrb[0].mxu0 %v395
      %v1183 = vpop.f32.mrb[0].mxu0
      %v1184 = vadd.f32 0.0, %v1183
      %v1185 = vpop.f32.mrb[0].mxu0
      %v1186 = vadd.f32 0.0, %v1185
      %1187 = vdwg.mxu0
      %1188 = vmatprep.subr.mxu0 %v259
      %1189 = vmatpush1.msra.mxu0 %v258
      %1190 = vmatprep.subr.mxu0 %v291
      %1191 = vmatpush1.msra.mxu0 %v290
      %1192 = vmatprep.subr.mxu0 %v323
      %1193 = vmatpush1.msra.mxu0 %v322
      %1194 = vmatprep.subr.mxu0 %v355
      %1195 = vmatpush1.msra.mxu0 %v354
      %1196 = vmatprep.subr.mxu0 0.0
      %1197 = vmatpush1.msra.mxu0 0.0
      %1198 = vmatprep.subr.mxu0 0.0
      %1199 = vmatpush1.msra.mxu0 0.0
      %1200 = vmatprep.subr.mxu0 0.0
      %1201 = vmatpush1.msra.mxu0 0.0
      %1202 = vmatprep.subr.mxu0 0.0
      %1203 = vmatpush1.msra.mxu0 0.0
      %1204 = vmatprep.subr.mxu0 0.0
      %1205 = vmatpush1.msra.mxu0 0.0
      %1206 = vmatprep.subr.mxu0 0.0
      %1207 = vmatpush1.msra.mxu0 0.0
      %1208 = vmatprep.subr.mxu0 0.0
      %1209 = vmatpush1.msra.mxu0 0.0
      %1210 = vmatprep.subr.mxu0 0.0
      %1211 = vmatpush1.msra.mxu0 0.0
      %1212 = vmatprep.subr.mxu0 0.0
      %1213 = vmatpush1.msra.mxu0 0.0
      %1214 = vmatprep.subr.mxu0 0.0
      %1215 = vmatpush1.msra.mxu0 0.0
      %1216 = vmatprep.subr.mxu0 0.0
      %1217 = vmatpush1.msra.mxu0 0.0
      %1218 = vmatprep.subr.mxu0 0.0
      %1219 = vmatpush1.msra.mxu0 0.0
      %1220 = vmatprep.subr.mxu0 0.0
      %1221 = vmatpush1.msra.mxu0 0.0
      %1222 = vmatprep.subr.mxu0 0.0
      %1223 = vmatpush1.msra.mxu0 0.0
      %1224 = vmatprep.subr.mxu0 0.0
      %1225 = vmatpush1.msra.mxu0 0.0
      %1226 = vmatprep.subr.mxu0 0.0
      %1227 = vmatpush1.msra.mxu0 0.0
      %1228 = vmatprep.subr.mxu0 0.0
      %1229 = vmatpush1.msra.mxu0 0.0
      %1230 = vmatprep.subr.mxu0 0.0
      %1231 = vmatpush1.msra.mxu0 0.0
      %1232 = vmatprep.subr.mxu0 0.0
      %1233 = vmatpush1.msra.mxu0 0.0
      %1234 = vmatprep.subr.mxu0 0.0
      %1235 = vmatpush1.msra.mxu0 0.0
      %1236 = vmatprep.subr.mxu0 0.0
      %1237 = vmatpush1.msra.mxu0 0.0
      %1238 = vmatprep.subr.mxu0 0.0
      %1239 = vmatpush1.msra.mxu0 0.0
      %1240 = vmatprep.subr.mxu0 0.0
      %1241 = vmatpush1.msra.mxu0 0.0
      %1242 = vmatprep.subr.mxu0 0.0
      %1243 = vmatpush1.msra.mxu0 0.0
      %1244 = vmatprep.subr.mxu0 0.0
      %1245 = vmatpush1.msra.mxu0 0.0
      %1246 = vmatprep.subr.mxu0 0.0
      %1247 = vmatpush1.msra.mxu0 0.0
      %1248 = vmatprep.subr.mxu0 0.0
      %1249 = vmatpush1.msra.mxu0 0.0
      %1250 = vmatprep.subr.mxu0 0.0
      %1251 = vmatpush1.msra.mxu0 0.0
      %1252 = vmatprep.mubr.f32.mxu0 0.0
      %1253 = vmatmul.mubr.f32.gmra.mrb[0].mxu0 %v374
      %v1254 = vpop.f32.mrb[0].mxu0
      %v1255 = vadd.f32 0.0, %v1254
      %v1256 = vpop.f32.mrb[0].mxu0
      %v1257 = vadd.f32 0.0, %v1256
      %1258 = vmatprep.mubr.f32.mxu0 0.0
      %1259 = vmatmul.mubr.f32.gmra.mrb[0].mxu0 %v377
      %v1260 = vpop.f32.mrb[0].mxu0
      %v1261 = vadd.f32 0.0, %v1260
      %v1262 = vpop.f32.mrb[0].mxu0
      %v1263 = vadd.f32 0.0, %v1262
      %1264 = vmatprep.mubr.f32.mxu0 0.0
      %1265 = vmatmul.mubr.f32.gmra.mrb[0].mxu0 %v380
      %v1266 = vpop.f32.mrb[0].mxu0
      %v1267 = vadd.f32 0.0, %v1266
      %v1268 = vpop.f32.mrb[0].mxu0
      %v1269 = vadd.f32 0.0, %v1268
      %1270 = vmatprep.mubr.f32.mxu0 0.0
      %1271 = vmatmul.mubr.f32.gmra.mrb[0].mxu0 %v383
      %v1272 = vpop.f32.mrb[0].mxu0
      %v1273 = vadd.f32 0.0, %v1272
      %v1274 = vpop.f32.mrb[0].mxu0
      %v1275 = vadd.f32 0.0, %v1274
      %1276 = vmatprep.mubr.f32.mxu0 0.0
      %1277 = vmatmul.mubr.f32.gmra.mrb[0].mxu0 %v386
      %v1278 = vpop.f32.mrb[0].mxu0
      %v1279 = vadd.f32 0.0, %v1278
      %v1280 = vpop.f32.mrb[0].mxu0
      %v1281 = vadd.f32 0.0, %v1280
      %1282 = vmatprep.mubr.f32.mxu0 0.0
      %1283 = vmatmul.mubr.f32.gmra.mrb[0].mxu0 %v389
      %v1284 = vpop.f32.mrb[0].mxu0
      %v1285 = vadd.f32 0.0, %v1284
      %v1286 = vpop.f32.mrb[0].mxu0
      %v1287 = vadd.f32 0.0, %v1286
      %1288 = vmatprep.mubr.f32.mxu0 0.0
      %1289 = vmatmul.mubr.f32.gmra.mrb[0].mxu0 %v392
      %v1290 = vpop.f32.mrb[0].mxu0
      %v1291 = vadd.f32 0.0, %v1290
      %v1292 = vpop.f32.mrb[0].mxu0
      %v1293 = vadd.f32 0.0, %v1292
      %1294 = vmatprep.mubr.f32.mxu0 0.0
      %1295 = vmatmul.mubr.f32.gmra.mrb[0].mxu0 %v395
      %v1296 = vpop.f32.mrb[0].mxu0
      %v1297 = vadd.f32 0.0, %v1296
      %v1298 = vpop.f32.mrb[0].mxu0
      %v1299 = vadd.f32 0.0, %v1298
      %1300 = vdwg.mxu0
      %1301 = vmatprep.subr.mxu0 %v261
      %1302 = vmatpush1.msra.mxu0 %v260
      %1303 = vmatprep.subr.mxu0 %v293
      %1304 = vmatpush1.msra.mxu0 %v292
      %1305 = vmatprep.subr.mxu0 %v325
      %1306 = vmatpush1.msra.mxu0 %v324
      %1307 = vmatprep.subr.mxu0 %v357
      %1308 = vmatpush1.msra.mxu0 %v356
      %1309 = vmatprep.subr.mxu0 0.0
      %1310 = vmatpush1.msra.mxu0 0.0
      %1311 = vmatprep.subr.mxu0 0.0
      %1312 = vmatpush1.msra.mxu0 0.0
      %1313 = vmatprep.subr.mxu0 0.0
      %1314 = vmatpush1.msra.mxu0 0.0
      %1315 = vmatprep.subr.mxu0 0.0
      %1316 = vmatpush1.msra.mxu0 0.0
      %1317 = vmatprep.subr.mxu0 0.0
      %1318 = vmatpush1.msra.mxu0 0.0
      %1319 = vmatprep.subr.mxu0 0.0
      %1320 = vmatpush1.msra.mxu0 0.0
      %1321 = vmatprep.subr.mxu0 0.0
      %1322 = vmatpush1.msra.mxu0 0.0
      %1323 = vmatprep.subr.mxu0 0.0
      %1324 = vmatpush1.msra.mxu0 0.0
      %1325 = vmatprep.subr.mxu0 0.0
      %1326 = vmatpush1.msra.mxu0 0.0
      %1327 = vmatprep.subr.mxu0 0.0
      %1328 = vmatpush1.msra.mxu0 0.0
      %1329 = vmatprep.subr.mxu0 0.0
      %1330 = vmatpush1.msra.mxu0 0.0
      %1331 = vmatprep.subr.mxu0 0.0
      %1332 = vmatpush1.msra.mxu0 0.0
      %1333 = vmatprep.subr.mxu0 0.0
      %1334 = vmatpush1.msra.mxu0 0.0
      %1335 = vmatprep.subr.mxu0 0.0
      %1336 = vmatpush1.msra.mxu0 0.0
      %1337 = vmatprep.subr.mxu0 0.0
      %1338 = vmatpush1.msra.mxu0 0.0
      %1339 = vmatprep.subr.mxu0 0.0
      %1340 = vmatpush1.msra.mxu0 0.0
      %1341 = vmatprep.subr.mxu0 0.0
      %1342 = vmatpush1.msra.mxu0 0.0
      %1343 = vmatprep.subr.mxu0 0.0
      %1344 = vmatpush1.msra.mxu0 0.0
      %1345 = vmatprep.subr.mxu0 0.0
      %1346 = vmatpush1.msra.mxu0 0.0
      %1347 = vmatprep.subr.mxu0 0.0
      %1348 = vmatpush1.msra.mxu0 0.0
      %1349 = vmatprep.subr.mxu0 0.0
      %1350 = vmatpush1.msra.mxu0 0.0
      %1351 = vmatprep.subr.mxu0 0.0
      %1352 = vmatpush1.msra.mxu0 0.0
      %1353 = vmatprep.subr.mxu0 0.0
      %1354 = vmatpush1.msra.mxu0 0.0
      %1355 = vmatprep.subr.mxu0 0.0
      %1356 = vmatpush1.msra.mxu0 0.0
      %1357 = vmatprep.subr.mxu0 0.0
      %1358 = vmatpush1.msra.mxu0 0.0
      %1359 = vmatprep.subr.mxu0 0.0
      %1360 = vmatpush1.msra.mxu0 0.0
      %1361 = vmatprep.subr.mxu0 0.0
      %1362 = vmatpush1.msra.mxu0 0.0
      %1363 = vmatprep.subr.mxu0 0.0
      %1364 = vmatpush1.msra.mxu0 0.0
      %1365 = vmatprep.mubr.f32.mxu0 0.0
      %1366 = vmatmul.mubr.f32.gmra.mrb[0].mxu0 %v374
      %v1367 = vpop.f32.mrb[0].mxu0
      %v1368 = vadd.f32 0.0, %v1367
      %v1369 = vpop.f32.mrb[0].mxu0
      %v1370 = vadd.f32 0.0, %v1369
      %1371 = vmatprep.mubr.f32.mxu0 0.0
      %1372 = vmatmul.mubr.f32.gmra.mrb[0].mxu0 %v377
      %v1373 = vpop.f32.mrb[0].mxu0
      %v1374 = vadd.f32 0.0, %v1373
      %v1375 = vpop.f32.mrb[0].mxu0
      %v1376 = vadd.f32 0.0, %v1375
      %1377 = vmatprep.mubr.f32.mxu0 0.0
      %1378 = vmatmul.mubr.f32.gmra.mrb[0].mxu0 %v380
      %v1379 = vpop.f32.mrb[0].mxu0
      %v1380 = vadd.f32 0.0, %v1379
      %v1381 = vpop.f32.mrb[0].mxu0
      %v1382 = vadd.f32 0.0, %v1381
      %1383 = vmatprep.mubr.f32.mxu0 0.0
      %1384 = vmatmul.mubr.f32.gmra.mrb[0].mxu0 %v383
      %v1385 = vpop.f32.mrb[0].mxu0
      %v1386 = vadd.f32 0.0, %v1385
      %v1387 = vpop.f32.mrb[0].mxu0
      %v1388 = vadd.f32 0.0, %v1387
      %1389 = vmatprep.mubr.f32.mxu0 0.0
      %1390 = vmatmul.mubr.f32.gmra.mrb[0].mxu0 %v386
      %v1391 = vpop.f32.mrb[0].mxu0
      %v1392 = vadd.f32 0.0, %v1391
      %v1393 = vpop.f32.mrb[0].mxu0
      %v1394 = vadd.f32 0.0, %v1393
      %1395 = vmatprep.mubr.f32.mxu0 0.0
      %1396 = vmatmul.mubr.f32.gmra.mrb[0].mxu0 %v389
      %v1397 = vpop.f32.mrb[0].mxu0
      %v1398 = vadd.f32 0.0, %v1397
      %v1399 = vpop.f32.mrb[0].mxu0
      %v1400 = vadd.f32 0.0, %v1399
      %1401 = vmatprep.mubr.f32.mxu0 0.0
      %1402 = vmatmul.mubr.f32.gmra.mrb[0].mxu0 %v392
      %v1403 = vpop.f32.mrb[0].mxu0
      %v1404 = vadd.f32 0.0, %v1403
      %v1405 = vpop.f32.mrb[0].mxu0
      %v1406 = vadd.f32 0.0, %v1405
      %1407 = vmatprep.mubr.f32.mxu0 0.0
      %1408 = vmatmul.mubr.f32.gmra.mrb[0].mxu0 %v395
      %v1409 = vpop.f32.mrb[0].mxu0
      %v1410 = vadd.f32 0.0, %v1409
      %v1411 = vpop.f32.mrb[0].mxu0
      %v1412 = vadd.f32 0.0, %v1411
      %1413 = vdwg.mxu0
      %1414 = vmatprep.subr.mxu0 %v263
      %1415 = vmatpush1.msra.mxu0 %v262
      %1416 = vmatprep.subr.mxu0 %v295
      %1417 = vmatpush1.msra.mxu0 %v294
      %1418 = vmatprep.subr.mxu0 %v327
      %1419 = vmatpush1.msra.mxu0 %v326
      %1420 = vmatprep.subr.mxu0 %v359
      %1421 = vmatpush1.msra.mxu0 %v358
      %1422 = vmatprep.subr.mxu0 0.0
      %1423 = vmatpush1.msra.mxu0 0.0
      %1424 = vmatprep.subr.mxu0 0.0
      %1425 = vmatpush1.msra.mxu0 0.0
      %1426 = vmatprep.subr.mxu0 0.0
      %1427 = vmatpush1.msra.mxu0 0.0
      %1428 = vmatprep.subr.mxu0 0.0
      %1429 = vmatpush1.msra.mxu0 0.0
      %1430 = vmatprep.subr.mxu0 0.0
      %1431 = vmatpush1.msra.mxu0 0.0
      %1432 = vmatprep.subr.mxu0 0.0
      %1433 = vmatpush1.msra.mxu0 0.0
      %1434 = vmatprep.subr.mxu0 0.0
      %1435 = vmatpush1.msra.mxu0 0.0
      %1436 = vmatprep.subr.mxu0 0.0
      %1437 = vmatpush1.msra.mxu0 0.0
      %1438 = vmatprep.subr.mxu0 0.0
      %1439 = vmatpush1.msra.mxu0 0.0
      %1440 = vmatprep.subr.mxu0 0.0
      %1441 = vmatpush1.msra.mxu0 0.0
      %1442 = vmatprep.subr.mxu0 0.0
      %1443 = vmatpush1.msra.mxu0 0.0
      %1444 = vmatprep.subr.mxu0 0.0
      %1445 = vmatpush1.msra.mxu0 0.0
      %1446 = vmatprep.subr.mxu0 0.0
      %1447 = vmatpush1.msra.mxu0 0.0
      %1448 = vmatprep.subr.mxu0 0.0
      %1449 = vmatpush1.msra.mxu0 0.0
      %1450 = vmatprep.subr.mxu0 0.0
      %1451 = vmatpush1.msra.mxu0 0.0
      %1452 = vmatprep.subr.mxu0 0.0
      %1453 = vmatpush1.msra.mxu0 0.0
      %1454 = vmatprep.subr.mxu0 0.0
      %1455 = vmatpush1.msra.mxu0 0.0
      %1456 = vmatprep.subr.mxu0 0.0
      %1457 = vmatpush1.msra.mxu0 0.0
      %1458 = vmatprep.subr.mxu0 0.0
      %1459 = vmatpush1.msra.mxu0 0.0
      %1460 = vmatprep.subr.mxu0 0.0
      %1461 = vmatpush1.msra.mxu0 0.0
      %1462 = vmatprep.subr.mxu0 0.0
      %1463 = vmatpush1.msra.mxu0 0.0
      %1464 = vmatprep.subr.mxu0 0.0
      %1465 = vmatpush1.msra.mxu0 0.0
      %1466 = vmatprep.subr.mxu0 0.0
      %1467 = vmatpush1.msra.mxu0 0.0
      %1468 = vmatprep.subr.mxu0 0.0
      %1469 = vmatpush1.msra.mxu0 0.0
      %1470 = vmatprep.subr.mxu0 0.0
      %1471 = vmatpush1.msra.mxu0 0.0
      %1472 = vmatprep.subr.mxu0 0.0
      %1473 = vmatpush1.msra.mxu0 0.0
      %1474 = vmatprep.subr.mxu0 0.0
      %1475 = vmatpush1.msra.mxu0 0.0
      %1476 = vmatprep.subr.mxu0 0.0
      %1477 = vmatpush1.msra.mxu0 0.0
      %1478 = vmatprep.mubr.f32.mxu0 0.0
      %1479 = vmatmul.mubr.f32.gmra.mrb[0].mxu0 %v374
      %v1480 = vpop.f32.mrb[0].mxu0
      %v1481 = vadd.f32 0.0, %v1480
      %v1482 = vpop.f32.mrb[0].mxu0
      %v1483 = vadd.f32 0.0, %v1482
      %1484 = vmatprep.mubr.f32.mxu0 0.0
      %1485 = vmatmul.mubr.f32.gmra.mrb[0].mxu0 %v377
      %v1486 = vpop.f32.mrb[0].mxu0
      %v1487 = vadd.f32 0.0, %v1486
      %v1488 = vpop.f32.mrb[0].mxu0
      %v1489 = vadd.f32 0.0, %v1488
      %1490 = vmatprep.mubr.f32.mxu0 0.0
      %1491 = vmatmul.mubr.f32.gmra.mrb[0].mxu0 %v380
      %v1492 = vpop.f32.mrb[0].mxu0
      %v1493 = vadd.f32 0.0, %v1492
      %v1494 = vpop.f32.mrb[0].mxu0
      %v1495 = vadd.f32 0.0, %v1494
      %1496 = vmatprep.mubr.f32.mxu0 0.0
      %1497 = vmatmul.mubr.f32.gmra.mrb[0].mxu0 %v383
      %v1498 = vpop.f32.mrb[0].mxu0
      %v1499 = vadd.f32 0.0, %v1498
      %v1500 = vpop.f32.mrb[0].mxu0
      %v1501 = vadd.f32 0.0, %v1500
      %1502 = vmatprep.mubr.f32.mxu0 0.0
      %1503 = vmatmul.mubr.f32.gmra.mrb[0].mxu0 %v386
      %v1504 = vpop.f32.mrb[0].mxu0
      %v1505 = vadd.f32 0.0, %v1504
      %v1506 = vpop.f32.mrb[0].mxu0
      %v1507 = vadd.f32 0.0, %v1506
      %1508 = vmatprep.mubr.f32.mxu0 0.0
      %1509 = vmatmul.mubr.f32.gmra.mrb[0].mxu0 %v389
      %v1510 = vpop.f32.mrb[0].mxu0
      %v1511 = vadd.f32 0.0, %v1510
      %v1512 = vpop.f32.mrb[0].mxu0
      %v1513 = vadd.f32 0.0, %v1512
      %1514 = vmatprep.mubr.f32.mxu0 0.0
      %1515 = vmatmul.mubr.f32.gmra.mrb[0].mxu0 %v392
      %v1516 = vpop.f32.mrb[0].mxu0
      %v1517 = vadd.f32 0.0, %v1516
      %v1518 = vpop.f32.mrb[0].mxu0
      %v1519 = vadd.f32 0.0, %v1518
      %1520 = vmatprep.mubr.f32.mxu0 0.0
      %1521 = vmatmul.mubr.f32.gmra.mrb[0].mxu0 %v395
      %v1522 = vpop.f32.mrb[0].mxu0
      %v1523 = vadd.f32 0.0, %v1522
      %v1524 = vpop.f32.mrb[0].mxu0
      %v1525 = vadd.f32 0.0, %v1524
      %1526 = vdwg.mxu0
      %1527 = vmatprep.subr.mxu0 %v265
      %1528 = vmatpush1.msra.mxu0 %v264
      %1529 = vmatprep.subr.mxu0 %v297
      %1530 = vmatpush1.msra.mxu0 %v296
      %1531 = vmatprep.subr.mxu0 %v329
      %1532 = vmatpush1.msra.mxu0 %v328
      %1533 = vmatprep.subr.mxu0 %v361
      %1534 = vmatpush1.msra.mxu0 %v360
      %1535 = vmatprep.subr.mxu0 0.0
      %1536 = vmatpush1.msra.mxu0 0.0
      %1537 = vmatprep.subr.mxu0 0.0
      %1538 = vmatpush1.msra.mxu0 0.0
      %1539 = vmatprep.subr.mxu0 0.0
      %1540 = vmatpush1.msra.mxu0 0.0
      %1541 = vmatprep.subr.mxu0 0.0
      %1542 = vmatpush1.msra.mxu0 0.0
      %1543 = vmatprep.subr.mxu0 0.0
      %1544 = vmatpush1.msra.mxu0 0.0
      %1545 = vmatprep.subr.mxu0 0.0
      %1546 = vmatpush1.msra.mxu0 0.0
      %1547 = vmatprep.subr.mxu0 0.0
      %1548 = vmatpush1.msra.mxu0 0.0
      %1549 = vmatprep.subr.mxu0 0.0
      %1550 = vmatpush1.msra.mxu0 0.0
      %1551 = vmatprep.subr.mxu0 0.0
      %1552 = vmatpush1.msra.mxu0 0.0
      %1553 = vmatprep.subr.mxu0 0.0
      %1554 = vmatpush1.msra.mxu0 0.0
      %1555 = vmatprep.subr.mxu0 0.0
      %1556 = vmatpush1.msra.mxu0 0.0
      %1557 = vmatprep.subr.mxu0 0.0
      %1558 = vmatpush1.msra.mxu0 0.0
      %1559 = vmatprep.subr.mxu0 0.0
      %1560 = vmatpush1.msra.mxu0 0.0
      %1561 = vmatprep.subr.mxu0 0.0
      %1562 = vmatpush1.msra.mxu0 0.0
      %1563 = vmatprep.subr.mxu0 0.0
      %1564 = vmatpush1.msra.mxu0 0.0
      %1565 = vmatprep.subr.mxu0 0.0
      %1566 = vmatpush1.msra.mxu0 0.0
      %1567 = vmatprep.subr.mxu0 0.0
      %1568 = vmatpush1.msra.mxu0 0.0
      %1569 = vmatprep.subr.mxu0 0.0
      %1570 = vmatpush1.msra.mxu0 0.0
      %1571 = vmatprep.subr.mxu0 0.0
      %1572 = vmatpush1.msra.mxu0 0.0
      %1573 = vmatprep.subr.mxu0 0.0
      %1574 = vmatpush1.msra.mxu0 0.0
      %1575 = vmatprep.subr.mxu0 0.0
      %1576 = vmatpush1.msra.mxu0 0.0
      %1577 = vmatprep.subr.mxu0 0.0
      %1578 = vmatpush1.msra.mxu0 0.0
      %1579 = vmatprep.subr.mxu0 0.0
      %1580 = vmatpush1.msra.mxu0 0.0
      %1581 = vmatprep.subr.mxu0 0.0
      %1582 = vmatpush1.msra.mxu0 0.0
      %1583 = vmatprep.subr.mxu0 0.0
      %1584 = vmatpush1.msra.mxu0 0.0
      %1585 = vmatprep.subr.mxu0 0.0
      %1586 = vmatpush1.msra.mxu0 0.0
      %1587 = vmatprep.subr.mxu0 0.0
      %1588 = vmatpush1.msra.mxu0 0.0
      %1589 = vmatprep.subr.mxu0 0.0
      %1590 = vmatpush1.msra.mxu0 0.0
      %1591 = vmatprep.mubr.f32.mxu0 0.0
      %1592 = vmatmul.mubr.f32.gmra.mrb[0].mxu0 %v374
      %v1593 = vpop.f32.mrb[0].mxu0
      %v1594 = vadd.f32 0.0, %v1593
      %v1595 = vpop.f32.mrb[0].mxu0
      %v1596 = vadd.f32 0.0, %v1595
      %1597 = vmatprep.mubr.f32.mxu0 0.0
      %1598 = vmatmul.mubr.f32.gmra.mrb[0].mxu0 %v377
      %v1599 = vpop.f32.mrb[0].mxu0
      %v1600 = vadd.f32 0.0, %v1599
      %v1601 = vpop.f32.mrb[0].mxu0
      %v1602 = vadd.f32 0.0, %v1601
      %1603 = vmatprep.mubr.f32.mxu0 0.0
      %1604 = vmatmul.mubr.f32.gmra.mrb[0].mxu0 %v380
      %v1605 = vpop.f32.mrb[0].mxu0
      %v1606 = vadd.f32 0.0, %v1605
      %v1607 = vpop.f32.mrb[0].mxu0
      %v1608 = vadd.f32 0.0, %v1607
      %1609 = vmatprep.mubr.f32.mxu0 0.0
      %1610 = vmatmul.mubr.f32.gmra.mrb[0].mxu0 %v383
      %v1611 = vpop.f32.mrb[0].mxu0
      %v1612 = vadd.f32 0.0, %v1611
      %v1613 = vpop.f32.mrb[0].mxu0
      %v1614 = vadd.f32 0.0, %v1613
      %1615 = vmatprep.mubr.f32.mxu0 0.0
      %1616 = vmatmul.mubr.f32.gmra.mrb[0].mxu0 %v386
      %v1617 = vpop.f32.mrb[0].mxu0
      %v1618 = vadd.f32 0.0, %v1617
      %v1619 = vpop.f32.mrb[0].mxu0
      %v1620 = vadd.f32 0.0, %v1619
      %1621 = vmatprep.mubr.f32.mxu0 0.0
      %1622 = vmatmul.mubr.f32.gmra.mrb[0].mxu0 %v389
      %v1623 = vpop.f32.mrb[0].mxu0
      %v1624 = vadd.f32 0.0, %v1623
      %v1625 = vpop.f32.mrb[0].mxu0
      %v1626 = vadd.f32 0.0, %v1625
      %1627 = vmatprep.mubr.f32.mxu0 0.0
      %1628 = vmatmul.mubr.f32.gmra.mrb[0].mxu0 %v392
      %v1629 = vpop.f32.mrb[0].mxu0
      %v1630 = vadd.f32 0.0, %v1629
      %v1631 = vpop.f32.mrb[0].mxu0
      %v1632 = vadd.f32 0.0, %v1631
      %1633 = vmatprep.mubr.f32.mxu0 0.0
      %1634 = vmatmul.mubr.f32.gmra.mrb[0].mxu0 %v395
      %v1635 = vpop.f32.mrb[0].mxu0
      %v1636 = vadd.f32 0.0, %v1635
      %v1637 = vpop.f32.mrb[0].mxu0
      %v1638 = vadd.f32 0.0, %v1637
      %1639 = vdwg.mxu0
      %1640 = vmatprep.subr.mxu0 %v267
      %1641 = vmatpush1.msra.mxu0 %v266
      %1642 = vmatprep.subr.mxu0 %v299
      %1643 = vmatpush1.msra.mxu0 %v298
      %1644 = vmatprep.subr.mxu0 %v331
      %1645 = vmatpush1.msra.mxu0 %v330
      %1646 = vmatprep.subr.mxu0 %v363
      %1647 = vmatpush1.msra.mxu0 %v362
      %1648 = vmatprep.subr.mxu0 0.0
      %1649 = vmatpush1.msra.mxu0 0.0
      %1650 = vmatprep.subr.mxu0 0.0
      %1651 = vmatpush1.msra.mxu0 0.0
      %1652 = vmatprep.subr.mxu0 0.0
      %1653 = vmatpush1.msra.mxu0 0.0
      %1654 = vmatprep.subr.mxu0 0.0
      %1655 = vmatpush1.msra.mxu0 0.0
      %1656 = vmatprep.subr.mxu0 0.0
      %1657 = vmatpush1.msra.mxu0 0.0
      %1658 = vmatprep.subr.mxu0 0.0
      %1659 = vmatpush1.msra.mxu0 0.0
      %1660 = vmatprep.subr.mxu0 0.0
      %1661 = vmatpush1.msra.mxu0 0.0
      %1662 = vmatprep.subr.mxu0 0.0
      %1663 = vmatpush1.msra.mxu0 0.0
      %1664 = vmatprep.subr.mxu0 0.0
      %1665 = vmatpush1.msra.mxu0 0.0
      %1666 = vmatprep.subr.mxu0 0.0
      %1667 = vmatpush1.msra.mxu0 0.0
      %1668 = vmatprep.subr.mxu0 0.0
      %1669 = vmatpush1.msra.mxu0 0.0
      %1670 = vmatprep.subr.mxu0 0.0
      %1671 = vmatpush1.msra.mxu0 0.0
      %1672 = vmatprep.subr.mxu0 0.0
      %1673 = vmatpush1.msra.mxu0 0.0
      %1674 = vmatprep.subr.mxu0 0.0
      %1675 = vmatpush1.msra.mxu0 0.0
      %1676 = vmatprep.subr.mxu0 0.0
      %1677 = vmatpush1.msra.mxu0 0.0
      %1678 = vmatprep.subr.mxu0 0.0
      %1679 = vmatpush1.msra.mxu0 0.0
      %1680 = vmatprep.subr.mxu0 0.0
      %1681 = vmatpush1.msra.mxu0 0.0
      %1682 = vmatprep.subr.mxu0 0.0
      %1683 = vmatpush1.msra.mxu0 0.0
      %1684 = vmatprep.subr.mxu0 0.0
      %1685 = vmatpush1.msra.mxu0 0.0
      %1686 = vmatprep.subr.mxu0 0.0
      %1687 = vmatpush1.msra.mxu0 0.0
      %1688 = vmatprep.subr.mxu0 0.0
      %1689 = vmatpush1.msra.mxu0 0.0
      %1690 = vmatprep.subr.mxu0 0.0
      %1691 = vmatpush1.msra.mxu0 0.0
      %1692 = vmatprep.subr.mxu0 0.0
      %1693 = vmatpush1.msra.mxu0 0.0
      %1694 = vmatprep.subr.mxu0 0.0
      %1695 = vmatpush1.msra.mxu0 0.0
      %1696 = vmatprep.subr.mxu0 0.0
      %1697 = vmatpush1.msra.mxu0 0.0
      %1698 = vmatprep.subr.mxu0 0.0
      %1699 = vmatpush1.msra.mxu0 0.0
      %1700 = vmatprep.subr.mxu0 0.0
      %1701 = vmatpush1.msra.mxu0 0.0
      %1702 = vmatprep.subr.mxu0 0.0
      %1703 = vmatpush1.msra.mxu0 0.0
      %1704 = vmatprep.mubr.f32.mxu0 0.0
      %1705 = vmatmul.mubr.f32.gmra.mrb[0].mxu0 %v374
      %v1706 = vpop.f32.mrb[0].mxu0
      %v1707 = vadd.f32 0.0, %v1706
      %v1708 = vpop.f32.mrb[0].mxu0
      %v1709 = vadd.f32 0.0, %v1708
      %1710 = vmatprep.mubr.f32.mxu0 0.0
      %1711 = vmatmul.mubr.f32.gmra.mrb[0].mxu0 %v377
      %v1712 = vpop.f32.mrb[0].mxu0
      %v1713 = vadd.f32 0.0, %v1712
      %v1714 = vpop.f32.mrb[0].mxu0
      %v1715 = vadd.f32 0.0, %v1714
      %1716 = vmatprep.mubr.f32.mxu0 0.0
      %1717 = vmatmul.mubr.f32.gmra.mrb[0].mxu0 %v380
      %v1718 = vpop.f32.mrb[0].mxu0
      %v1719 = vadd.f32 0.0, %v1718
      %v1720 = vpop.f32.mrb[0].mxu0
      %v1721 = vadd.f32 0.0, %v1720
      %1722 = vmatprep.mubr.f32.mxu0 0.0
      %1723 = vmatmul.mubr.f32.gmra.mrb[0].mxu0 %v383
      %v1724 = vpop.f32.mrb[0].mxu0
      %v1725 = vadd.f32 0.0, %v1724
      %v1726 = vpop.f32.mrb[0].mxu0
      %v1727 = vadd.f32 0.0, %v1726
      %1728 = vmatprep.mubr.f32.mxu0 0.0
      %1729 = vmatmul.mubr.f32.gmra.mrb[0].mxu0 %v386
      %v1730 = vpop.f32.mrb[0].mxu0
      %v1731 = vadd.f32 0.0, %v1730
      %v1732 = vpop.f32.mrb[0].mxu0
      %v1733 = vadd.f32 0.0, %v1732
      %1734 = vmatprep.mubr.f32.mxu0 0.0
      %1735 = vmatmul.mubr.f32.gmra.mrb[0].mxu0 %v389
      %v1736 = vpop.f32.mrb[0].mxu0
      %v1737 = vadd.f32 0.0, %v1736
      %v1738 = vpop.f32.mrb[0].mxu0
      %v1739 = vadd.f32 0.0, %v1738
      %1740 = vmatprep.mubr.f32.mxu0 0.0
      %1741 = vmatmul.mubr.f32.gmra.mrb[0].mxu0 %v392
      %v1742 = vpop.f32.mrb[0].mxu0
      %v1743 = vadd.f32 0.0, %v1742
      %v1744 = vpop.f32.mrb[0].mxu0
      %v1745 = vadd.f32 0.0, %v1744
      %1746 = vmatprep.mubr.f32.mxu0 0.0
      %1747 = vmatmul.mubr.f32.gmra.mrb[0].mxu0 %v395
      %v1748 = vpop.f32.mrb[0].mxu0
      %v1749 = vadd.f32 0.0, %v1748
      %v1750 = vpop.f32.mrb[0].mxu0
      %v1751 = vadd.f32 0.0, %v1750
      %1752 = vdwg.mxu0
      %1753 = vmatprep.subr.mxu0 %v269
      %1754 = vmatpush1.msra.mxu0 %v268
      %1755 = vmatprep.subr.mxu0 %v301
      %1756 = vmatpush1.msra.mxu0 %v300
      %1757 = vmatprep.subr.mxu0 %v333
      %1758 = vmatpush1.msra.mxu0 %v332
      %1759 = vmatprep.subr.mxu0 %v365
      %1760 = vmatpush1.msra.mxu0 %v364
      %1761 = vmatprep.subr.mxu0 0.0
      %1762 = vmatpush1.msra.mxu0 0.0
      %1763 = vmatprep.subr.mxu0 0.0
      %1764 = vmatpush1.msra.mxu0 0.0
      %1765 = vmatprep.subr.mxu0 0.0
      %1766 = vmatpush1.msra.mxu0 0.0
      %1767 = vmatprep.subr.mxu0 0.0
      %1768 = vmatpush1.msra.mxu0 0.0
      %1769 = vmatprep.subr.mxu0 0.0
      %1770 = vmatpush1.msra.mxu0 0.0
      %1771 = vmatprep.subr.mxu0 0.0
      %1772 = vmatpush1.msra.mxu0 0.0
      %1773 = vmatprep.subr.mxu0 0.0
      %1774 = vmatpush1.msra.mxu0 0.0
      %1775 = vmatprep.subr.mxu0 0.0
      %1776 = vmatpush1.msra.mxu0 0.0
      %1777 = vmatprep.subr.mxu0 0.0
      %1778 = vmatpush1.msra.mxu0 0.0
      %1779 = vmatprep.subr.mxu0 0.0
      %1780 = vmatpush1.msra.mxu0 0.0
      %1781 = vmatprep.subr.mxu0 0.0
      %1782 = vmatpush1.msra.mxu0 0.0
      %1783 = vmatprep.subr.mxu0 0.0
      %1784 = vmatpush1.msra.mxu0 0.0
      %1785 = vmatprep.subr.mxu0 0.0
      %1786 = vmatpush1.msra.mxu0 0.0
      %1787 = vmatprep.subr.mxu0 0.0
      %1788 = vmatpush1.msra.mxu0 0.0
      %1789 = vmatprep.subr.mxu0 0.0
      %1790 = vmatpush1.msra.mxu0 0.0
      %1791 = vmatprep.subr.mxu0 0.0
      %1792 = vmatpush1.msra.mxu0 0.0
      %1793 = vmatprep.subr.mxu0 0.0
      %1794 = vmatpush1.msra.mxu0 0.0
      %1795 = vmatprep.subr.mxu0 0.0
      %1796 = vmatpush1.msra.mxu0 0.0
      %1797 = vmatprep.subr.mxu0 0.0
      %1798 = vmatpush1.msra.mxu0 0.0
      %1799 = vmatprep.subr.mxu0 0.0
      %1800 = vmatpush1.msra.mxu0 0.0
      %1801 = vmatprep.subr.mxu0 0.0
      %1802 = vmatpush1.msra.mxu0 0.0
      %1803 = vmatprep.subr.mxu0 0.0
      %1804 = vmatpush1.msra.mxu0 0.0
      %1805 = vmatprep.subr.mxu0 0.0
      %1806 = vmatpush1.msra.mxu0 0.0
      %1807 = vmatprep.subr.mxu0 0.0
      %1808 = vmatpush1.msra.mxu0 0.0
      %1809 = vmatprep.subr.mxu0 0.0
      %1810 = vmatpush1.msra.mxu0 0.0
      %1811 = vmatprep.subr.mxu0 0.0
      %1812 = vmatpush1.msra.mxu0 0.0
      %1813 = vmatprep.subr.mxu0 0.0
      %1814 = vmatpush1.msra.mxu0 0.0
      %1815 = vmatprep.subr.mxu0 0.0
      %1816 = vmatpush1.msra.mxu0 0.0
      %1817 = vmatprep.mubr.f32.mxu0 0.0
      %1818 = vmatmul.mubr.f32.gmra.mrb[0].mxu0 %v374
      %v1819 = vpop.f32.mrb[0].mxu0
      %v1820 = vadd.f32 0.0, %v1819
      %v1821 = vpop.f32.mrb[0].mxu0
      %v1822 = vadd.f32 0.0, %v1821
      %1823 = vmatprep.mubr.f32.mxu0 0.0
      %1824 = vmatmul.mubr.f32.gmra.mrb[0].mxu0 %v377
      %v1825 = vpop.f32.mrb[0].mxu0
      %v1826 = vadd.f32 0.0, %v1825
      %v1827 = vpop.f32.mrb[0].mxu0
      %v1828 = vadd.f32 0.0, %v1827
      %1829 = vmatprep.mubr.f32.mxu0 0.0
      %1830 = vmatmul.mubr.f32.gmra.mrb[0].mxu0 %v380
      %v1831 = vpop.f32.mrb[0].mxu0
      %v1832 = vadd.f32 0.0, %v1831
      %v1833 = vpop.f32.mrb[0].mxu0
      %v1834 = vadd.f32 0.0, %v1833
      %1835 = vmatprep.mubr.f32.mxu0 0.0
      %1836 = vmatmul.mubr.f32.gmra.mrb[0].mxu0 %v383
      %v1837 = vpop.f32.mrb[0].mxu0
      %v1838 = vadd.f32 0.0, %v1837
      %v1839 = vpop.f32.mrb[0].mxu0
      %v1840 = vadd.f32 0.0, %v1839
      %1841 = vmatprep.mubr.f32.mxu0 0.0
      %1842 = vmatmul.mubr.f32.gmra.mrb[0].mxu0 %v386
      %v1843 = vpop.f32.mrb[0].mxu0
      %v1844 = vadd.f32 0.0, %v1843
      %v1845 = vpop.f32.mrb[0].mxu0
      %v1846 = vadd.f32 0.0, %v1845
      %1847 = vmatprep.mubr.f32.mxu0 0.0
      %1848 = vmatmul.mubr.f32.gmra.mrb[0].mxu0 %v389
      %v1849 = vpop.f32.mrb[0].mxu0
      %v1850 = vadd.f32 0.0, %v1849
      %v1851 = vpop.f32.mrb[0].mxu0
      %v1852 = vadd.f32 0.0, %v1851
      %1853 = vmatprep.mubr.f32.mxu0 0.0
      %1854 = vmatmul.mubr.f32.gmra.mrb[0].mxu0 %v392
      %v1855 = vpop.f32.mrb[0].mxu0
      %v1856 = vadd.f32 0.0, %v1855
      %v1857 = vpop.f32.mrb[0].mxu0
      %v1858 = vadd.f32 0.0, %v1857
      %1859 = vmatprep.mubr.f32.mxu0 0.0
      %1860 = vmatmul.mubr.f32.gmra.mrb[0].mxu0 %v395
      %v1861 = vpop.f32.mrb[0].mxu0
      %v1862 = vadd.f32 0.0, %v1861
      %v1863 = vpop.f32.mrb[0].mxu0
      %v1864 = vadd.f32 0.0, %v1863
      %1865 = vdwg.mxu0
      %1866 = vmatprep.subr.mxu0 %v271
      %1867 = vmatpush1.msra.mxu0 %v270
      %1868 = vmatprep.subr.mxu0 %v303
      %1869 = vmatpush1.msra.mxu0 %v302
      %1870 = vmatprep.subr.mxu0 %v335
      %1871 = vmatpush1.msra.mxu0 %v334
      %1872 = vmatprep.subr.mxu0 %v367
      %1873 = vmatpush1.msra.mxu0 %v366
      %1874 = vmatprep.subr.mxu0 0.0
      %1875 = vmatpush1.msra.mxu0 0.0
      %1876 = vmatprep.subr.mxu0 0.0
      %1877 = vmatpush1.msra.mxu0 0.0
      %1878 = vmatprep.subr.mxu0 0.0
      %1879 = vmatpush1.msra.mxu0 0.0
      %1880 = vmatprep.subr.mxu0 0.0
      %1881 = vmatpush1.msra.mxu0 0.0
      %1882 = vmatprep.subr.mxu0 0.0
      %1883 = vmatpush1.msra.mxu0 0.0
      %1884 = vmatprep.subr.mxu0 0.0
      %1885 = vmatpush1.msra.mxu0 0.0
      %1886 = vmatprep.subr.mxu0 0.0
      %1887 = vmatpush1.msra.mxu0 0.0
      %1888 = vmatprep.subr.mxu0 0.0
      %1889 = vmatpush1.msra.mxu0 0.0
      %1890 = vmatprep.subr.mxu0 0.0
      %1891 = vmatpush1.msra.mxu0 0.0
      %1892 = vmatprep.subr.mxu0 0.0
      %1893 = vmatpush1.msra.mxu0 0.0
      %1894 = vmatprep.subr.mxu0 0.0
      %1895 = vmatpush1.msra.mxu0 0.0
      %1896 = vmatprep.subr.mxu0 0.0
      %1897 = vmatpush1.msra.mxu0 0.0
      %1898 = vmatprep.subr.mxu0 0.0
      %1899 = vmatpush1.msra.mxu0 0.0
      %1900 = vmatprep.subr.mxu0 0.0
      %1901 = vmatpush1.msra.mxu0 0.0
      %1902 = vmatprep.subr.mxu0 0.0
      %1903 = vmatpush1.msra.mxu0 0.0
      %1904 = vmatprep.subr.mxu0 0.0
      %1905 = vmatpush1.msra.mxu0 0.0
      %1906 = vmatprep.subr.mxu0 0.0
      %1907 = vmatpush1.msra.mxu0 0.0
      %1908 = vmatprep.subr.mxu0 0.0
      %1909 = vmatpush1.msra.mxu0 0.0
      %1910 = vmatprep.subr.mxu0 0.0
      %1911 = vmatpush1.msra.mxu0 0.0
      %1912 = vmatprep.subr.mxu0 0.0
      %1913 = vmatpush1.msra.mxu0 0.0
      %1914 = vmatprep.subr.mxu0 0.0
      %1915 = vmatpush1.msra.mxu0 0.0
      %1916 = vmatprep.subr.mxu0 0.0
      %1917 = vmatpush1.msra.mxu0 0.0
      %1918 = vmatprep.subr.mxu0 0.0
      %1919 = vmatpush1.msra.mxu0 0.0
      %1920 = vmatprep.subr.mxu0 0.0
      %1921 = vmatpush1.msra.mxu0 0.0
      %1922 = vmatprep.subr.mxu0 0.0
      %1923 = vmatpush1.msra.mxu0 0.0
      %1924 = vmatprep.subr.mxu0 0.0
      %1925 = vmatpush1.msra.mxu0 0.0
      %1926 = vmatprep.subr.mxu0 0.0
      %1927 = vmatpush1.msra.mxu0 0.0
      %1928 = vmatprep.subr.mxu0 0.0
      %1929 = vmatpush1.msra.mxu0 0.0
      %1930 = vmatprep.mubr.f32.mxu0 0.0
      %1931 = vmatmul.mubr.f32.gmra.mrb[0].mxu0 %v374
      %v1932 = vpop.f32.mrb[0].mxu0
      %v1933 = vadd.f32 0.0, %v1932
      %v1934 = vpop.f32.mrb[0].mxu0
      %v1935 = vadd.f32 0.0, %v1934
      %1936 = vmatprep.mubr.f32.mxu0 0.0
      %1937 = vmatmul.mubr.f32.gmra.mrb[0].mxu0 %v377
      %v1938 = vpop.f32.mrb[0].mxu0
      %v1939 = vadd.f32 0.0, %v1938
      %v1940 = vpop.f32.mrb[0].mxu0
      %v1941 = vadd.f32 0.0, %v1940
      %1942 = vmatprep.mubr.f32.mxu0 0.0
      %1943 = vmatmul.mubr.f32.gmra.mrb[0].mxu0 %v380
      %v1944 = vpop.f32.mrb[0].mxu0
      %v1945 = vadd.f32 0.0, %v1944
      %v1946 = vpop.f32.mrb[0].mxu0
      %v1947 = vadd.f32 0.0, %v1946
      %1948 = vmatprep.mubr.f32.mxu0 0.0
      %1949 = vmatmul.mubr.f32.gmra.mrb[0].mxu0 %v383
      %v1950 = vpop.f32.mrb[0].mxu0
      %v1951 = vadd.f32 0.0, %v1950
      %v1952 = vpop.f32.mrb[0].mxu0
      %v1953 = vadd.f32 0.0, %v1952
      %1954 = vmatprep.mubr.f32.mxu0 0.0
      %1955 = vmatmul.mubr.f32.gmra.mrb[0].mxu0 %v386
      %v1956 = vpop.f32.mrb[0].mxu0
      %v1957 = vadd.f32 0.0, %v1956
      %v1958 = vpop.f32.mrb[0].mxu0
      %v1959 = vadd.f32 0.0, %v1958
      %1960 = vmatprep.mubr.f32.mxu0 0.0
      %1961 = vmatmul.mubr.f32.gmra.mrb[0].mxu0 %v389
      %v1962 = vpop.f32.mrb[0].mxu0
      %v1963 = vadd.f32 0.0, %v1962
      %v1964 = vpop.f32.mrb[0].mxu0
      %v1965 = vadd.f32 0.0, %v1964
      %1966 = vmatprep.mubr.f32.mxu0 0.0
      %1967 = vmatmul.mubr.f32.gmra.mrb[0].mxu0 %v392
      %v1968 = vpop.f32.mrb[0].mxu0
      %v1969 = vadd.f32 0.0, %v1968
      %v1970 = vpop.f32.mrb[0].mxu0
      %v1971 = vadd.f32 0.0, %v1970
      %1972 = vmatprep.mubr.f32.mxu0 0.0
      %1973 = vmatmul.mubr.f32.gmra.mrb[0].mxu0 %v395
      %v1974 = vpop.f32.mrb[0].mxu0
      %v1975 = vadd.f32 0.0, %v1974
      %v1976 = vpop.f32.mrb[0].mxu0
      %v1977 = vadd.f32 0.0, %v1976
      %1978 = vdwg.mxu0
      %1979 = vmatprep.subr.mxu0 %v273
      %1980 = vmatpush1.msra.mxu0 %v272
      %1981 = vmatprep.subr.mxu0 %v305
      %1982 = vmatpush1.msra.mxu0 %v304
      %1983 = vmatprep.subr.mxu0 %v337
      %1984 = vmatpush1.msra.mxu0 %v336
      %1985 = vmatprep.subr.mxu0 %v369
      %1986 = vmatpush1.msra.mxu0 %v368
      %1987 = vmatprep.subr.mxu0 0.0
      %1988 = vmatpush1.msra.mxu0 0.0
      %1989 = vmatprep.subr.mxu0 0.0
      %1990 = vmatpush1.msra.mxu0 0.0
      %1991 = vmatprep.subr.mxu0 0.0
      %1992 = vmatpush1.msra.mxu0 0.0
      %1993 = vmatprep.subr.mxu0 0.0
      %1994 = vmatpush1.msra.mxu0 0.0
      %1995 = vmatprep.subr.mxu0 0.0
      %1996 = vmatpush1.msra.mxu0 0.0
      %1997 = vmatprep.subr.mxu0 0.0
      %1998 = vmatpush1.msra.mxu0 0.0
      %1999 = vmatprep.subr.mxu0 0.0
      %2000 = vmatpush1.msra.mxu0 0.0
      %2001 = vmatprep.subr.mxu0 0.0
      %2002 = vmatpush1.msra.mxu0 0.0
      %2003 = vmatprep.subr.mxu0 0.0
      %2004 = vmatpush1.msra.mxu0 0.0
      %2005 = vmatprep.subr.mxu0 0.0
      %2006 = vmatpush1.msra.mxu0 0.0
      %2007 = vmatprep.subr.mxu0 0.0
      %2008 = vmatpush1.msra.mxu0 0.0
      %2009 = vmatprep.subr.mxu0 0.0
      %2010 = vmatpush1.msra.mxu0 0.0
      %2011 = vmatprep.subr.mxu0 0.0
      %2012 = vmatpush1.msra.mxu0 0.0
      %2013 = vmatprep.subr.mxu0 0.0
      %2014 = vmatpush1.msra.mxu0 0.0
      %2015 = vmatprep.subr.mxu0 0.0
      %2016 = vmatpush1.msra.mxu0 0.0
      %2017 = vmatprep.subr.mxu0 0.0
      %2018 = vmatpush1.msra.mxu0 0.0
      %2019 = vmatprep.subr.mxu0 0.0
      %2020 = vmatpush1.msra.mxu0 0.0
      %2021 = vmatprep.subr.mxu0 0.0
      %2022 = vmatpush1.msra.mxu0 0.0
      %2023 = vmatprep.subr.mxu0 0.0
      %2024 = vmatpush1.msra.mxu0 0.0
      %2025 = vmatprep.subr.mxu0 0.0
      %2026 = vmatpush1.msra.mxu0 0.0
      %2027 = vmatprep.subr.mxu0 0.0
      %2028 = vmatpush1.msra.mxu0 0.0
      %2029 = vmatprep.subr.mxu0 0.0
      %2030 = vmatpush1.msra.mxu0 0.0
      %2031 = vmatprep.subr.mxu0 0.0
      %2032 = vmatpush1.msra.mxu0 0.0
      %2033 = vmatprep.subr.mxu0 0.0
      %2034 = vmatpush1.msra.mxu0 0.0
      %2035 = vmatprep.subr.mxu0 0.0
      %2036 = vmatpush1.msra.mxu0 0.0
      %2037 = vmatprep.subr.mxu0 0.0
      %2038 = vmatpush1.msra.mxu0 0.0
      %2039 = vmatprep.subr.mxu0 0.0
      %2040 = vmatpush1.msra.mxu0 0.0
      %2041 = vmatprep.subr.mxu0 0.0
      %2042 = vmatpush1.msra.mxu0 0.0
      %2043 = vmatprep.mubr.f32.mxu0 0.0
      %2044 = vmatmul.mubr.f32.gmra.mrb[0].mxu0 %v374
      %v2045 = vpop.f32.mrb[0].mxu0
      %v2046 = vadd.f32 0.0, %v2045
      %v2047 = vpop.f32.mrb[0].mxu0
      %v2048 = vadd.f32 0.0, %v2047
      %2049 = vmatprep.mubr.f32.mxu0 0.0
      %2050 = vmatmul.mubr.f32.gmra.mrb[0].mxu0 %v377
      %v2051 = vpop.f32.mrb[0].mxu0
      %v2052 = vadd.f32 0.0, %v2051
      %v2053 = vpop.f32.mrb[0].mxu0
      %v2054 = vadd.f32 0.0, %v2053
      %2055 = vmatprep.mubr.f32.mxu0 0.0
      %2056 = vmatmul.mubr.f32.gmra.mrb[0].mxu0 %v380
      %v2057 = vpop.f32.mrb[0].mxu0
      %v2058 = vadd.f32 0.0, %v2057
      %v2059 = vpop.f32.mrb[0].mxu0
      %v2060 = vadd.f32 0.0, %v2059
      %2061 = vmatprep.mubr.f32.mxu0 0.0
      %2062 = vmatmul.mubr.f32.gmra.mrb[0].mxu0 %v383
      %v2063 = vpop.f32.mrb[0].mxu0
      %v2064 = vadd.f32 0.0, %v2063
      %v2065 = vpop.f32.mrb[0].mxu0
      %v2066 = vadd.f32 0.0, %v2065
      %2067 = vmatprep.mubr.f32.mxu0 0.0
      %2068 = vmatmul.mubr.f32.gmra.mrb[0].mxu0 %v386
      %v2069 = vpop.f32.mrb[0].mxu0
      %v2070 = vadd.f32 0.0, %v2069
      %v2071 = vpop.f32.mrb[0].mxu0
      %v2072 = vadd.f32 0.0, %v2071
      %2073 = vmatprep.mubr.f32.mxu0 0.0
      %2074 = vmatmul.mubr.f32.gmra.mrb[0].mxu0 %v389
      %v2075 = vpop.f32.mrb[0].mxu0
      %v2076 = vadd.f32 0.0, %v2075
      %v2077 = vpop.f32.mrb[0].mxu0
      %v2078 = vadd.f32 0.0, %v2077
      %2079 = vmatprep.mubr.f32.mxu0 0.0
      %2080 = vmatmul.mubr.f32.gmra.mrb[0].mxu0 %v392
      %v2081 = vpop.f32.mrb[0].mxu0
      %v2082 = vadd.f32 0.0, %v2081
      %v2083 = vpop.f32.mrb[0].mxu0
      %v2084 = vadd.f32 0.0, %v2083
      %2085 = vmatprep.mubr.f32.mxu0 0.0
      %2086 = vmatmul.mubr.f32.gmra.mrb[0].mxu0 %v395
      %v2087 = vpop.f32.mrb[0].mxu0
      %v2088 = vadd.f32 0.0, %v2087
      %v2089 = vpop.f32.mrb[0].mxu0
      %v2090 = vadd.f32 0.0, %v2089
      %2091 = vdwg.mxu0
      %2092 = vmatprep.subr.mxu0 %v275
      %2093 = vmatpush1.msra.mxu0 %v274
      %2094 = vmatprep.subr.mxu0 %v307
      %2095 = vmatpush1.msra.mxu0 %v306
      %2096 = vmatprep.subr.mxu0 %v339
      %2097 = vmatpush1.msra.mxu0 %v338
      %2098 = vmatprep.subr.mxu0 %v371
      %2099 = vmatpush1.msra.mxu0 %v370
      %2100 = vmatprep.subr.mxu0 0.0
      %2101 = vmatpush1.msra.mxu0 0.0
      %2102 = vmatprep.subr.mxu0 0.0
      %2103 = vmatpush1.msra.mxu0 0.0
      %2104 = vmatprep.subr.mxu0 0.0
      %2105 = vmatpush1.msra.mxu0 0.0
      %2106 = vmatprep.subr.mxu0 0.0
      %2107 = vmatpush1.msra.mxu0 0.0
      %2108 = vmatprep.subr.mxu0 0.0
      %2109 = vmatpush1.msra.mxu0 0.0
      %2110 = vmatprep.subr.mxu0 0.0
      %2111 = vmatpush1.msra.mxu0 0.0
      %2112 = vmatprep.subr.mxu0 0.0
      %2113 = vmatpush1.msra.mxu0 0.0
      %2114 = vmatprep.subr.mxu0 0.0
      %2115 = vmatpush1.msra.mxu0 0.0
      %2116 = vmatprep.subr.mxu0 0.0
      %2117 = vmatpush1.msra.mxu0 0.0
      %2118 = vmatprep.subr.mxu0 0.0
      %2119 = vmatpush1.msra.mxu0 0.0
      %2120 = vmatprep.subr.mxu0 0.0
      %2121 = vmatpush1.msra.mxu0 0.0
      %2122 = vmatprep.subr.mxu0 0.0
      %2123 = vmatpush1.msra.mxu0 0.0
      %2124 = vmatprep.subr.mxu0 0.0
      %2125 = vmatpush1.msra.mxu0 0.0
      %2126 = vmatprep.subr.mxu0 0.0
      %2127 = vmatpush1.msra.mxu0 0.0
      %2128 = vmatprep.subr.mxu0 0.0
      %2129 = vmatpush1.msra.mxu0 0.0
      %2130 = vmatprep.subr.mxu0 0.0
      %2131 = vmatpush1.msra.mxu0 0.0
      %2132 = vmatprep.subr.mxu0 0.0
      %2133 = vmatpush1.msra.mxu0 0.0
      %2134 = vmatprep.subr.mxu0 0.0
      %2135 = vmatpush1.msra.mxu0 0.0
      %2136 = vmatprep.subr.mxu0 0.0
      %2137 = vmatpush1.msra.mxu0 0.0
      %2138 = vmatprep.subr.mxu0 0.0
      %2139 = vmatpush1.msra.mxu0 0.0
      %2140 = vmatprep.subr.mxu0 0.0
      %2141 = vmatpush1.msra.mxu0 0.0
      %2142 = vmatprep.subr.mxu0 0.0
      %2143 = vmatpush1.msra.mxu0 0.0
      %2144 = vmatprep.subr.mxu0 0.0
      %2145 = vmatpush1.msra.mxu0 0.0
      %2146 = vmatprep.subr.mxu0 0.0
      %2147 = vmatpush1.msra.mxu0 0.0
      %2148 = vmatprep.subr.mxu0 0.0
      %2149 = vmatpush1.msra.mxu0 0.0
      %2150 = vmatprep.subr.mxu0 0.0
      %2151 = vmatpush1.msra.mxu0 0.0
      %2152 = vmatprep.subr.mxu0 0.0
      %2153 = vmatpush1.msra.mxu0 0.0
      %2154 = vmatprep.subr.mxu0 0.0
      %2155 = vmatpush1.msra.mxu0 0.0
      %2156 = vmatprep.mubr.f32.mxu0 0.0
      %2157 = vmatmul.mubr.f32.gmra.mrb[0].mxu0 %v374
      %v2158 = vpop.f32.mrb[0].mxu0
      %v2159 = vadd.f32 0.0, %v2158
      %v2160 = vpop.f32.mrb[0].mxu0
      %v2161 = vadd.f32 0.0, %v2160
      %2162 = vmatprep.mubr.f32.mxu0 0.0
      %2163 = vmatmul.mubr.f32.gmra.mrb[0].mxu0 %v377
      %v2164 = vpop.f32.mrb[0].mxu0
      %v2165 = vadd.f32 0.0, %v2164
      %v2166 = vpop.f32.mrb[0].mxu0
      %v2167 = vadd.f32 0.0, %v2166
      %2168 = vmatprep.mubr.f32.mxu0 0.0
      %2169 = vmatmul.mubr.f32.gmra.mrb[0].mxu0 %v380
      %v2170 = vpop.f32.mrb[0].mxu0
      %v2171 = vadd.f32 0.0, %v2170
      %v2172 = vpop.f32.mrb[0].mxu0
      %v2173 = vadd.f32 0.0, %v2172
      %2174 = vmatprep.mubr.f32.mxu0 0.0
      %2175 = vmatmul.mubr.f32.gmra.mrb[0].mxu0 %v383
      %v2176 = vpop.f32.mrb[0].mxu0
      %v2177 = vadd.f32 0.0, %v2176
      %v2178 = vpop.f32.mrb[0].mxu0
      %v2179 = vadd.f32 0.0, %v2178
      %2180 = vmatprep.mubr.f32.mxu0 0.0
      %2181 = vmatmul.mubr.f32.gmra.mrb[0].mxu0 %v386
      %v2182 = vpop.f32.mrb[0].mxu0
      %v2183 = vadd.f32 0.0, %v2182
      %v2184 = vpop.f32.mrb[0].mxu0
      %v2185 = vadd.f32 0.0, %v2184
      %2186 = vmatprep.mubr.f32.mxu0 0.0
      %2187 = vmatmul.mubr.f32.gmra.mrb[0].mxu0 %v389
      %v2188 = vpop.f32.mrb[0].mxu0
      %v2189 = vadd.f32 0.0, %v2188
      %v2190 = vpop.f32.mrb[0].mxu0
      %v2191 = vadd.f32 0.0, %v2190
      %2192 = vmatprep.mubr.f32.mxu0 0.0
      %2193 = vmatmul.mubr.f32.gmra.mrb[0].mxu0 %v392
      %v2194 = vpop.f32.mrb[0].mxu0
      %v2195 = vadd.f32 0.0, %v2194
      %v2196 = vpop.f32.mrb[0].mxu0
      %v2197 = vadd.f32 0.0, %v2196
      %2198 = vmatprep.mubr.f32.mxu0 0.0
      %2199 = vmatmul.mubr.f32.gmra.mrb[0].mxu0 %v395
      %v2200 = vpop.f32.mrb[0].mxu0
      %v2201 = vadd.f32 0.0, %v2200
      %v2202 = vpop.f32.mrb[0].mxu0
      %v2203 = vadd.f32 0.0, %v2202
      %2204 = vdwg.mxu0
      %v2205 = vld [vmem:[%s226] sm:$0xff]
      %v2206 = vld [vmem:[%s226 + $0x8] sm:$0xff]
      %v2207 = vld [vmem:[%s226 + $0x10] sm:$0xff]
      %v2208 = vld [vmem:[%s226 + $0x18] sm:$0xff]
      %v2209 = vld [vmem:[%s226 + $0x20] sm:$0xff]
      %v2210 = vld [vmem:[%s226 + $0x28] sm:$0xff]
      %v2211 = vld [vmem:[%s226 + $0x30] sm:$0xff]
      %v2212 = vld [vmem:[%s226 + $0x38] sm:$0xff]
      %v2213 = vld [vmem:[%s226 + $0x40] sm:$0xff]
      %v2214 = vld [vmem:[%s226 + $0x48] sm:$0xff]
      %v2215 = vld [vmem:[%s226 + $0x50] sm:$0xff]
      %v2216 = vld [vmem:[%s226 + $0x58] sm:$0xff]
      %v2217 = vld [vmem:[%s226 + $0x60] sm:$0xff]
      %v2218 = vld [vmem:[%s226 + $0x68] sm:$0xff]
      %v2219 = vld [vmem:[%s226 + $0x70] sm:$0xff]
      %v2220 = vld [vmem:[%s226 + $0x78] sm:$0xff]
      %v2221 = vld [vmem:[%s226 + $0x80] sm:$0xff]
      %v2222 = vld [vmem:[%s226 + $0x88] sm:$0xff]
      %v2223 = vld [vmem:[%s226 + $0x90] sm:$0xff]
      %v2224 = vld [vmem:[%s226 + $0x98] sm:$0xff]
      %v2225 = vld [vmem:[%s226 + $0xa0] sm:$0xff]
      %v2226 = vld [vmem:[%s226 + $0xa8] sm:$0xff]
      %v2227 = vld [vmem:[%s226 + $0xb0] sm:$0xff]
      %v2228 = vld [vmem:[%s226 + $0xb8] sm:$0xff]
      %v2229 = vld [vmem:[%s226 + $0xc0] sm:$0xff]
      %v2230 = vld [vmem:[%s226 + $0xc8] sm:$0xff]
      %v2231 = vld [vmem:[%s226 + $0xd0] sm:$0xff]
      %v2232 = vld [vmem:[%s226 + $0xd8] sm:$0xff]
      %v2233 = vld [vmem:[%s226 + $0xe0] sm:$0xff]
      %v2234 = vld [vmem:[%s226 + $0xe8] sm:$0xff]
      %v2235 = vld [vmem:[%s226 + $0xf0] sm:$0xff]
      %v2236 = vld [vmem:[%s226 + $0xf8] sm:$0xff]
      %v2237 = vld [vmem:[%s226 + $0x100] sm:$0xff]
      %v2238 = vld [vmem:[%s226 + $0x108] sm:$0xff]
      %v2239 = vld [vmem:[%s226 + $0x110] sm:$0xff]
      %v2240 = vld [vmem:[%s226 + $0x118] sm:$0xff]
      %v2241 = vld [vmem:[%s226 + $0x120] sm:$0xff]
      %v2242 = vld [vmem:[%s226 + $0x128] sm:$0xff]
      %v2243 = vld [vmem:[%s226 + $0x130] sm:$0xff]
      %v2244 = vld [vmem:[%s226 + $0x138] sm:$0xff]
      %v2245 = vld [vmem:[%s226 + $0x140] sm:$0xff]
      %v2246 = vld [vmem:[%s226 + $0x148] sm:$0xff]
      %v2247 = vld [vmem:[%s226 + $0x150] sm:$0xff]
      %v2248 = vld [vmem:[%s226 + $0x158] sm:$0xff]
      %v2249 = vld [vmem:[%s226 + $0x160] sm:$0xff]
      %v2250 = vld [vmem:[%s226 + $0x168] sm:$0xff]
      %v2251 = vld [vmem:[%s226 + $0x170] sm:$0xff]
      %v2252 = vld [vmem:[%s226 + $0x178] sm:$0xff]
      %v2253 = vld [vmem:[%s226 + $0x180] sm:$0xff]
      %v2254 = vld [vmem:[%s226 + $0x188] sm:$0xff]
      %v2255 = vld [vmem:[%s226 + $0x190] sm:$0xff]
      %v2256 = vld [vmem:[%s226 + $0x198] sm:$0xff]
      %v2257 = vld [vmem:[%s226 + $0x1a0] sm:$0xff]
      %v2258 = vld [vmem:[%s226 + $0x1a8] sm:$0xff]
      %v2259 = vld [vmem:[%s226 + $0x1b0] sm:$0xff]
      %v2260 = vld [vmem:[%s226 + $0x1b8] sm:$0xff]
      %v2261 = vld [vmem:[%s226 + $0x1c0] sm:$0xff]
      %v2262 = vld [vmem:[%s226 + $0x1c8] sm:$0xff]
      %v2263 = vld [vmem:[%s226 + $0x1d0] sm:$0xff]
      %v2264 = vld [vmem:[%s226 + $0x1d8] sm:$0xff]
      %v2265 = vld [vmem:[%s226 + $0x1e0] sm:$0xff]
      %v2266 = vld [vmem:[%s226 + $0x1e8] sm:$0xff]
      %v2267 = vld [vmem:[%s226 + $0x1f0] sm:$0xff]
      %v2268 = vld [vmem:[%s226 + $0x1f8] sm:$0xff]
      %v2269 = vsub.f32 %v464, %v2205
      %v2270 = vsub.f32 %v466, %v2206
      %v2271 = vsub.f32 %v577, %v2207
      %v2272 = vsub.f32 %v579, %v2208
      %v2273 = vsub.f32 %v690, %v2209
      %v2274 = vsub.f32 %v692, %v2210
      %v2275 = vsub.f32 %v803, %v2211
      %v2276 = vsub.f32 %v805, %v2212
      %v2277 = vsub.f32 %v916, %v2213
      %v2278 = vsub.f32 %v918, %v2214
      %v2279 = vsub.f32 %v1029, %v2215
      %v2280 = vsub.f32 %v1031, %v2216
      %v2281 = vsub.f32 %v1142, %v2217
      %v2282 = vsub.f32 %v1144, %v2218
      %v2283 = vsub.f32 %v1255, %v2219
      %v2284 = vsub.f32 %v1257, %v2220
      %v2285 = vsub.f32 %v1368, %v2221
      %v2286 = vsub.f32 %v1370, %v2222
      %v2287 = vsub.f32 %v1481, %v2223
      %v2288 = vsub.f32 %v1483, %v2224
      %v2289 = vsub.f32 %v1594, %v2225
      %v2290 = vsub.f32 %v1596, %v2226
      %v2291 = vsub.f32 %v1707, %v2227
      %v2292 = vsub.f32 %v1709, %v2228
      %v2293 = vsub.f32 %v1820, %v2229
      %v2294 = vsub.f32 %v1822, %v2230
      %v2295 = vsub.f32 %v1933, %v2231
      %v2296 = vsub.f32 %v1935, %v2232
      %v2297 = vsub.f32 %v2046, %v2233
      %v2298 = vsub.f32 %v2048, %v2234
      %v2299 = vsub.f32 %v2159, %v2235
      %v2300 = vsub.f32 %v2161, %v2236
      %v2301 = vsub.f32 %v470, %v2237
      %v2302 = vsub.f32 %v472, %v2238
      %v2303 = vsub.f32 %v583, %v2239
      %v2304 = vsub.f32 %v585, %v2240
      %v2305 = vsub.f32 %v696, %v2241
      %v2306 = vsub.f32 %v698, %v2242
      %v2307 = vsub.f32 %v809, %v2243
      %v2308 = vsub.f32 %v811, %v2244
      %v2309 = vsub.f32 %v922, %v2245
      %v2310 = vsub.f32 %v924, %v2246
      %v2311 = vsub.f32 %v1035, %v2247
      %v2312 = vsub.f32 %v1037, %v2248
      %v2313 = vsub.f32 %v1148, %v2249
      %v2314 = vsub.f32 %v1150, %v2250
      %v2315 = vsub.f32 %v1261, %v2251
      %v2316 = vsub.f32 %v1263, %v2252
      %v2317 = vsub.f32 %v1374, %v2253
      %v2318 = vsub.f32 %v1376, %v2254
      %v2319 = vsub.f32 %v1487, %v2255
      %v2320 = vsub.f32 %v1489, %v2256
      %v2321 = vsub.f32 %v1600, %v2257
      %v2322 = vsub.f32 %v1602, %v2258
      %v2323 = vsub.f32 %v1713, %v2259
      %v2324 = vsub.f32 %v1715, %v2260
      %v2325 = vsub.f32 %v1826, %v2261
      %v2326 = vsub.f32 %v1828, %v2262
      %v2327 = vsub.f32 %v1939, %v2263
      %v2328 = vsub.f32 %v1941, %v2264
      %v2329 = vsub.f32 %v2052, %v2265
      %v2330 = vsub.f32 %v2054, %v2266
      %v2331 = vsub.f32 %v2165, %v2267
      %v2332 = vsub.f32 %v2167, %v2268
      %v2333 = vmul.f32 %v2269, %v2269
      %v2334 = vmul.f32 %v2270, %v2270
      %v2335 = vmul.f32 %v2271, %v2271
      %v2336 = vmul.f32 %v2272, %v2272
      %v2337 = vmul.f32 %v2273, %v2273
      %v2338 = vmul.f32 %v2274, %v2274
      %v2339 = vmul.f32 %v2275, %v2275
      %v2340 = vmul.f32 %v2276, %v2276
      %v2341 = vmul.f32 %v2277, %v2277
      %v2342 = vmul.f32 %v2278, %v2278
      %v2343 = vmul.f32 %v2279, %v2279
      %v2344 = vmul.f32 %v2280, %v2280
      %v2345 = vmul.f32 %v2281, %v2281
      %v2346 = vmul.f32 %v2282, %v2282
      %v2347 = vmul.f32 %v2283, %v2283
      %v2348 = vmul.f32 %v2284, %v2284
      %v2349 = vmul.f32 %v2285, %v2285
      %v2350 = vmul.f32 %v2286, %v2286
      %v2351 = vmul.f32 %v2287, %v2287
      %v2352 = vmul.f32 %v2288, %v2288
      %v2353 = vmul.f32 %v2289, %v2289
      %v2354 = vmul.f32 %v2290, %v2290
      %v2355 = vmul.f32 %v2291, %v2291
      %v2356 = vmul.f32 %v2292, %v2292
      %v2357 = vmul.f32 %v2293, %v2293
      %v2358 = vmul.f32 %v2294, %v2294
      %v2359 = vmul.f32 %v2295, %v2295
      %v2360 = vmul.f32 %v2296, %v2296
      %v2361 = vmul.f32 %v2297, %v2297
      %v2362 = vmul.f32 %v2298, %v2298
      %v2363 = vmul.f32 %v2299, %v2299
      %v2364 = vmul.f32 %v2300, %v2300
      %v2365 = vmul.f32 %v2301, %v2301
      %v2366 = vmul.f32 %v2302, %v2302
      %v2367 = vmul.f32 %v2303, %v2303
      %v2368 = vmul.f32 %v2304, %v2304
      %v2369 = vmul.f32 %v2305, %v2305
      %v2370 = vmul.f32 %v2306, %v2306
      %v2371 = vmul.f32 %v2307, %v2307
      %v2372 = vmul.f32 %v2308, %v2308
      %v2373 = vmul.f32 %v2309, %v2309
      %v2374 = vmul.f32 %v2310, %v2310
      %v2375 = vmul.f32 %v2311, %v2311
      %v2376 = vmul.f32 %v2312, %v2312
      %v2377 = vmul.f32 %v2313, %v2313
      %v2378 = vmul.f32 %v2314, %v2314
      %v2379 = vmul.f32 %v2315, %v2315
      %v2380 = vmul.f32 %v2316, %v2316
      %v2381 = vmul.f32 %v2317, %v2317
      %v2382 = vmul.f32 %v2318, %v2318
      %v2383 = vmul.f32 %v2319, %v2319
      %v2384 = vmul.f32 %v2320, %v2320
      %v2385 = vmul.f32 %v2321, %v2321
      %v2386 = vmul.f32 %v2322, %v2322
      %v2387 = vmul.f32 %v2323, %v2323
      %v2388 = vmul.f32 %v2324, %v2324
      %v2389 = vmul.f32 %v2325, %v2325
      %v2390 = vmul.f32 %v2326, %v2326
      %v2391 = vmul.f32 %v2327, %v2327
      %v2392 = vmul.f32 %v2328, %v2328
      %v2393 = vmul.f32 %v2329, %v2329
      %v2394 = vmul.f32 %v2330, %v2330
      %v2395 = vmul.f32 %v2331, %v2331
      %v2396 = vmul.f32 %v2332, %v2332
      %v2397 = vadd.f32 %v2333, %v2365
      %v2398 = vrot.slane %v2397, 4
      %v2399 = vadd.f32 %v2397, %v2398
      %v2400 = vrot.slane %v2399, 2
      %v2401 = vadd.f32 %v2399, %v2400
      %v2402 = vrot.slane %v2401, 1
      %v2403 = vadd.f32 %v2401, %v2402
      %v2404 = vadd.f32 %v2334, %v2366
      %v2405 = vrot.slane %v2404, 4
      %v2406 = vadd.f32 %v2404, %v2405
      %v2407 = vrot.slane %v2406, 2
      %v2408 = vadd.f32 %v2406, %v2407
      %v2409 = vrot.slane %v2408, 1
      %v2410 = vadd.f32 %v2408, %v2409
      %v2411 = vadd.f32 %v2335, %v2367
      %v2412 = vrot.slane %v2411, 4
      %v2413 = vadd.f32 %v2411, %v2412
      %v2414 = vrot.slane %v2413, 2
      %v2415 = vadd.f32 %v2413, %v2414
      %v2416 = vrot.slane %v2415, 1
      %v2417 = vadd.f32 %v2415, %v2416
      %v2418 = vadd.f32 %v2336, %v2368
      %v2419 = vrot.slane %v2418, 4
      %v2420 = vadd.f32 %v2418, %v2419
      %v2421 = vrot.slane %v2420, 2
      %v2422 = vadd.f32 %v2420, %v2421
      %v2423 = vrot.slane %v2422, 1
      %v2424 = vadd.f32 %v2422, %v2423
      %v2425 = vadd.f32 %v2337, %v2369
      %v2426 = vrot.slane %v2425, 4
      %v2427 = vadd.f32 %v2425, %v2426
      %v2428 = vrot.slane %v2427, 2
      %v2429 = vadd.f32 %v2427, %v2428
      %v2430 = vrot.slane %v2429, 1
      %v2431 = vadd.f32 %v2429, %v2430
      %v2432 = vadd.f32 %v2338, %v2370
      %v2433 = vrot.slane %v2432, 4
      %v2434 = vadd.f32 %v2432, %v2433
      %v2435 = vrot.slane %v2434, 2
      %v2436 = vadd.f32 %v2434, %v2435
      %v2437 = vrot.slane %v2436, 1
      %v2438 = vadd.f32 %v2436, %v2437
      %v2439 = vadd.f32 %v2339, %v2371
      %v2440 = vrot.slane %v2439, 4
      %v2441 = vadd.f32 %v2439, %v2440
      %v2442 = vrot.slane %v2441, 2
      %v2443 = vadd.f32 %v2441, %v2442
      %v2444 = vrot.slane %v2443, 1
      %v2445 = vadd.f32 %v2443, %v2444
      %v2446 = vadd.f32 %v2340, %v2372
      %v2447 = vrot.slane %v2446, 4
      %v2448 = vadd.f32 %v2446, %v2447
      %v2449 = vrot.slane %v2448, 2
      %v2450 = vadd.f32 %v2448, %v2449
      %v2451 = vrot.slane %v2450, 1
      %v2452 = vadd.f32 %v2450, %v2451
      %v2453 = vadd.f32 %v2341, %v2373
      %v2454 = vrot.slane %v2453, 4
      %v2455 = vadd.f32 %v2453, %v2454
      %v2456 = vrot.slane %v2455, 2
      %v2457 = vadd.f32 %v2455, %v2456
      %v2458 = vrot.slane %v2457, 1
      %v2459 = vadd.f32 %v2457, %v2458
      %v2460 = vadd.f32 %v2342, %v2374
      %v2461 = vrot.slane %v2460, 4
      %v2462 = vadd.f32 %v2460, %v2461
      %v2463 = vrot.slane %v2462, 2
      %v2464 = vadd.f32 %v2462, %v2463
      %v2465 = vrot.slane %v2464, 1
      %v2466 = vadd.f32 %v2464, %v2465
      %v2467 = vadd.f32 %v2343, %v2375
      %v2468 = vrot.slane %v2467, 4
      %v2469 = vadd.f32 %v2467, %v2468
      %v2470 = vrot.slane %v2469, 2
      %v2471 = vadd.f32 %v2469, %v2470
      %v2472 = vrot.slane %v2471, 1
      %v2473 = vadd.f32 %v2471, %v2472
      %v2474 = vadd.f32 %v2344, %v2376
      %v2475 = vrot.slane %v2474, 4
      %v2476 = vadd.f32 %v2474, %v2475
      %v2477 = vrot.slane %v2476, 2
      %v2478 = vadd.f32 %v2476, %v2477
      %v2479 = vrot.slane %v2478, 1
      %v2480 = vadd.f32 %v2478, %v2479
      %v2481 = vadd.f32 %v2345, %v2377
      %v2482 = vrot.slane %v2481, 4
      %v2483 = vadd.f32 %v2481, %v2482
      %v2484 = vrot.slane %v2483, 2
      %v2485 = vadd.f32 %v2483, %v2484
      %v2486 = vrot.slane %v2485, 1
      %v2487 = vadd.f32 %v2485, %v2486
      %v2488 = vadd.f32 %v2346, %v2378
      %v2489 = vrot.slane %v2488, 4
      %v2490 = vadd.f32 %v2488, %v2489
      %v2491 = vrot.slane %v2490, 2
      %v2492 = vadd.f32 %v2490, %v2491
      %v2493 = vrot.slane %v2492, 1
      %v2494 = vadd.f32 %v2492, %v2493
      %v2495 = vadd.f32 %v2347, %v2379
      %v2496 = vrot.slane %v2495, 4
      %v2497 = vadd.f32 %v2495, %v2496
      %v2498 = vrot.slane %v2497, 2
      %v2499 = vadd.f32 %v2497, %v2498
      %v2500 = vrot.slane %v2499, 1
      %v2501 = vadd.f32 %v2499, %v2500
      %v2502 = vadd.f32 %v2348, %v2380
      %v2503 = vrot.slane %v2502, 4
      %v2504 = vadd.f32 %v2502, %v2503
      %v2505 = vrot.slane %v2504, 2
      %v2506 = vadd.f32 %v2504, %v2505
      %v2507 = vrot.slane %v2506, 1
      %v2508 = vadd.f32 %v2506, %v2507
      %v2509 = vadd.f32 %v2349, %v2381
      %v2510 = vrot.slane %v2509, 4
      %v2511 = vadd.f32 %v2509, %v2510
      %v2512 = vrot.slane %v2511, 2
      %v2513 = vadd.f32 %v2511, %v2512
      %v2514 = vrot.slane %v2513, 1
      %v2515 = vadd.f32 %v2513, %v2514
      %v2516 = vadd.f32 %v2350, %v2382
      %v2517 = vrot.slane %v2516, 4
      %v2518 = vadd.f32 %v2516, %v2517
      %v2519 = vrot.slane %v2518, 2
      %v2520 = vadd.f32 %v2518, %v2519
      %v2521 = vrot.slane %v2520, 1
      %v2522 = vadd.f32 %v2520, %v2521
      %v2523 = vadd.f32 %v2351, %v2383
      %v2524 = vrot.slane %v2523, 4
      %v2525 = vadd.f32 %v2523, %v2524
      %v2526 = vrot.slane %v2525, 2
      %v2527 = vadd.f32 %v2525, %v2526
      %v2528 = vrot.slane %v2527, 1
      %v2529 = vadd.f32 %v2527, %v2528
      %v2530 = vadd.f32 %v2352, %v2384
      %v2531 = vrot.slane %v2530, 4
      %v2532 = vadd.f32 %v2530, %v2531
      %v2533 = vrot.slane %v2532, 2
      %v2534 = vadd.f32 %v2532, %v2533
      %v2535 = vrot.slane %v2534, 1
      %v2536 = vadd.f32 %v2534, %v2535
      %v2537 = vadd.f32 %v2353, %v2385
      %v2538 = vrot.slane %v2537, 4
      %v2539 = vadd.f32 %v2537, %v2538
      %v2540 = vrot.slane %v2539, 2
      %v2541 = vadd.f32 %v2539, %v2540
      %v2542 = vrot.slane %v2541, 1
      %v2543 = vadd.f32 %v2541, %v2542
      %v2544 = vadd.f32 %v2354, %v2386
      %v2545 = vrot.slane %v2544, 4
      %v2546 = vadd.f32 %v2544, %v2545
      %v2547 = vrot.slane %v2546, 2
      %v2548 = vadd.f32 %v2546, %v2547
      %v2549 = vrot.slane %v2548, 1
      %v2550 = vadd.f32 %v2548, %v2549
      %v2551 = vadd.f32 %v2355, %v2387
      %v2552 = vrot.slane %v2551, 4
      %v2553 = vadd.f32 %v2551, %v2552
      %v2554 = vrot.slane %v2553, 2
      %v2555 = vadd.f32 %v2553, %v2554
      %v2556 = vrot.slane %v2555, 1
      %v2557 = vadd.f32 %v2555, %v2556
      %v2558 = vadd.f32 %v2356, %v2388
      %v2559 = vrot.slane %v2558, 4
      %v2560 = vadd.f32 %v2558, %v2559
      %v2561 = vrot.slane %v2560, 2
      %v2562 = vadd.f32 %v2560, %v2561
      %v2563 = vrot.slane %v2562, 1
      %v2564 = vadd.f32 %v2562, %v2563
      %v2565 = vadd.f32 %v2357, %v2389
      %v2566 = vrot.slane %v2565, 4
      %v2567 = vadd.f32 %v2565, %v2566
      %v2568 = vrot.slane %v2567, 2
      %v2569 = vadd.f32 %v2567, %v2568
      %v2570 = vrot.slane %v2569, 1
      %v2571 = vadd.f32 %v2569, %v2570
      %v2572 = vadd.f32 %v2358, %v2390
      %v2573 = vrot.slane %v2572, 4
      %v2574 = vadd.f32 %v2572, %v2573
      %v2575 = vrot.slane %v2574, 2
      %v2576 = vadd.f32 %v2574, %v2575
      %v2577 = vrot.slane %v2576, 1
      %v2578 = vadd.f32 %v2576, %v2577
      %v2579 = vadd.f32 %v2359, %v2391
      %v2580 = vrot.slane %v2579, 4
      %v2581 = vadd.f32 %v2579, %v2580
      %v2582 = vrot.slane %v2581, 2
      %v2583 = vadd.f32 %v2581, %v2582
      %v2584 = vrot.slane %v2583, 1
      %v2585 = vadd.f32 %v2583, %v2584
      %v2586 = vadd.f32 %v2360, %v2392
      %v2587 = vrot.slane %v2586, 4
      %v2588 = vadd.f32 %v2586, %v2587
      %v2589 = vrot.slane %v2588, 2
      %v2590 = vadd.f32 %v2588, %v2589
      %v2591 = vrot.slane %v2590, 1
      %v2592 = vadd.f32 %v2590, %v2591
      %v2593 = vadd.f32 %v2361, %v2393
      %v2594 = vrot.slane %v2593, 4
      %v2595 = vadd.f32 %v2593, %v2594
      %v2596 = vrot.slane %v2595, 2
      %v2597 = vadd.f32 %v2595, %v2596
      %v2598 = vrot.slane %v2597, 1
      %v2599 = vadd.f32 %v2597, %v2598
      %v2600 = vadd.f32 %v2362, %v2394
      %v2601 = vrot.slane %v2600, 4
      %v2602 = vadd.f32 %v2600, %v2601
      %v2603 = vrot.slane %v2602, 2
      %v2604 = vadd.f32 %v2602, %v2603
      %v2605 = vrot.slane %v2604, 1
      %v2606 = vadd.f32 %v2604, %v2605
      %v2607 = vadd.f32 %v2363, %v2395
      %v2608 = vrot.slane %v2607, 4
      %v2609 = vadd.f32 %v2607, %v2608
      %v2610 = vrot.slane %v2609, 2
      %v2611 = vadd.f32 %v2609, %v2610
      %v2612 = vrot.slane %v2611, 1
      %v2613 = vadd.f32 %v2611, %v2612
      %v2614 = vadd.f32 %v2364, %v2396
      %v2615 = vrot.slane %v2614, 4
      %v2616 = vadd.f32 %v2614, %v2615
      %v2617 = vrot.slane %v2616, 2
      %v2618 = vadd.f32 %v2616, %v2617
      %v2619 = vrot.slane %v2618, 1
      %v2620 = vadd.f32 %v2618, %v2619
      %v2621 = vmul.f32 %v476, %v476
      %v2622 = vmul.f32 %v478, %v478
      %v2623 = vmul.f32 %v589, %v589
      %v2624 = vmul.f32 %v591, %v591
      %v2625 = vmul.f32 %v702, %v702
      %v2626 = vmul.f32 %v704, %v704
      %v2627 = vmul.f32 %v815, %v815
      %v2628 = vmul.f32 %v817, %v817
      %v2629 = vmul.f32 %v928, %v928
      %v2630 = vmul.f32 %v930, %v930
      %v2631 = vmul.f32 %v1041, %v1041
      %v2632 = vmul.f32 %v1043, %v1043
      %v2633 = vmul.f32 %v1154, %v1154
      %v2634 = vmul.f32 %v1156, %v1156
      %v2635 = vmul.f32 %v1267, %v1267
      %v2636 = vmul.f32 %v1269, %v1269
      %v2637 = vmul.f32 %v1380, %v1380
      %v2638 = vmul.f32 %v1382, %v1382
      %v2639 = vmul.f32 %v1493, %v1493
      %v2640 = vmul.f32 %v1495, %v1495
      %v2641 = vmul.f32 %v1606, %v1606
      %v2642 = vmul.f32 %v1608, %v1608
      %v2643 = vmul.f32 %v1719, %v1719
      %v2644 = vmul.f32 %v1721, %v1721
      %v2645 = vmul.f32 %v1832, %v1832
      %v2646 = vmul.f32 %v1834, %v1834
      %v2647 = vmul.f32 %v1945, %v1945
      %v2648 = vmul.f32 %v1947, %v1947
      %v2649 = vmul.f32 %v2058, %v2058
      %v2650 = vmul.f32 %v2060, %v2060
      %v2651 = vmul.f32 %v2171, %v2171
      %v2652 = vmul.f32 %v2173, %v2173
      %v2653 = vmul.f32 %v482, %v482
      %v2654 = vmul.f32 %v484, %v484
      %v2655 = vmul.f32 %v595, %v595
      %v2656 = vmul.f32 %v597, %v597
      %v2657 = vmul.f32 %v708, %v708
      %v2658 = vmul.f32 %v710, %v710
      %v2659 = vmul.f32 %v821, %v821
      %v2660 = vmul.f32 %v823, %v823
      %v2661 = vmul.f32 %v934, %v934
      %v2662 = vmul.f32 %v936, %v936
      %v2663 = vmul.f32 %v1047, %v1047
      %v2664 = vmul.f32 %v1049, %v1049
      %v2665 = vmul.f32 %v1160, %v1160
      %v2666 = vmul.f32 %v1162, %v1162
      %v2667 = vmul.f32 %v1273, %v1273
      %v2668 = vmul.f32 %v1275, %v1275
      %v2669 = vmul.f32 %v1386, %v1386
      %v2670 = vmul.f32 %v1388, %v1388
      %v2671 = vmul.f32 %v1499, %v1499
      %v2672 = vmul.f32 %v1501, %v1501
      %v2673 = vmul.f32 %v1612, %v1612
      %v2674 = vmul.f32 %v1614, %v1614
      %v2675 = vmul.f32 %v1725, %v1725
      %v2676 = vmul.f32 %v1727, %v1727
      %v2677 = vmul.f32 %v1838, %v1838
      %v2678 = vmul.f32 %v1840, %v1840
      %v2679 = vmul.f32 %v1951, %v1951
      %v2680 = vmul.f32 %v1953, %v1953
      %v2681 = vmul.f32 %v2064, %v2064
      %v2682 = vmul.f32 %v2066, %v2066
      %v2683 = vmul.f32 %v2177, %v2177
      %v2684 = vmul.f32 %v2179, %v2179
      %v2685 = vmul.f32 %v488, %v488
      %v2686 = vmul.f32 %v490, %v490
      %v2687 = vmul.f32 %v601, %v601
      %v2688 = vmul.f32 %v603, %v603
      %v2689 = vmul.f32 %v714, %v714
      %v2690 = vmul.f32 %v716, %v716
      %v2691 = vmul.f32 %v827, %v827
      %v2692 = vmul.f32 %v829, %v829
      %v2693 = vmul.f32 %v940, %v940
      %v2694 = vmul.f32 %v942, %v942
      %v2695 = vmul.f32 %v1053, %v1053
      %v2696 = vmul.f32 %v1055, %v1055
      %v2697 = vmul.f32 %v1166, %v1166
      %v2698 = vmul.f32 %v1168, %v1168
      %v2699 = vmul.f32 %v1279, %v1279
      %v2700 = vmul.f32 %v1281, %v1281
      %v2701 = vmul.f32 %v1392, %v1392
      %v2702 = vmul.f32 %v1394, %v1394
      %v2703 = vmul.f32 %v1505, %v1505
      %v2704 = vmul.f32 %v1507, %v1507
      %v2705 = vmul.f32 %v1618, %v1618
      %v2706 = vmul.f32 %v1620, %v1620
      %v2707 = vmul.f32 %v1731, %v1731
      %v2708 = vmul.f32 %v1733, %v1733
      %v2709 = vmul.f32 %v1844, %v1844
      %v2710 = vmul.f32 %v1846, %v1846
      %v2711 = vmul.f32 %v1957, %v1957
      %v2712 = vmul.f32 %v1959, %v1959
      %v2713 = vmul.f32 %v2070, %v2070
      %v2714 = vmul.f32 %v2072, %v2072
      %v2715 = vmul.f32 %v2183, %v2183
      %v2716 = vmul.f32 %v2185, %v2185
      %v2717 = vadd.f32 %v2621, %v2653
      %v2718 = vadd.f32 %v2717, %v2685
      %v2719 = vrot.slane %v2718, 4
      %v2720 = vadd.f32 %v2718, %v2719
      %v2721 = vrot.slane %v2720, 2
      %v2722 = vadd.f32 %v2720, %v2721
      %v2723 = vrot.slane %v2722, 1
      %v2724 = vadd.f32 %v2722, %v2723
      %v2725 = vadd.f32 %v2622, %v2654
      %v2726 = vadd.f32 %v2725, %v2686
      %v2727 = vrot.slane %v2726, 4
      %v2728 = vadd.f32 %v2726, %v2727
      %v2729 = vrot.slane %v2728, 2
      %v2730 = vadd.f32 %v2728, %v2729
      %v2731 = vrot.slane %v2730, 1
      %v2732 = vadd.f32 %v2730, %v2731
      %v2733 = vadd.f32 %v2623, %v2655
      %v2734 = vadd.f32 %v2733, %v2687
      %v2735 = vrot.slane %v2734, 4
      %v2736 = vadd.f32 %v2734, %v2735
      %v2737 = vrot.slane %v2736, 2
      %v2738 = vadd.f32 %v2736, %v2737
      %v2739 = vrot.slane %v2738, 1
      %v2740 = vadd.f32 %v2738, %v2739
      %v2741 = vadd.f32 %v2624, %v2656
      %v2742 = vadd.f32 %v2741, %v2688
      %v2743 = vrot.slane %v2742, 4
      %v2744 = vadd.f32 %v2742, %v2743
      %v2745 = vrot.slane %v2744, 2
      %v2746 = vadd.f32 %v2744, %v2745
      %v2747 = vrot.slane %v2746, 1
      %v2748 = vadd.f32 %v2746, %v2747
      %v2749 = vadd.f32 %v2625, %v2657
      %v2750 = vadd.f32 %v2749, %v2689
      %v2751 = vrot.slane %v2750, 4
      %v2752 = vadd.f32 %v2750, %v2751
      %v2753 = vrot.slane %v2752, 2
      %v2754 = vadd.f32 %v2752, %v2753
      %v2755 = vrot.slane %v2754, 1
      %v2756 = vadd.f32 %v2754, %v2755
      %v2757 = vadd.f32 %v2626, %v2658
      %v2758 = vadd.f32 %v2757, %v2690
      %v2759 = vrot.slane %v2758, 4
      %v2760 = vadd.f32 %v2758, %v2759
      %v2761 = vrot.slane %v2760, 2
      %v2762 = vadd.f32 %v2760, %v2761
      %v2763 = vrot.slane %v2762, 1
      %v2764 = vadd.f32 %v2762, %v2763
      %v2765 = vadd.f32 %v2627, %v2659
      %v2766 = vadd.f32 %v2765, %v2691
      %v2767 = vrot.slane %v2766, 4
      %v2768 = vadd.f32 %v2766, %v2767
      %v2769 = vrot.slane %v2768, 2
      %v2770 = vadd.f32 %v2768, %v2769
      %v2771 = vrot.slane %v2770, 1
      %v2772 = vadd.f32 %v2770, %v2771
      %v2773 = vadd.f32 %v2628, %v2660
      %v2774 = vadd.f32 %v2773, %v2692
      %v2775 = vrot.slane %v2774, 4
      %v2776 = vadd.f32 %v2774, %v2775
      %v2777 = vrot.slane %v2776, 2
      %v2778 = vadd.f32 %v2776, %v2777
      %v2779 = vrot.slane %v2778, 1
      %v2780 = vadd.f32 %v2778, %v2779
      %v2781 = vadd.f32 %v2629, %v2661
      %v2782 = vadd.f32 %v2781, %v2693
      %v2783 = vrot.slane %v2782, 4
      %v2784 = vadd.f32 %v2782, %v2783
      %v2785 = vrot.slane %v2784, 2
      %v2786 = vadd.f32 %v2784, %v2785
      %v2787 = vrot.slane %v2786, 1
      %v2788 = vadd.f32 %v2786, %v2787
      %v2789 = vadd.f32 %v2630, %v2662
      %v2790 = vadd.f32 %v2789, %v2694
      %v2791 = vrot.slane %v2790, 4
      %v2792 = vadd.f32 %v2790, %v2791
      %v2793 = vrot.slane %v2792, 2
      %v2794 = vadd.f32 %v2792, %v2793
      %v2795 = vrot.slane %v2794, 1
      %v2796 = vadd.f32 %v2794, %v2795
      %v2797 = vadd.f32 %v2631, %v2663
      %v2798 = vadd.f32 %v2797, %v2695
      %v2799 = vrot.slane %v2798, 4
      %v2800 = vadd.f32 %v2798, %v2799
      %v2801 = vrot.slane %v2800, 2
      %v2802 = vadd.f32 %v2800, %v2801
      %v2803 = vrot.slane %v2802, 1
      %v2804 = vadd.f32 %v2802, %v2803
      %v2805 = vadd.f32 %v2632, %v2664
      %v2806 = vadd.f32 %v2805, %v2696
      %v2807 = vrot.slane %v2806, 4
      %v2808 = vadd.f32 %v2806, %v2807
      %v2809 = vrot.slane %v2808, 2
      %v2810 = vadd.f32 %v2808, %v2809
      %v2811 = vrot.slane %v2810, 1
      %v2812 = vadd.f32 %v2810, %v2811
      %v2813 = vadd.f32 %v2633, %v2665
      %v2814 = vadd.f32 %v2813, %v2697
      %v2815 = vrot.slane %v2814, 4
      %v2816 = vadd.f32 %v2814, %v2815
      %v2817 = vrot.slane %v2816, 2
      %v2818 = vadd.f32 %v2816, %v2817
      %v2819 = vrot.slane %v2818, 1
      %v2820 = vadd.f32 %v2818, %v2819
      %v2821 = vadd.f32 %v2634, %v2666
      %v2822 = vadd.f32 %v2821, %v2698
      %v2823 = vrot.slane %v2822, 4
      %v2824 = vadd.f32 %v2822, %v2823
      %v2825 = vrot.slane %v2824, 2
      %v2826 = vadd.f32 %v2824, %v2825
      %v2827 = vrot.slane %v2826, 1
      %v2828 = vadd.f32 %v2826, %v2827
      %v2829 = vadd.f32 %v2635, %v2667
      %v2830 = vadd.f32 %v2829, %v2699
      %v2831 = vrot.slane %v2830, 4
      %v2832 = vadd.f32 %v2830, %v2831
      %v2833 = vrot.slane %v2832, 2
      %v2834 = vadd.f32 %v2832, %v2833
      %v2835 = vrot.slane %v2834, 1
      %v2836 = vadd.f32 %v2834, %v2835
      %v2837 = vadd.f32 %v2636, %v2668
      %v2838 = vadd.f32 %v2837, %v2700
      %v2839 = vrot.slane %v2838, 4
      %v2840 = vadd.f32 %v2838, %v2839
      %v2841 = vrot.slane %v2840, 2
      %v2842 = vadd.f32 %v2840, %v2841
      %v2843 = vrot.slane %v2842, 1
      %v2844 = vadd.f32 %v2842, %v2843
      %v2845 = vadd.f32 %v2637, %v2669
      %v2846 = vadd.f32 %v2845, %v2701
      %v2847 = vrot.slane %v2846, 4
      %v2848 = vadd.f32 %v2846, %v2847
      %v2849 = vrot.slane %v2848, 2
      %v2850 = vadd.f32 %v2848, %v2849
      %v2851 = vrot.slane %v2850, 1
      %v2852 = vadd.f32 %v2850, %v2851
      %v2853 = vadd.f32 %v2638, %v2670
      %v2854 = vadd.f32 %v2853, %v2702
      %v2855 = vrot.slane %v2854, 4
      %v2856 = vadd.f32 %v2854, %v2855
      %v2857 = vrot.slane %v2856, 2
      %v2858 = vadd.f32 %v2856, %v2857
      %v2859 = vrot.slane %v2858, 1
      %v2860 = vadd.f32 %v2858, %v2859
      %v2861 = vadd.f32 %v2639, %v2671
      %v2862 = vadd.f32 %v2861, %v2703
      %v2863 = vrot.slane %v2862, 4
      %v2864 = vadd.f32 %v2862, %v2863
      %v2865 = vrot.slane %v2864, 2
      %v2866 = vadd.f32 %v2864, %v2865
      %v2867 = vrot.slane %v2866, 1
      %v2868 = vadd.f32 %v2866, %v2867
      %v2869 = vadd.f32 %v2640, %v2672
      %v2870 = vadd.f32 %v2869, %v2704
      %v2871 = vrot.slane %v2870, 4
      %v2872 = vadd.f32 %v2870, %v2871
      %v2873 = vrot.slane %v2872, 2
      %v2874 = vadd.f32 %v2872, %v2873
      %v2875 = vrot.slane %v2874, 1
      %v2876 = vadd.f32 %v2874, %v2875
      %v2877 = vadd.f32 %v2641, %v2673
      %v2878 = vadd.f32 %v2877, %v2705
      %v2879 = vrot.slane %v2878, 4
      %v2880 = vadd.f32 %v2878, %v2879
      %v2881 = vrot.slane %v2880, 2
      %v2882 = vadd.f32 %v2880, %v2881
      %v2883 = vrot.slane %v2882, 1
      %v2884 = vadd.f32 %v2882, %v2883
      %v2885 = vadd.f32 %v2642, %v2674
      %v2886 = vadd.f32 %v2885, %v2706
      %v2887 = vrot.slane %v2886, 4
      %v2888 = vadd.f32 %v2886, %v2887
      %v2889 = vrot.slane %v2888, 2
      %v2890 = vadd.f32 %v2888, %v2889
      %v2891 = vrot.slane %v2890, 1
      %v2892 = vadd.f32 %v2890, %v2891
      %v2893 = vadd.f32 %v2643, %v2675
      %v2894 = vadd.f32 %v2893, %v2707
      %v2895 = vrot.slane %v2894, 4
      %v2896 = vadd.f32 %v2894, %v2895
      %v2897 = vrot.slane %v2896, 2
      %v2898 = vadd.f32 %v2896, %v2897
      %v2899 = vrot.slane %v2898, 1
      %v2900 = vadd.f32 %v2898, %v2899
      %v2901 = vadd.f32 %v2644, %v2676
      %v2902 = vadd.f32 %v2901, %v2708
      %v2903 = vrot.slane %v2902, 4
      %v2904 = vadd.f32 %v2902, %v2903
      %v2905 = vrot.slane %v2904, 2
      %v2906 = vadd.f32 %v2904, %v2905
      %v2907 = vrot.slane %v2906, 1
      %v2908 = vadd.f32 %v2906, %v2907
      %v2909 = vadd.f32 %v2645, %v2677
      %v2910 = vadd.f32 %v2909, %v2709
      %v2911 = vrot.slane %v2910, 4
      %v2912 = vadd.f32 %v2910, %v2911
      %v2913 = vrot.slane %v2912, 2
      %v2914 = vadd.f32 %v2912, %v2913
      %v2915 = vrot.slane %v2914, 1
      %v2916 = vadd.f32 %v2914, %v2915
      %v2917 = vadd.f32 %v2646, %v2678
      %v2918 = vadd.f32 %v2917, %v2710
      %v2919 = vrot.slane %v2918, 4
      %v2920 = vadd.f32 %v2918, %v2919
      %v2921 = vrot.slane %v2920, 2
      %v2922 = vadd.f32 %v2920, %v2921
      %v2923 = vrot.slane %v2922, 1
      %v2924 = vadd.f32 %v2922, %v2923
      %v2925 = vadd.f32 %v2647, %v2679
      %v2926 = vadd.f32 %v2925, %v2711
      %v2927 = vrot.slane %v2926, 4
      %v2928 = vadd.f32 %v2926, %v2927
      %v2929 = vrot.slane %v2928, 2
      %v2930 = vadd.f32 %v2928, %v2929
      %v2931 = vrot.slane %v2930, 1
      %v2932 = vadd.f32 %v2930, %v2931
      %v2933 = vadd.f32 %v2648, %v2680
      %v2934 = vadd.f32 %v2933, %v2712
      %v2935 = vrot.slane %v2934, 4
      %v2936 = vadd.f32 %v2934, %v2935
      %v2937 = vrot.slane %v2936, 2
      %v2938 = vadd.f32 %v2936, %v2937
      %v2939 = vrot.slane %v2938, 1
      %v2940 = vadd.f32 %v2938, %v2939
      %v2941 = vadd.f32 %v2649, %v2681
      %v2942 = vadd.f32 %v2941, %v2713
      %v2943 = vrot.slane %v2942, 4
      %v2944 = vadd.f32 %v2942, %v2943
      %v2945 = vrot.slane %v2944, 2
      %v2946 = vadd.f32 %v2944, %v2945
      %v2947 = vrot.slane %v2946, 1
      %v2948 = vadd.f32 %v2946, %v2947
      %v2949 = vadd.f32 %v2650, %v2682
      %v2950 = vadd.f32 %v2949, %v2714
      %v2951 = vrot.slane %v2950, 4
      %v2952 = vadd.f32 %v2950, %v2951
      %v2953 = vrot.slane %v2952, 2
      %v2954 = vadd.f32 %v2952, %v2953
      %v2955 = vrot.slane %v2954, 1
      %v2956 = vadd.f32 %v2954, %v2955
      %v2957 = vadd.f32 %v2651, %v2683
      %v2958 = vadd.f32 %v2957, %v2715
      %v2959 = vrot.slane %v2958, 4
      %v2960 = vadd.f32 %v2958, %v2959
      %v2961 = vrot.slane %v2960, 2
      %v2962 = vadd.f32 %v2960, %v2961
      %v2963 = vrot.slane %v2962, 1
      %v2964 = vadd.f32 %v2962, %v2963
      %v2965 = vadd.f32 %v2652, %v2684
      %v2966 = vadd.f32 %v2965, %v2716
      %v2967 = vrot.slane %v2966, 4
      %v2968 = vadd.f32 %v2966, %v2967
      %v2969 = vrot.slane %v2968, 2
      %v2970 = vadd.f32 %v2968, %v2969
      %v2971 = vrot.slane %v2970, 1
      %v2972 = vadd.f32 %v2970, %v2971
      %v2973 = vmul.f32 %v494, %v494
      %v2974 = vmul.f32 %v496, %v496
      %v2975 = vmul.f32 %v607, %v607
      %v2976 = vmul.f32 %v609, %v609
      %v2977 = vmul.f32 %v720, %v720
      %v2978 = vmul.f32 %v722, %v722
      %v2979 = vmul.f32 %v833, %v833
      %v2980 = vmul.f32 %v835, %v835
      %v2981 = vmul.f32 %v946, %v946
      %v2982 = vmul.f32 %v948, %v948
      %v2983 = vmul.f32 %v1059, %v1059
      %v2984 = vmul.f32 %v1061, %v1061
      %v2985 = vmul.f32 %v1172, %v1172
      %v2986 = vmul.f32 %v1174, %v1174
      %v2987 = vmul.f32 %v1285, %v1285
      %v2988 = vmul.f32 %v1287, %v1287
      %v2989 = vmul.f32 %v1398, %v1398
      %v2990 = vmul.f32 %v1400, %v1400
      %v2991 = vmul.f32 %v1511, %v1511
      %v2992 = vmul.f32 %v1513, %v1513
      %v2993 = vmul.f32 %v1624, %v1624
      %v2994 = vmul.f32 %v1626, %v1626
      %v2995 = vmul.f32 %v1737, %v1737
      %v2996 = vmul.f32 %v1739, %v1739
      %v2997 = vmul.f32 %v1850, %v1850
      %v2998 = vmul.f32 %v1852, %v1852
      %v2999 = vmul.f32 %v1963, %v1963
      %v3000 = vmul.f32 %v1965, %v1965
      %v3001 = vmul.f32 %v2076, %v2076
      %v3002 = vmul.f32 %v2078, %v2078
      %v3003 = vmul.f32 %v2189, %v2189
      %v3004 = vmul.f32 %v2191, %v2191
      %v3005 = vmul.f32 %v500, %v500
      %v3006 = vmul.f32 %v502, %v502
      %v3007 = vmul.f32 %v613, %v613
      %v3008 = vmul.f32 %v615, %v615
      %v3009 = vmul.f32 %v726, %v726
      %v3010 = vmul.f32 %v728, %v728
      %v3011 = vmul.f32 %v839, %v839
      %v3012 = vmul.f32 %v841, %v841
      %v3013 = vmul.f32 %v952, %v952
      %v3014 = vmul.f32 %v954, %v954
      %v3015 = vmul.f32 %v1065, %v1065
      %v3016 = vmul.f32 %v1067, %v1067
      %v3017 = vmul.f32 %v1178, %v1178
      %v3018 = vmul.f32 %v1180, %v1180
      %v3019 = vmul.f32 %v1291, %v1291
      %v3020 = vmul.f32 %v1293, %v1293
      %v3021 = vmul.f32 %v1404, %v1404
      %v3022 = vmul.f32 %v1406, %v1406
      %v3023 = vmul.f32 %v1517, %v1517
      %v3024 = vmul.f32 %v1519, %v1519
      %v3025 = vmul.f32 %v1630, %v1630
      %v3026 = vmul.f32 %v1632, %v1632
      %v3027 = vmul.f32 %v1743, %v1743
      %v3028 = vmul.f32 %v1745, %v1745
      %v3029 = vmul.f32 %v1856, %v1856
      %v3030 = vmul.f32 %v1858, %v1858
      %v3031 = vmul.f32 %v1969, %v1969
      %v3032 = vmul.f32 %v1971, %v1971
      %v3033 = vmul.f32 %v2082, %v2082
      %v3034 = vmul.f32 %v2084, %v2084
      %v3035 = vmul.f32 %v2195, %v2195
      %v3036 = vmul.f32 %v2197, %v2197
      %v3037 = vadd.f32 %v2973, %v3005
      %v3038 = vadd.f32 %v2974, %v3006
      %v3039 = vadd.f32 %v2975, %v3007
      %v3040 = vadd.f32 %v2976, %v3008
      %v3041 = vadd.f32 %v2977, %v3009
      %v3042 = vadd.f32 %v2978, %v3010
      %v3043 = vadd.f32 %v2979, %v3011
      %v3044 = vadd.f32 %v2980, %v3012
      %v3045 = vadd.f32 %v2981, %v3013
      %v3046 = vadd.f32 %v2982, %v3014
      %v3047 = vadd.f32 %v2983, %v3015
      %v3048 = vadd.f32 %v2984, %v3016
      %v3049 = vadd.f32 %v2985, %v3017
      %v3050 = vadd.f32 %v2986, %v3018
      %v3051 = vadd.f32 %v2987, %v3019
      %v3052 = vadd.f32 %v2988, %v3020
      %v3053 = vadd.f32 %v2989, %v3021
      %v3054 = vadd.f32 %v2990, %v3022
      %v3055 = vadd.f32 %v2991, %v3023
      %v3056 = vadd.f32 %v2992, %v3024
      %v3057 = vadd.f32 %v2993, %v3025
      %v3058 = vadd.f32 %v2994, %v3026
      %v3059 = vadd.f32 %v2995, %v3027
      %v3060 = vadd.f32 %v2996, %v3028
      %v3061 = vadd.f32 %v2997, %v3029
      %v3062 = vadd.f32 %v2998, %v3030
      %v3063 = vadd.f32 %v2999, %v3031
      %v3064 = vadd.f32 %v3000, %v3032
      %v3065 = vadd.f32 %v3001, %v3033
      %v3066 = vadd.f32 %v3002, %v3034
      %v3067 = vadd.f32 %v3003, %v3035
      %v3068 = vadd.f32 %v3004, %v3036
      %v3069 = vmul.f32 %v506, %v506
      %v3070 = vmul.f32 %v508, %v508
      %v3071 = vmul.f32 %v619, %v619
      %v3072 = vmul.f32 %v621, %v621
      %v3073 = vmul.f32 %v732, %v732
      %v3074 = vmul.f32 %v734, %v734
      %v3075 = vmul.f32 %v845, %v845
      %v3076 = vmul.f32 %v847, %v847
      %v3077 = vmul.f32 %v958, %v958
      %v3078 = vmul.f32 %v960, %v960
      %v3079 = vmul.f32 %v1071, %v1071
      %v3080 = vmul.f32 %v1073, %v1073
      %v3081 = vmul.f32 %v1184, %v1184
      %v3082 = vmul.f32 %v1186, %v1186
      %v3083 = vmul.f32 %v1297, %v1297
      %v3084 = vmul.f32 %v1299, %v1299
      %v3085 = vmul.f32 %v1410, %v1410
      %v3086 = vmul.f32 %v1412, %v1412
      %v3087 = vmul.f32 %v1523, %v1523
      %v3088 = vmul.f32 %v1525, %v1525
      %v3089 = vmul.f32 %v1636, %v1636
      %v3090 = vmul.f32 %v1638, %v1638
      %v3091 = vmul.f32 %v1749, %v1749
      %v3092 = vmul.f32 %v1751, %v1751
      %v3093 = vmul.f32 %v1862, %v1862
      %v3094 = vmul.f32 %v1864, %v1864
      %v3095 = vmul.f32 %v1975, %v1975
      %v3096 = vmul.f32 %v1977, %v1977
      %v3097 = vmul.f32 %v2088, %v2088
      %v3098 = vmul.f32 %v2090, %v2090
      %v3099 = vmul.f32 %v2201, %v2201
      %v3100 = vmul.f32 %v2203, %v2203
      %v3101 = vadd.f32 %v3037, %v3069
      %v3102 = vadd.f32 %v3038, %v3070
      %v3103 = vadd.f32 %v3039, %v3071
      %v3104 = vadd.f32 %v3040, %v3072
      %v3105 = vadd.f32 %v3041, %v3073
      %v3106 = vadd.f32 %v3042, %v3074
      %v3107 = vadd.f32 %v3043, %v3075
      %v3108 = vadd.f32 %v3044, %v3076
      %v3109 = vadd.f32 %v3045, %v3077
      %v3110 = vadd.f32 %v3046, %v3078
      %v3111 = vadd.f32 %v3047, %v3079
      %v3112 = vadd.f32 %v3048, %v3080
      %v3113 = vadd.f32 %v3049, %v3081
      %v3114 = vadd.f32 %v3050, %v3082
      %v3115 = vadd.f32 %v3051, %v3083
      %v3116 = vadd.f32 %v3052, %v3084
      %v3117 = vadd.f32 %v3053, %v3085
      %v3118 = vadd.f32 %v3054, %v3086
      %v3119 = vadd.f32 %v3055, %v3087
      %v3120 = vadd.f32 %v3056, %v3088
      %v3121 = vadd.f32 %v3057, %v3089
      %v3122 = vadd.f32 %v3058, %v3090
      %v3123 = vadd.f32 %v3059, %v3091
      %v3124 = vadd.f32 %v3060, %v3092
      %v3125 = vadd.f32 %v3061, %v3093
      %v3126 = vadd.f32 %v3062, %v3094
      %v3127 = vadd.f32 %v3063, %v3095
      %v3128 = vadd.f32 %v3064, %v3096
      %v3129 = vadd.f32 %v3065, %v3097
      %v3130 = vadd.f32 %v3066, %v3098
      %v3131 = vadd.f32 %v3067, %v3099
      %v3132 = vadd.f32 %v3068, %v3100
      %v3133 = vld [vmem:[%s231] sm:$0xff]
      %v3134 = vld [vmem:[%s231 + $0x8] sm:$0xff]
      %v3135 = vld [vmem:[%s231 + $0x10] sm:$0xff]
      %v3136 = vld [vmem:[%s231 + $0x18] sm:$0xff]
      %v3137 = vld [vmem:[%s231 + $0x20] sm:$0xff]
      %v3138 = vld [vmem:[%s231 + $0x28] sm:$0xff]
      %v3139 = vld [vmem:[%s231 + $0x30] sm:$0xff]
      %v3140 = vld [vmem:[%s231 + $0x38] sm:$0xff]
      %v3141 = vld [vmem:[%s231 + $0x40] sm:$0xff]
      %v3142 = vld [vmem:[%s231 + $0x48] sm:$0xff]
      %v3143 = vld [vmem:[%s231 + $0x50] sm:$0xff]
      %v3144 = vld [vmem:[%s231 + $0x58] sm:$0xff]
      %v3145 = vld [vmem:[%s231 + $0x60] sm:$0xff]
      %v3146 = vld [vmem:[%s231 + $0x68] sm:$0xff]
      %v3147 = vld [vmem:[%s231 + $0x70] sm:$0xff]
      %v3148 = vld [vmem:[%s231 + $0x78] sm:$0xff]
      %v3149 = vld [vmem:[%s231 + $0x80] sm:$0xff]
      %v3150 = vld [vmem:[%s231 + $0x88] sm:$0xff]
      %v3151 = vld [vmem:[%s231 + $0x90] sm:$0xff]
      %v3152 = vld [vmem:[%s231 + $0x98] sm:$0xff]
      %v3153 = vld [vmem:[%s231 + $0xa0] sm:$0xff]
      %v3154 = vld [vmem:[%s231 + $0xa8] sm:$0xff]
      %v3155 = vld [vmem:[%s231 + $0xb0] sm:$0xff]
      %v3156 = vld [vmem:[%s231 + $0xb8] sm:$0xff]
      %v3157 = vld [vmem:[%s231 + $0xc0] sm:$0xff]
      %v3158 = vld [vmem:[%s231 + $0xc8] sm:$0xff]
      %v3159 = vld [vmem:[%s231 + $0xd0] sm:$0xff]
      %v3160 = vld [vmem:[%s231 + $0xd8] sm:$0xff]
      %v3161 = vld [vmem:[%s231 + $0xe0] sm:$0xff]
      %v3162 = vld [vmem:[%s231 + $0xe8] sm:$0xff]
      %v3163 = vld [vmem:[%s231 + $0xf0] sm:$0xff]
      %v3164 = vld [vmem:[%s231 + $0xf8] sm:$0xff]
      %v3165 = vsub.f32 %v3101, %v3133
      %v3166 = vsub.f32 %v3102, %v3134
      %v3167 = vsub.f32 %v3103, %v3135
      %v3168 = vsub.f32 %v3104, %v3136
      %v3169 = vsub.f32 %v3105, %v3137
      %v3170 = vsub.f32 %v3106, %v3138
      %v3171 = vsub.f32 %v3107, %v3139
      %v3172 = vsub.f32 %v3108, %v3140
      %v3173 = vsub.f32 %v3109, %v3141
      %v3174 = vsub.f32 %v3110, %v3142
      %v3175 = vsub.f32 %v3111, %v3143
      %v3176 = vsub.f32 %v3112, %v3144
      %v3177 = vsub.f32 %v3113, %v3145
      %v3178 = vsub.f32 %v3114, %v3146
      %v3179 = vsub.f32 %v3115, %v3147
      %v3180 = vsub.f32 %v3116, %v3148
      %v3181 = vsub.f32 %v3117, %v3149
      %v3182 = vsub.f32 %v3118, %v3150
      %v3183 = vsub.f32 %v3119, %v3151
      %v3184 = vsub.f32 %v3120, %v3152
      %v3185 = vsub.f32 %v3121, %v3153
      %v3186 = vsub.f32 %v3122, %v3154
      %v3187 = vsub.f32 %v3123, %v3155
      %v3188 = vsub.f32 %v3124, %v3156
      %v3189 = vsub.f32 %v3125, %v3157
      %v3190 = vsub.f32 %v3126, %v3158
      %v3191 = vsub.f32 %v3127, %v3159
      %v3192 = vsub.f32 %v3128, %v3160
      %v3193 = vsub.f32 %v3129, %v3161
      %v3194 = vsub.f32 %v3130, %v3162
      %v3195 = vsub.f32 %v3131, %v3163
      %v3196 = vsub.f32 %v3132, %v3164
      %v3197 = vmul.f32 %v3165, %v3165
      %v3198 = vmul.f32 %v3166, %v3166
      %v3199 = vmul.f32 %v3167, %v3167
      %v3200 = vmul.f32 %v3168, %v3168
      %v3201 = vmul.f32 %v3169, %v3169
      %v3202 = vmul.f32 %v3170, %v3170
      %v3203 = vmul.f32 %v3171, %v3171
      %v3204 = vmul.f32 %v3172, %v3172
      %v3205 = vmul.f32 %v3173, %v3173
      %v3206 = vmul.f32 %v3174, %v3174
      %v3207 = vmul.f32 %v3175, %v3175
      %v3208 = vmul.f32 %v3176, %v3176
      %v3209 = vmul.f32 %v3177, %v3177
      %v3210 = vmul.f32 %v3178, %v3178
      %v3211 = vmul.f32 %v3179, %v3179
      %v3212 = vmul.f32 %v3180, %v3180
      %v3213 = vmul.f32 %v3181, %v3181
      %v3214 = vmul.f32 %v3182, %v3182
      %v3215 = vmul.f32 %v3183, %v3183
      %v3216 = vmul.f32 %v3184, %v3184
      %v3217 = vmul.f32 %v3185, %v3185
      %v3218 = vmul.f32 %v3186, %v3186
      %v3219 = vmul.f32 %v3187, %v3187
      %v3220 = vmul.f32 %v3188, %v3188
      %v3221 = vmul.f32 %v3189, %v3189
      %v3222 = vmul.f32 %v3190, %v3190
      %v3223 = vmul.f32 %v3191, %v3191
      %v3224 = vmul.f32 %v3192, %v3192
      %v3225 = vmul.f32 %v3193, %v3193
      %v3226 = vmul.f32 %v3194, %v3194
      %v3227 = vmul.f32 %v3195, %v3195
      %v3228 = vmul.f32 %v3196, %v3196
      %v3229 = vrot.slane %v3197, 4
      %v3230 = vadd.f32 %v3197, %v3229
      %v3231 = vrot.slane %v3230, 2
      %v3232 = vadd.f32 %v3230, %v3231
      %v3233 = vrot.slane %v3232, 1
      %v3234 = vadd.f32 %v3232, %v3233
      %v3235 = vrot.slane %v3198, 4
      %v3236 = vadd.f32 %v3198, %v3235
      %v3237 = vrot.slane %v3236, 2
      %v3238 = vadd.f32 %v3236, %v3237
      %v3239 = vrot.slane %v3238, 1
      %v3240 = vadd.f32 %v3238, %v3239
      %v3241 = vrot.slane %v3199, 4
      %v3242 = vadd.f32 %v3199, %v3241
      %v3243 = vrot.slane %v3242, 2
      %v3244 = vadd.f32 %v3242, %v3243
      %v3245 = vrot.slane %v3244, 1
      %v3246 = vadd.f32 %v3244, %v3245
      %v3247 = vrot.slane %v3200, 4
      %v3248 = vadd.f32 %v3200, %v3247
      %v3249 = vrot.slane %v3248, 2
      %v3250 = vadd.f32 %v3248, %v3249
      %v3251 = vrot.slane %v3250, 1
      %v3252 = vadd.f32 %v3250, %v3251
      %v3253 = vrot.slane %v3201, 4
      %v3254 = vadd.f32 %v3201, %v3253
      %v3255 = vrot.slane %v3254, 2
      %v3256 = vadd.f32 %v3254, %v3255
      %v3257 = vrot.slane %v3256, 1
      %v3258 = vadd.f32 %v3256, %v3257
      %v3259 = vrot.slane %v3202, 4
      %v3260 = vadd.f32 %v3202, %v3259
      %v3261 = vrot.slane %v3260, 2
      %v3262 = vadd.f32 %v3260, %v3261
      %v3263 = vrot.slane %v3262, 1
      %v3264 = vadd.f32 %v3262, %v3263
      %v3265 = vrot.slane %v3203, 4
      %v3266 = vadd.f32 %v3203, %v3265
      %v3267 = vrot.slane %v3266, 2
      %v3268 = vadd.f32 %v3266, %v3267
      %v3269 = vrot.slane %v3268, 1
      %v3270 = vadd.f32 %v3268, %v3269
      %v3271 = vrot.slane %v3204, 4
      %v3272 = vadd.f32 %v3204, %v3271
      %v3273 = vrot.slane %v3272, 2
      %v3274 = vadd.f32 %v3272, %v3273
      %v3275 = vrot.slane %v3274, 1
      %v3276 = vadd.f32 %v3274, %v3275
      %v3277 = vrot.slane %v3205, 4
      %v3278 = vadd.f32 %v3205, %v3277
      %v3279 = vrot.slane %v3278, 2
      %v3280 = vadd.f32 %v3278, %v3279
      %v3281 = vrot.slane %v3280, 1
      %v3282 = vadd.f32 %v3280, %v3281
      %v3283 = vrot.slane %v3206, 4
      %v3284 = vadd.f32 %v3206, %v3283
      %v3285 = vrot.slane %v3284, 2
      %v3286 = vadd.f32 %v3284, %v3285
      %v3287 = vrot.slane %v3286, 1
      %v3288 = vadd.f32 %v3286, %v3287
      %v3289 = vrot.slane %v3207, 4
      %v3290 = vadd.f32 %v3207, %v3289
      %v3291 = vrot.slane %v3290, 2
      %v3292 = vadd.f32 %v3290, %v3291
      %v3293 = vrot.slane %v3292, 1
      %v3294 = vadd.f32 %v3292, %v3293
      %v3295 = vrot.slane %v3208, 4
      %v3296 = vadd.f32 %v3208, %v3295
      %v3297 = vrot.slane %v3296, 2
      %v3298 = vadd.f32 %v3296, %v3297
      %v3299 = vrot.slane %v3298, 1
      %v3300 = vadd.f32 %v3298, %v3299
      %v3301 = vrot.slane %v3209, 4
      %v3302 = vadd.f32 %v3209, %v3301
      %v3303 = vrot.slane %v3302, 2
      %v3304 = vadd.f32 %v3302, %v3303
      %v3305 = vrot.slane %v3304, 1
      %v3306 = vadd.f32 %v3304, %v3305
      %v3307 = vrot.slane %v3210, 4
      %v3308 = vadd.f32 %v3210, %v3307
      %v3309 = vrot.slane %v3308, 2
      %v3310 = vadd.f32 %v3308, %v3309
      %v3311 = vrot.slane %v3310, 1
      %v3312 = vadd.f32 %v3310, %v3311
      %v3313 = vrot.slane %v3211, 4
      %v3314 = vadd.f32 %v3211, %v3313
      %v3315 = vrot.slane %v3314, 2
      %v3316 = vadd.f32 %v3314, %v3315
      %v3317 = vrot.slane %v3316, 1
      %v3318 = vadd.f32 %v3316, %v3317
      %v3319 = vrot.slane %v3212, 4
      %v3320 = vadd.f32 %v3212, %v3319
      %v3321 = vrot.slane %v3320, 2
      %v3322 = vadd.f32 %v3320, %v3321
      %v3323 = vrot.slane %v3322, 1
      %v3324 = vadd.f32 %v3322, %v3323
      %v3325 = vrot.slane %v3213, 4
      %v3326 = vadd.f32 %v3213, %v3325
      %v3327 = vrot.slane %v3326, 2
      %v3328 = vadd.f32 %v3326, %v3327
      %v3329 = vrot.slane %v3328, 1
      %v3330 = vadd.f32 %v3328, %v3329
      %v3331 = vrot.slane %v3214, 4
      %v3332 = vadd.f32 %v3214, %v3331
      %v3333 = vrot.slane %v3332, 2
      %v3334 = vadd.f32 %v3332, %v3333
      %v3335 = vrot.slane %v3334, 1
      %v3336 = vadd.f32 %v3334, %v3335
      %v3337 = vrot.slane %v3215, 4
      %v3338 = vadd.f32 %v3215, %v3337
      %v3339 = vrot.slane %v3338, 2
      %v3340 = vadd.f32 %v3338, %v3339
      %v3341 = vrot.slane %v3340, 1
      %v3342 = vadd.f32 %v3340, %v3341
      %v3343 = vrot.slane %v3216, 4
      %v3344 = vadd.f32 %v3216, %v3343
      %v3345 = vrot.slane %v3344, 2
      %v3346 = vadd.f32 %v3344, %v3345
      %v3347 = vrot.slane %v3346, 1
      %v3348 = vadd.f32 %v3346, %v3347
      %v3349 = vrot.slane %v3217, 4
      %v3350 = vadd.f32 %v3217, %v3349
      %v3351 = vrot.slane %v3350, 2
      %v3352 = vadd.f32 %v3350, %v3351
      %v3353 = vrot.slane %v3352, 1
      %v3354 = vadd.f32 %v3352, %v3353
      %v3355 = vrot.slane %v3218, 4
      %v3356 = vadd.f32 %v3218, %v3355
      %v3357 = vrot.slane %v3356, 2
      %v3358 = vadd.f32 %v3356, %v3357
      %v3359 = vrot.slane %v3358, 1
      %v3360 = vadd.f32 %v3358, %v3359
      %v3361 = vrot.slane %v3219, 4
      %v3362 = vadd.f32 %v3219, %v3361
      %v3363 = vrot.slane %v3362, 2
      %v3364 = vadd.f32 %v3362, %v3363
      %v3365 = vrot.slane %v3364, 1
      %v3366 = vadd.f32 %v3364, %v3365
      %v3367 = vrot.slane %v3220, 4
      %v3368 = vadd.f32 %v3220, %v3367
      %v3369 = vrot.slane %v3368, 2
      %v3370 = vadd.f32 %v3368, %v3369
      %v3371 = vrot.slane %v3370, 1
      %v3372 = vadd.f32 %v3370, %v3371
      %v3373 = vrot.slane %v3221, 4
      %v3374 = vadd.f32 %v3221, %v3373
      %v3375 = vrot.slane %v3374, 2
      %v3376 = vadd.f32 %v3374, %v3375
      %v3377 = vrot.slane %v3376, 1
      %v3378 = vadd.f32 %v3376, %v3377
      %v3379 = vrot.slane %v3222, 4
      %v3380 = vadd.f32 %v3222, %v3379
      %v3381 = vrot.slane %v3380, 2
      %v3382 = vadd.f32 %v3380, %v3381
      %v3383 = vrot.slane %v3382, 1
      %v3384 = vadd.f32 %v3382, %v3383
      %v3385 = vrot.slane %v3223, 4
      %v3386 = vadd.f32 %v3223, %v3385
      %v3387 = vrot.slane %v3386, 2
      %v3388 = vadd.f32 %v3386, %v3387
      %v3389 = vrot.slane %v3388, 1
      %v3390 = vadd.f32 %v3388, %v3389
      %v3391 = vrot.slane %v3224, 4
      %v3392 = vadd.f32 %v3224, %v3391
      %v3393 = vrot.slane %v3392, 2
      %v3394 = vadd.f32 %v3392, %v3393
      %v3395 = vrot.slane %v3394, 1
      %v3396 = vadd.f32 %v3394, %v3395
      %v3397 = vrot.slane %v3225, 4
      %v3398 = vadd.f32 %v3225, %v3397
      %v3399 = vrot.slane %v3398, 2
      %v3400 = vadd.f32 %v3398, %v3399
      %v3401 = vrot.slane %v3400, 1
      %v3402 = vadd.f32 %v3400, %v3401
      %v3403 = vrot.slane %v3226, 4
      %v3404 = vadd.f32 %v3226, %v3403
      %v3405 = vrot.slane %v3404, 2
      %v3406 = vadd.f32 %v3404, %v3405
      %v3407 = vrot.slane %v3406, 1
      %v3408 = vadd.f32 %v3406, %v3407
      %v3409 = vrot.slane %v3227, 4
      %v3410 = vadd.f32 %v3227, %v3409
      %v3411 = vrot.slane %v3410, 2
      %v3412 = vadd.f32 %v3410, %v3411
      %v3413 = vrot.slane %v3412, 1
      %v3414 = vadd.f32 %v3412, %v3413
      %v3415 = vrot.slane %v3228, 4
      %v3416 = vadd.f32 %v3228, %v3415
      %v3417 = vrot.slane %v3416, 2
      %v3418 = vadd.f32 %v3416, %v3417
      %v3419 = vrot.slane %v3418, 1
      %v3420 = vadd.f32 %v3418, %v3419
      %v3421 = vmul.f32 %v2403, 0.015625
      %v3422 = vmul.f32 %v2410, 0.015625
      %v3423 = vmul.f32 %v2417, 0.015625
      %v3424 = vmul.f32 %v2424, 0.015625
      %v3425 = vmul.f32 %v2431, 0.015625
      %v3426 = vmul.f32 %v2438, 0.015625
      %v3427 = vmul.f32 %v2445, 0.015625
      %v3428 = vmul.f32 %v2452, 0.015625
      %v3429 = vmul.f32 %v2459, 0.015625
      %v3430 = vmul.f32 %v2466, 0.015625
      %v3431 = vmul.f32 %v2473, 0.015625
      %v3432 = vmul.f32 %v2480, 0.015625
      %v3433 = vmul.f32 %v2487, 0.015625
      %v3434 = vmul.f32 %v2494, 0.015625
      %v3435 = vmul.f32 %v2501, 0.015625
      %v3436 = vmul.f32 %v2508, 0.015625
      %v3437 = vmul.f32 %v2515, 0.015625
      %v3438 = vmul.f32 %v2522, 0.015625
      %v3439 = vmul.f32 %v2529, 0.015625
      %v3440 = vmul.f32 %v2536, 0.015625
      %v3441 = vmul.f32 %v2543, 0.015625
      %v3442 = vmul.f32 %v2550, 0.015625
      %v3443 = vmul.f32 %v2557, 0.015625
      %v3444 = vmul.f32 %v2564, 0.015625
      %v3445 = vmul.f32 %v2571, 0.015625
      %v3446 = vmul.f32 %v2578, 0.015625
      %v3447 = vmul.f32 %v2585, 0.015625
      %v3448 = vmul.f32 %v2592, 0.015625
      %v3449 = vmul.f32 %v2599, 0.015625
      %v3450 = vmul.f32 %v2606, 0.015625
      %v3451 = vmul.f32 %v2613, 0.015625
      %v3452 = vmul.f32 %v2620, 0.015625
      %v3453 = vmul.f32 %v2724, 0.00625
      %v3454 = vmul.f32 %v2732, 0.00625
      %v3455 = vmul.f32 %v2740, 0.00625
      %v3456 = vmul.f32 %v2748, 0.00625
      %v3457 = vmul.f32 %v2756, 0.00625
      %v3458 = vmul.f32 %v2764, 0.00625
      %v3459 = vmul.f32 %v2772, 0.00625
      %v3460 = vmul.f32 %v2780, 0.00625
      %v3461 = vmul.f32 %v2788, 0.00625
      %v3462 = vmul.f32 %v2796, 0.00625
      %v3463 = vmul.f32 %v2804, 0.00625
      %v3464 = vmul.f32 %v2812, 0.00625
      %v3465 = vmul.f32 %v2820, 0.00625
      %v3466 = vmul.f32 %v2828, 0.00625
      %v3467 = vmul.f32 %v2836, 0.00625
      %v3468 = vmul.f32 %v2844, 0.00625
      %v3469 = vmul.f32 %v2852, 0.00625
      %v3470 = vmul.f32 %v2860, 0.00625
      %v3471 = vmul.f32 %v2868, 0.00625
      %v3472 = vmul.f32 %v2876, 0.00625
      %v3473 = vmul.f32 %v2884, 0.00625
      %v3474 = vmul.f32 %v2892, 0.00625
      %v3475 = vmul.f32 %v2900, 0.00625
      %v3476 = vmul.f32 %v2908, 0.00625
      %v3477 = vmul.f32 %v2916, 0.00625
      %v3478 = vmul.f32 %v2924, 0.00625
      %v3479 = vmul.f32 %v2932, 0.00625
      %v3480 = vmul.f32 %v2940, 0.00625
      %v3481 = vmul.f32 %v2948, 0.00625
      %v3482 = vmul.f32 %v2956, 0.00625
      %v3483 = vmul.f32 %v2964, 0.00625
      %v3484 = vmul.f32 %v2972, 0.00625
      %v3485 = vadd.f32 %v3421, %v3453
      %v3486 = vadd.f32 %v3422, %v3454
      %v3487 = vadd.f32 %v3423, %v3455
      %v3488 = vadd.f32 %v3424, %v3456
      %v3489 = vadd.f32 %v3425, %v3457
      %v3490 = vadd.f32 %v3426, %v3458
      %v3491 = vadd.f32 %v3427, %v3459
      %v3492 = vadd.f32 %v3428, %v3460
      %v3493 = vadd.f32 %v3429, %v3461
      %v3494 = vadd.f32 %v3430, %v3462
      %v3495 = vadd.f32 %v3431, %v3463
      %v3496 = vadd.f32 %v3432, %v3464
      %v3497 = vadd.f32 %v3433, %v3465
      %v3498 = vadd.f32 %v3434, %v3466
      %v3499 = vadd.f32 %v3435, %v3467
      %v3500 = vadd.f32 %v3436, %v3468
      %v3501 = vadd.f32 %v3437, %v3469
      %v3502 = vadd.f32 %v3438, %v3470
      %v3503 = vadd.f32 %v3439, %v3471
      %v3504 = vadd.f32 %v3440, %v3472
      %v3505 = vadd.f32 %v3441, %v3473
      %v3506 = vadd.f32 %v3442, %v3474
      %v3507 = vadd.f32 %v3443, %v3475
      %v3508 = vadd.f32 %v3444, %v3476
      %v3509 = vadd.f32 %v3445, %v3477
      %v3510 = vadd.f32 %v3446, %v3478
      %v3511 = vadd.f32 %v3447, %v3479
      %v3512 = vadd.f32 %v3448, %v3480
      %v3513 = vadd.f32 %v3449, %v3481
      %v3514 = vadd.f32 %v3450, %v3482
      %v3515 = vadd.f32 %v3451, %v3483
      %v3516 = vadd.f32 %v3452, %v3484
      %v3517 = vmul.f32 %v3234, 0.013333334
      %v3518 = vmul.f32 %v3240, 0.013333334
      %v3519 = vmul.f32 %v3246, 0.013333334
      %v3520 = vmul.f32 %v3252, 0.013333334
      %v3521 = vmul.f32 %v3258, 0.013333334
      %v3522 = vmul.f32 %v3264, 0.013333334
      %v3523 = vmul.f32 %v3270, 0.013333334
      %v3524 = vmul.f32 %v3276, 0.013333334
      %v3525 = vmul.f32 %v3282, 0.013333334
      %v3526 = vmul.f32 %v3288, 0.013333334
      %v3527 = vmul.f32 %v3294, 0.013333334
      %v3528 = vmul.f32 %v3300, 0.013333334
      %v3529 = vmul.f32 %v3306, 0.013333334
      %v3530 = vmul.f32 %v3312, 0.013333334
      %v3531 = vmul.f32 %v3318, 0.013333334
      %v3532 = vmul.f32 %v3324, 0.013333334
      %v3533 = vmul.f32 %v3330, 0.013333334
      %v3534 = vmul.f32 %v3336, 0.013333334
      %v3535 = vmul.f32 %v3342, 0.013333334
      %v3536 = vmul.f32 %v3348, 0.013333334
      %v3537 = vmul.f32 %v3354, 0.013333334
      %v3538 = vmul.f32 %v3360, 0.013333334
      %v3539 = vmul.f32 %v3366, 0.013333334
      %v3540 = vmul.f32 %v3372, 0.013333334
      %v3541 = vmul.f32 %v3378, 0.013333334
      %v3542 = vmul.f32 %v3384, 0.013333334
      %v3543 = vmul.f32 %v3390, 0.013333334
      %v3544 = vmul.f32 %v3396, 0.013333334
      %v3545 = vmul.f32 %v3402, 0.013333334
      %v3546 = vmul.f32 %v3408, 0.013333334
      %v3547 = vmul.f32 %v3414, 0.013333334
      %v3548 = vmul.f32 %v3420, 0.013333334
      %v3549 = vadd.f32 %v3485, %v3517
      %v3550 = vadd.f32 %v3486, %v3518
      %v3551 = vadd.f32 %v3487, %v3519
      %v3552 = vadd.f32 %v3488, %v3520
      %v3553 = vadd.f32 %v3489, %v3521
      %v3554 = vadd.f32 %v3490, %v3522
      %v3555 = vadd.f32 %v3491, %v3523
      %v3556 = vadd.f32 %v3492, %v3524
      %v3557 = vadd.f32 %v3493, %v3525
      %v3558 = vadd.f32 %v3494, %v3526
      %v3559 = vadd.f32 %v3495, %v3527
      %v3560 = vadd.f32 %v3496, %v3528
      %v3561 = vadd.f32 %v3497, %v3529
      %v3562 = vadd.f32 %v3498, %v3530
      %v3563 = vadd.f32 %v3499, %v3531
      %v3564 = vadd.f32 %v3500, %v3532
      %v3565 = vadd.f32 %v3501, %v3533
      %v3566 = vadd.f32 %v3502, %v3534
      %v3567 = vadd.f32 %v3503, %v3535
      %v3568 = vadd.f32 %v3504, %v3536
      %v3569 = vadd.f32 %v3505, %v3537
      %v3570 = vadd.f32 %v3506, %v3538
      %v3571 = vadd.f32 %v3507, %v3539
      %v3572 = vadd.f32 %v3508, %v3540
      %v3573 = vadd.f32 %v3509, %v3541
      %v3574 = vadd.f32 %v3510, %v3542
      %v3575 = vadd.f32 %v3511, %v3543
      %v3576 = vadd.f32 %v3512, %v3544
      %v3577 = vadd.f32 %v3513, %v3545
      %v3578 = vadd.f32 %v3514, %v3546
      %v3579 = vadd.f32 %v3515, %v3547
      %v3580 = vadd.f32 %v3516, %v3548
      %v3613 = vcombine.low %v3549, %v3550
      %v3614 = vcombine.low %v3551, %v3552
      %v3615 = vcombine.low %v3553, %v3554
      %v3616 = vcombine.low %v3555, %v3556
      %v3618 = vunpack.c.l.s4 1966171168
      %v3619 = vunpack.c.0.s8 %v3618
      %v3620 = vlaneseq
      %v3621 = vshrl.u32 %v3620, 7
      %v3622 = vsub.s32 %v3619, %v3621
      %v3623 = vrot.slane %v3613, %v3622
      %v3625 = vunpack.c.l.s4 1966171168
      %v3626 = vunpack.c.0.s8 %v3625
      %v3627 = vlaneseq
      %v3628 = vshrl.u32 %v3627, 7
      %v3629 = vsub.s32 %v3626, %v3628
      %v3630 = vrot.slane %v3614, %v3629
      %v3632 = vunpack.c.l.s4 1966171168
      %v3633 = vunpack.c.0.s8 %v3632
      %v3634 = vlaneseq
      %v3635 = vshrl.u32 %v3634, 7
      %v3636 = vsub.s32 %v3633, %v3635
      %v3637 = vrot.slane %v3615, %v3636
      %v3639 = vunpack.c.l.s4 1966171168
      %v3640 = vunpack.c.0.s8 %v3639
      %v3641 = vlaneseq
      %v3642 = vshrl.u32 %v3641, 7
      %v3643 = vsub.s32 %v3640, %v3642
      %v3644 = vrot.slane %v3616, %v3643
      %v3645 = vcombine.low %v3623, %v3630
      %v3646 = vcombine.low %v3637, %v3644
      %v3648 = vunpack.c.l.s4 1966171168
      %v3649 = vunpack.c.0.s8 %v3648
      %v3650 = vlaneseq
      %v3651 = vshrl.u32 %v3650, 7
      %v3652 = vsub.s32 %v3649, %v3651
      %v3653 = vrot.slane %v3645, %v3652
      %v3655 = vunpack.c.l.s4 1966171168
      %v3656 = vunpack.c.0.s8 %v3655
      %v3657 = vlaneseq
      %v3658 = vshrl.u32 %v3657, 7
      %v3659 = vsub.s32 %v3656, %v3658
      %v3660 = vrot.slane %v3646, %v3659
      %v3661 = vcombine.low %v3653, %v3660
      %v3662 = vcombine.low %v3557, %v3558
      %v3663 = vcombine.low %v3559, %v3560
      %v3664 = vcombine.low %v3561, %v3562
      %v3665 = vcombine.low %v3563, %v3564
      %v3667 = vunpack.c.l.s4 1966171168
      %v3668 = vunpack.c.0.s8 %v3667
      %v3669 = vlaneseq
      %v3670 = vshrl.u32 %v3669, 7
      %v3671 = vsub.s32 %v3668, %v3670
      %v3672 = vrot.slane %v3662, %v3671
      %v3674 = vunpack.c.l.s4 1966171168
      %v3675 = vunpack.c.0.s8 %v3674
      %v3676 = vlaneseq
      %v3677 = vshrl.u32 %v3676, 7
      %v3678 = vsub.s32 %v3675, %v3677
      %v3679 = vrot.slane %v3663, %v3678
      %v3681 = vunpack.c.l.s4 1966171168
      %v3682 = vunpack.c.0.s8 %v3681
      %v3683 = vlaneseq
      %v3684 = vshrl.u32 %v3683, 7
      %v3685 = vsub.s32 %v3682, %v3684
      %v3686 = vrot.slane %v3664, %v3685
      %v3688 = vunpack.c.l.s4 1966171168
      %v3689 = vunpack.c.0.s8 %v3688
      %v3690 = vlaneseq
      %v3691 = vshrl.u32 %v3690, 7
      %v3692 = vsub.s32 %v3689, %v3691
      %v3693 = vrot.slane %v3665, %v3692
      %v3694 = vcombine.low %v3672, %v3679
      %v3695 = vcombine.low %v3686, %v3693
      %v3697 = vunpack.c.l.s4 1966171168
      %v3698 = vunpack.c.0.s8 %v3697
      %v3699 = vlaneseq
      %v3700 = vshrl.u32 %v3699, 7
      %v3701 = vsub.s32 %v3698, %v3700
      %v3702 = vrot.slane %v3694, %v3701
      %v3704 = vunpack.c.l.s4 1966171168
      %v3705 = vunpack.c.0.s8 %v3704
      %v3706 = vlaneseq
      %v3707 = vshrl.u32 %v3706, 7
      %v3708 = vsub.s32 %v3705, %v3707
      %v3709 = vrot.slane %v3695, %v3708
      %v3710 = vcombine.low %v3702, %v3709
      %v3711 = vcombine.low %v3565, %v3566
      %v3712 = vcombine.low %v3567, %v3568
      %v3713 = vcombine.low %v3569, %v3570
      %v3714 = vcombine.low %v3571, %v3572
      %v3716 = vunpack.c.l.s4 1966171168
      %v3717 = vunpack.c.0.s8 %v3716
      %v3718 = vlaneseq
      %v3719 = vshrl.u32 %v3718, 7
      %v3720 = vsub.s32 %v3717, %v3719
      %v3721 = vrot.slane %v3711, %v3720
      %v3723 = vunpack.c.l.s4 1966171168
      %v3724 = vunpack.c.0.s8 %v3723
      %v3725 = vlaneseq
      %v3726 = vshrl.u32 %v3725, 7
      %v3727 = vsub.s32 %v3724, %v3726
      %v3728 = vrot.slane %v3712, %v3727
      %v3730 = vunpack.c.l.s4 1966171168
      %v3731 = vunpack.c.0.s8 %v3730
      %v3732 = vlaneseq
      %v3733 = vshrl.u32 %v3732, 7
      %v3734 = vsub.s32 %v3731, %v3733
      %v3735 = vrot.slane %v3713, %v3734
      %v3737 = vunpack.c.l.s4 1966171168
      %v3738 = vunpack.c.0.s8 %v3737
      %v3739 = vlaneseq
      %v3740 = vshrl.u32 %v3739, 7
      %v3741 = vsub.s32 %v3738, %v3740
      %v3742 = vrot.slane %v3714, %v3741
      %v3743 = vcombine.low %v3721, %v3728
      %v3744 = vcombine.low %v3735, %v3742
      %v3746 = vunpack.c.l.s4 1966171168
      %v3747 = vunpack.c.0.s8 %v3746
      %v3748 = vlaneseq
      %v3749 = vshrl.u32 %v3748, 7
      %v3750 = vsub.s32 %v3747, %v3749
      %v3751 = vrot.slane %v3743, %v3750
      %v3753 = vunpack.c.l.s4 1966171168
      %v3754 = vunpack.c.0.s8 %v3753
      %v3755 = vlaneseq
      %v3756 = vshrl.u32 %v3755, 7
      %v3757 = vsub.s32 %v3754, %v3756
      %v3758 = vrot.slane %v3744, %v3757
      %v3759 = vcombine.low %v3751, %v3758
      %v3760 = vcombine.low %v3573, %v3574
      %v3761 = vcombine.low %v3575, %v3576
      %v3762 = vcombine.low %v3577, %v3578
      %v3763 = vcombine.low %v3579, %v3580
      %v3765 = vunpack.c.l.s4 1966171168
      %v3766 = vunpack.c.0.s8 %v3765
      %v3767 = vlaneseq
      %v3768 = vshrl.u32 %v3767, 7
      %v3769 = vsub.s32 %v3766, %v3768
      %v3770 = vrot.slane %v3760, %v3769
      %v3772 = vunpack.c.l.s4 1966171168
      %v3773 = vunpack.c.0.s8 %v3772
      %v3774 = vlaneseq
      %v3775 = vshrl.u32 %v3774, 7
      %v3776 = vsub.s32 %v3773, %v3775
      %v3777 = vrot.slane %v3761, %v3776
      %v3779 = vunpack.c.l.s4 1966171168
      %v3780 = vunpack.c.0.s8 %v3779
      %v3781 = vlaneseq
      %v3782 = vshrl.u32 %v3781, 7
      %v3783 = vsub.s32 %v3780, %v3782
      %v3784 = vrot.slane %v3762, %v3783
      %v3786 = vunpack.c.l.s4 1966171168
      %v3787 = vunpack.c.0.s8 %v3786
      %v3788 = vlaneseq
      %v3789 = vshrl.u32 %v3788, 7
      %v3790 = vsub.s32 %v3787, %v3789
      %v3791 = vrot.slane %v3763, %v3790
      %v3792 = vcombine.low %v3770, %v3777
      %v3793 = vcombine.low %v3784, %v3791
      %v3795 = vunpack.c.l.s4 1966171168
      %v3796 = vunpack.c.0.s8 %v3795
      %v3797 = vlaneseq
      %v3798 = vshrl.u32 %v3797, 7
      %v3799 = vsub.s32 %v3796, %v3798
      %v3800 = vrot.slane %v3792, %v3799
      %v3802 = vunpack.c.l.s4 1966171168
      %v3803 = vunpack.c.0.s8 %v3802
      %v3804 = vlaneseq
      %v3805 = vshrl.u32 %v3804, 7
      %v3806 = vsub.s32 %v3803, %v3805
      %v3807 = vrot.slane %v3793, %v3806
      %v3808 = vcombine.low %v3800, %v3807
      %3813 = vst [vmem:[%s235] sm:$0xff] %v3661
      %3814 = vst [vmem:[%s235 + $0x8] sm:$0xff] %v3710
      %3815 = vst [vmem:[%s235 + $0x10] sm:$0xff] %v3759
      %3816 = vst [vmem:[%s235 + $0x18] sm:$0xff] %v3808
      %p3817 = scmp.lt.s32.totalorder %s15, 1
      %s3818 = scalar_select %p3817, %s15, 1
      %s3819 = smul.addr %s3818, 32
      %s3820 = scalar_lea.vmem %s4, %s3819
      // Predicated region
      $region37: #{forward.1} parent=35 // pred_check
        %p3821 = pneg %p132
      $region38: #{forward.1} parent=35 // pred_check_branch
        %3823 = sbr.rel (%p3821) target = $region40
      $region39: #{forward.1} parent=35 // pred_region
        _
      $region40: #{forward.1} parent=35 // pred_fallthru
        _
    $region36: #{forward.1} parent=5 // pred_fallthru
      _
    %p3824 = scmp.le.s32.totalorder 2, %s10
    // Predicated region
    $region41: #{forward.1} parent=5 // pred_check
      %p3825 = pneg %p3824
    $region42: #{forward.1} parent=5 // pred_check_branch
      %3827 = sbr.rel (%p3825) target = $region44
    $region43: #{forward.1} parent=5 // pred_region
      %s3828 = ssub.s32 %s10, 2
      // Predicated region
      $region45: #{forward.1} parent=43 // pred_check
        %p3829 = pneg %p138
      $region46: #{forward.1} parent=43 // pred_check_branch
        %3831 = sbr.rel (%p3829) target = $region48
      $region47: #{forward.1} parent=43 // pred_region
        %p3832 = scmp.lt.s32.totalorder %s16, 1
        %s3833 = scalar_select %p3832, %s16, 1
        %s3834 = smul.addr %s3833, 32
        %s3835 = scalar_lea.vmem %s4, %s3834
      $region48: #{forward.1} parent=43 // pred_fallthru
        _
    $region44: #{forward.1} parent=5 // pred_fallthru
      _
  $region6: #{forward.1} parent=0 // loop_footer
    %s14 = sadd.s32 1, %s10
  $region7: #{forward.1} parent=0 // loop_footer_branch
    %9 = sbr.rel target = $region3
  $region8: #{forward.1} parent=0 // loop_exit
    _

</llo_original>
